<compile_context>
chip_gen: v7x
topology: tpu7x:2x2x1
jax: 0.10.0
libtpu: 0.0.40
codegen_flags: <defaults>
</compile_context>

<pallas_src>
import math

import jax
import jax.numpy as jnp
from jax import lax
from jax.experimental import pallas as pl
from jax.experimental.pallas import tpu as pltpu


# ---------------------------------------------------------------------------
# Kernel 1: BatchNorm batch statistics of convblk's conv output.
#   grid=(B,); per-b (1,C,N) input blocks; (C,1) revisited accumulator outputs.
# ---------------------------------------------------------------------------
def _bn_stats_kernel(x_ref, y_ref, wcb_ref, sum_ref, ssq_ref):
    C = x_ref.shape[1]
    bf16 = jnp.bfloat16
    f32 = jnp.float32

    @pl.when(pl.program_id(0) == 0)
    def _():
        sum_ref[...] = jnp.zeros_like(sum_ref)
        ssq_ref[...] = jnp.zeros_like(ssq_ref)

    # convblk conv output for this batch element (channel_shuffle folded into
    # the column-permuted weight; [Wx | Wy] applied to x and y separately).
    a = (jnp.dot(wcb_ref[:, :C], x_ref[0].astype(bf16), preferred_element_type=f32)
         + jnp.dot(wcb_ref[:, C:], y_ref[0].astype(bf16), preferred_element_type=f32))
    sum_ref[...] += jnp.sum(a, axis=1, keepdims=True)
    ssq_ref[...] += jnp.sum(a * a, axis=1, keepdims=True)


# ---------------------------------------------------------------------------
# Kernel 2: fused dual cross-modal attention.
#   grid=(B, N // TQ): one batch element x one query-row block per step.
# ---------------------------------------------------------------------------
def _dual_cma_kernel(x_ref, y_ref, wcb_ref, scale_ref, shift_ref, a_ref,
                     u_ref, wlin_ref, blin_ref, gamma_ref, ox_ref, oy_ref):
    C = x_ref.shape[1]
    TQ = ox_ref.shape[2]
    f32 = jnp.float32
    bf16 = jnp.bfloat16

    q0 = pl.multiple_of(pl.program_id(1) * TQ, TQ)

    # --- convblk(channel_shuffle(cat(x, y))): BN scale/shift precomputed. ---
    # Recomputed per row block (negligible vs the N^2 linear1 matmul) so both
    # grid axes can stay "parallel".
    x_b = x_ref[0].astype(bf16)                                     # (C, N)
    y_b = y_ref[0].astype(bf16)
    aggr_pre = (jnp.dot(wcb_ref[:, :C], x_b, preferred_element_type=f32)
                + jnp.dot(wcb_ref[:, C:], y_b, preferred_element_type=f32))
    aggr = jnp.maximum(aggr_pre * scale_ref[...] + shift_ref[...], 0.0)

    # --- every 1x1 projection of aggr (folded q/k, row bias, value) at once --
    t_full = jnp.dot(a_ref[...], aggr.astype(bf16),
                     preferred_element_type=f32) + u_ref[...]       # (3C+8, N)
    t1 = t_full[:C].astype(bf16)            # (Wq1^T Wk1) aggr + Wq1^T bk1
    t2 = t_full[C:2 * C].astype(bf16)       # (Wq2^T Wk1) aggr + Wq2^T bk1
    rows = t_full[2 * C:2 * C + 2]          # per-branch row bias, (2, N)
    v = t_full[2 * C + 8:].astype(bf16)     # value_conv1(aggr), (C, N)

    # --- this step's query-row block ---
    xq = x_ref[0, :, pl.ds(q0, TQ)]                                 # (C, TQ) f32
    yq = y_ref[0, :, pl.ds(q0, TQ)]

    cdims = (((0,), (0,)), ((), ()))        # contract the channel axis
    e1 = lax.dot_general(xq.astype(bf16), t1, cdims,
                         preferred_element_type=f32) + rows[0:1, :]     # (TQ, N)
    e2 = lax.dot_general(yq.astype(bf16), t2, cdims,
                         preferred_element_type=f32) + rows[1:2, :]

    wlin = wlin_ref[...]                    # (N, N) bf16, pre-transposed
    blin = blin_ref[...]                    # (1, N) f32
    ldims = (((1,), (0,)), ((), ()))        # natural (M,K) x (K,N)

    def _softmax_linear(e):
        lin = lax.dot_general(e.astype(bf16), wlin, ldims,
                              preferred_element_type=f32) + blin
        lin = lin - jnp.max(lin, axis=-1, keepdims=True)
        p = jnp.exp(lin)
        return p * pl.reciprocal(jnp.sum(p, axis=-1, keepdims=True), approx=True)

    att1 = _softmax_linear(e1)              # att of y on x (query_conv1 on x)
    att2 = _softmax_linear(e2)              # att of x on y (query_conv2 on y)

    vdims = (((1,), (1,)), ((), ()))        # V (C,N) contracted with att^T
    out1 = lax.dot_general(v, att1.astype(bf16), vdims, preferred_element_type=f32)
    out2 = lax.dot_general(v, att2.astype(bf16), vdims, preferred_element_type=f32)

    g = gamma_ref[0, 0]
    ox_ref[0] = g * out1 + xq
    oy_ref[0] = g * out2 + yq


# ---------------------------------------------------------------------------
# Wrapper: weight folding (host side, once) + the two pallas_calls.
# ---------------------------------------------------------------------------
def dual_cross_modal_attention(x, y, params, *, block_q=None):
    """Forward pass of DualCrossModalAttention (training-mode BatchNorm)."""
    B, C, H, W = x.shape
    N = H * W
    f32 = jnp.float32
    bf16 = jnp.bfloat16

    xf = x.reshape(B, C, N).astype(f32)
    yf = y.reshape(B, C, N).astype(f32)

    # -- fold channel_shuffle(groups=2) + convblk conv: shuffled channel 2c is
    #    x[c] and 2c+1 is y[c], so permuting the conv weight columns removes
    #    the shuffled concat.  Layout: [Wx | Wy].
    w_cb = params["w_cb"].astype(f32)                                   # (C, 2C)
    w_cb_bf16 = jnp.concatenate([w_cb[:, 0::2], w_cb[:, 1::2]], axis=1).astype(bf16)

    # -- fold query/key 1x1 convs (Cq = C // ratio is tiny) and stack every
    #    aggr projection into one operand:
    #      energy_k = q_k^T(Wqk^T Wk1 aggr + Wqk^T bk1) + (bqk^T Wk1 aggr + bqk.bk1)
    wq1, bq1 = params["wq1"].astype(f32), params["bq1"].astype(f32)
    wq2, bq2 = params["wq2"].astype(f32), params["bq2"].astype(f32)
    wk1, bk1 = params["wk1"].astype(f32), params["bk1"].astype(f32)
    wv, bv = params["wv"].astype(f32), params["bv"].astype(f32)

    a1, u1 = wq1.T @ wk1, wq1.T @ bk1
    a2, u2 = wq2.T @ wk1, wq2.T @ bk1
    r12 = jnp.concatenate([bq1.T @ wk1, bq2.T @ wk1], axis=0)           # (2, C)
    s12 = jnp.stack([jnp.sum(bq1 * bk1), jnp.sum(bq2 * bk1)]).reshape(2, 1)
    r_blk = jnp.concatenate([r12, jnp.zeros((6, C), f32)], axis=0)      # pad -> 8 rows
    s_blk = jnp.concatenate([s12, jnp.zeros((6, 1), f32)], axis=0)
    a_full = jnp.concatenate([a1, a2, r_blk, wv], axis=0).astype(bf16)  # (3C+8, C)
    u_full = jnp.concatenate([u1, u2, s_blk, bv], axis=0)               # (3C+8, 1)

    wlin_t = params["wlin"].T.astype(bf16)   # pre-transposed: contraction axis first
    blin = params["blin"].astype(f32)        # (1, N)
    gamma1 = params["gamma1"].astype(f32)    # (1, 1)

    # ---------------- pass 1: BatchNorm batch statistics --------------------
    sums, ssq = pl.pallas_call(
        _bn_stats_kernel,
        out_shape=(jax.ShapeDtypeStruct((C, 1), f32),
                   jax.ShapeDtypeStruct((C, 1), f32)),
        grid=(B,),
        in_specs=[pl.BlockSpec((1, C, N), lambda b: (b, 0, 0)),
                  pl.BlockSpec((1, C, N), lambda b: (b, 0, 0)),
                  pl.BlockSpec((C, 2 * C), lambda b: (0, 0))],
        out_specs=(pl.BlockSpec((C, 1), lambda b: (0, 0)),
                   pl.BlockSpec((C, 1), lambda b: (0, 0))),
        compiler_params=pltpu.CompilerParams(
            dimension_semantics=("arbitrary",)),
    )(xf, yf, w_cb_bf16)

    inv_cnt = 1.0 / (B * N)
    mean = sums * inv_cnt
    var = ssq * inv_cnt - mean * mean          # biased (training-mode) variance
    scale = params["bn_gamma"].astype(f32).reshape(C, 1) * lax.rsqrt(var + 1e-5)
    shift = params["bn_beta"].astype(f32).reshape(C, 1) - mean * scale

    # ---------------- pass 2: fused attention -------------------------------
    if block_q is None:
        block_q = N
        for cand in (512, 384, 256, 128):      # largest 128-multiple divisor of N
            if N % cand == 0:
                block_q = cand
                break
    TQ = block_q
    if N % TQ:
        # TODO(synk): pad the query axis (or use a (B,R,C,TQ) output layout)
        #             for non-dividing production N; not needed at these shapes.
        raise ValueError(f"block_q={TQ} must divide N={N}")
    R = N // TQ

    # Constant-index weight operands: single VMEM buffer (avoids holding two
    # copies of the 2*N*N-byte wlin -- critical headroom on v7x's 64 MiB VMEM).
    def _const(shape):
        return pl.BlockSpec(shape, lambda b, r: (0,) * len(shape),
                            pipeline_mode=pl.Buffered(1))

    cost = pl.CostEstimate(
        flops=B * R * (2 * C * (2 * C) * N + 2 * (3 * C + 8) * C * N
                       + 4 * TQ * C * N + 4 * TQ * N * N + 4 * C * N * TQ),
        transcendentals=B * R * (2 * TQ * N),
        bytes_accessed=(4 * B * 2 * C * N          # x, y (f32)
                        + 4 * B * 2 * C * N        # out_x, out_y (f32)
                        + 2 * N * N                # wlin (bf16)
                        + 4 * ((3 * C + 8) * (C + 1) + 2 * C * C + 2 * C + N + 1)),
    )

    vmem_bytes = (
        2 * N * N + 2 * ((3 * C + 8) * C + 2 * C * C)       # bf16 weights (x1 buf)
        + 4 * (N + 2 * C + (3 * C + 8) + 1)                 # small f32 operands
        + 2 * 2 * (C * N * 4)                               # x, y blocks (x2 bufs)
        + 2 * 2 * (C * TQ * 4)                              # out blocks (x2 bufs)
        + 4 * N * (2 * (3 * C + 8))                         # aggr / t_full temps
        + 4 * TQ * N * 10                                   # energy/softmax temps
        + (8 << 20))                                        # headroom
    vmem_limit = int(min(max(vmem_bytes, 32 << 20), 128 << 20))

    out_x, out_y = pl.pallas_call(
        _dual_cma_kernel,
        out_shape=(jax.ShapeDtypeStruct((B, C, N), f32),
                   jax.ShapeDtypeStruct((B, C, N), f32)),
        grid=(B, R),
        in_specs=[
            pl.BlockSpec((1, C, N), lambda b, r: (b, 0, 0)),    # x (per-b block)
            pl.BlockSpec((1, C, N), lambda b, r: (b, 0, 0)),    # y (per-b block)
            _const((C, 2 * C)),                                 # convblk weight (bf16)
            _const((C, 1)),                                     # BN scale
            _const((C, 1)),                                     # BN shift
            _const((3 * C + 8, C)),                             # stacked projections
            _const((3 * C + 8, 1)),                             # stacked proj biases
            _const((N, N)),                                     # linear1 weight^T
            _const((1, N)),                                     # linear1 bias
            pl.BlockSpec(memory_space=pltpu.MemorySpace.SMEM),  # gamma1 scalar
        ],
        out_specs=(pl.BlockSpec((1, C, TQ), lambda b, r: (b, 0, r)),
                   pl.BlockSpec((1, C, TQ), lambda b, r: (b, 0, r))),
        compiler_params=pltpu.CompilerParams(
            dimension_semantics=("parallel", "parallel"),
            vmem_limit_bytes=vmem_limit),
        cost_estimate=cost,
    )(xf, yf, w_cb_bf16, scale, shift, a_full, u_full, wlin_t, blin, gamma1)

    return out_x.reshape(B, C, H, W), out_y.reshape(B, C, H, W)


# ---------------------------------------------------------------------------
# Deterministic parameter init (shapes follow the module's __init__).
# ---------------------------------------------------------------------------
def init_params(key, C, N, ratio=16):
    Cq = max(C // ratio, 1)

    def xavier(k, shape, fan_in, fan_out, gain=0.02):
        std = gain * math.sqrt(2.0 / (fan_in + fan_out))
        return std * jax.random.normal(k, shape, dtype=jnp.float32)

    def small(k, shape, s=0.05):
        return s * jax.random.normal(k, shape, dtype=jnp.float32)

    ks = jax.random.split(key, 12)
    return dict(
        wq1=xavier(ks[0], (Cq, C), C, Cq), bq1=small(ks[1], (Cq, 1)),   # query_conv1
        wq2=xavier(ks[2], (Cq, C), C, Cq), bq2=small(ks[3], (Cq, 1)),   # query_conv2
        wk1=xavier(ks[4], (Cq, C), C, Cq), bk1=small(ks[5], (Cq, 1)),   # key_conv1
        wv=xavier(ks[6], (C, C), C, C),    bv=small(ks[7], (C, 1)),     # value_conv1
        wlin=xavier(ks[8], (N, N), N, N),  blin=small(ks[9], (1, N)),   # linear1
        w_cb=xavier(ks[10], (C, 2 * C), 2 * C, C),                      # convblk conv
        bn_gamma=jnp.ones((C,), jnp.float32),                           # BatchNorm2d
        bn_beta=jnp.zeros((C,), jnp.float32),
        gamma1=jnp.zeros((1, 1), jnp.float32),      # nn.Parameter(torch.zeros(1))
    )


if __name__ == "__main__":
    # in_dim=32 (ratio=16 -> Cq=2 query channels), H=W=16 -> N=256.
    # block_q=128 so the demo exercises the query-row tiling path (R=2).
    B, C, H, W = 2, 32, 16, 16
    key = jax.random.PRNGKey(0)
    kx, ky, kp = jax.random.split(key, 3)
    x = jax.random.normal(kx, (B, C, H, W), dtype=jnp.float32)
    y = jax.random.normal(ky, (B, C, H, W), dtype=jnp.float32)
    params = init_params(kp, C, H * W, ratio=16)

    fwd = jax.jit(lambda xx, yy, pp: dual_cross_modal_attention(xx, yy, pp,
                                                                block_q=128))
    out_x, out_y = fwd(x, y, params)
    jax.block_until_ready((out_x, out_y))

    assert out_x.shape == (B, C, H, W) and out_y.shape == (B, C, H, W)
    assert jnp.all(jnp.isfinite(out_x)) and jnp.all(jnp.isfinite(out_y))
    print("KERNEL_OK")
</pallas_src>

<mosaic_0001>
module attributes {stable_mosaic.version = 11 : i64} {
  func.func @_bn_stats_kernel(%arg0: i32, %arg1: memref<1x32x256xf32, #tpu.memory_space<vmem>>, %arg2: memref<1x32x256xf32, #tpu.memory_space<vmem>>, %arg3: memref<32x64xbf16, #tpu.memory_space<vmem>>, %arg4: memref<32x1xf32, #tpu.memory_space<vmem>>, %arg5: memref<32x1xf32, #tpu.memory_space<vmem>>) attributes {dimension_semantics = [#tpu.dimension_semantics<arbitrary>], iteration_bounds = array<i64: 2>, scalar_prefetch = 0 : i64, scratch_operands = 0 : i64, tpu.core_type = #tpu.core_type<tc>, window_params = [{transform_indices = @transform_0, window_bounds = array<i64: 1, 32, 256>}, {transform_indices = @transform_1, window_bounds = array<i64: 1, 32, 256>}, {pipeline_mode = #tpu.pipeline_mode<synchronous>, transform_indices = @transform_2, window_bounds = array<i64: 32, 64>}, {pipeline_mode = #tpu.pipeline_mode<synchronous>, transform_indices = @transform_3, window_bounds = array<i64: 32, 1>}, {pipeline_mode = #tpu.pipeline_mode<synchronous>, transform_indices = @transform_4, window_bounds = array<i64: 32, 1>}]} {
    %c0_i32 = arith.constant 0 : i32
    %0 = arith.cmpi eq, %arg0, %c0_i32 : i32
    %1 = arith.extui %0 : i1 to i32
    %c0_i32_0 = arith.constant 0 : i32
    %2 = arith.cmpi ne, %1, %c0_i32_0 : i32
    scf.if %2 {
      %cst_20 = arith.constant 0.000000e+00 : f32
      %25 = vector.broadcast %cst_20 : f32 to vector<32x1xf32>
      %c0_21 = arith.constant 0 : index
      %c0_22 = arith.constant 0 : index
      %26 = vector.load %arg4[%c0_21, %c0_22] : memref<32x1xf32, #tpu.memory_space<vmem>>, vector<32x1xf32>
      tpu.vector_store %arg4[%c0_21, %c0_22], %25 {strides = array<i32>} : memref<32x1xf32, #tpu.memory_space<vmem>>, vector<32x1xf32>,
      %cst_23 = arith.constant 0.000000e+00 : f32
      %27 = vector.broadcast %cst_23 : f32 to vector<32x1xf32>
      %c0_24 = arith.constant 0 : index
      %c0_25 = arith.constant 0 : index
      %28 = vector.load %arg5[%c0_24, %c0_25] : memref<32x1xf32, #tpu.memory_space<vmem>>, vector<32x1xf32>
      tpu.vector_store %arg5[%c0_24, %c0_25], %27 {strides = array<i32>} : memref<32x1xf32, #tpu.memory_space<vmem>>, vector<32x1xf32>,
    } else {
    }
    %c0 = arith.constant 0 : index
    %c0_1 = arith.constant 0 : index
    %3 = vector.load %arg3[%c0, %c0_1] : memref<32x64xbf16, #tpu.memory_space<vmem>>, vector<32x32xbf16>
    %c0_2 = arith.constant 0 : index
    %c0_3 = arith.constant 0 : index
    %c0_4 = arith.constant 0 : index
    %4 = vector.load %arg1[%c0_2, %c0_3, %c0_4] : memref<1x32x256xf32, #tpu.memory_space<vmem>>, vector<1x32x256xf32>
    %5 = vector.shape_cast %4 : vector<1x32x256xf32> to vector<32x256xf32>
    %6 = arith.truncf %5 : vector<32x256xf32> to vector<32x256xbf16>
    %cst = arith.constant dense<0.000000e+00> : vector<32x256xf32>
    %7 = tpu.matmul %3, %6, %cst {dimension_numbers = #tpu.dot_dimension_numbers<[1], [0], [0], [1], [0, 0, 1, 1], [], []>} : vector<32x32xbf16>, vector<32x256xbf16>, vector<32x256xf32> -> vector<32x256xf32>
    %c0_5 = arith.constant 0 : index
    %c32 = arith.constant 32 : index
    %8 = vector.load %arg3[%c0_5, %c32] : memref<32x64xbf16, #tpu.memory_space<vmem>>, vector<32x32xbf16>
    %c0_6 = arith.constant 0 : index
    %c0_7 = arith.constant 0 : index
    %c0_8 = arith.constant 0 : index
    %9 = vector.load %arg2[%c0_6, %c0_7, %c0_8] : memref<1x32x256xf32, #tpu.memory_space<vmem>>, vector<1x32x256xf32>
    %10 = vector.shape_cast %9 : vector<1x32x256xf32> to vector<32x256xf32>
    %11 = arith.truncf %10 : vector<32x256xf32> to vector<32x256xbf16>
    %cst_9 = arith.constant dense<0.000000e+00> : vector<32x256xf32>
    %12 = tpu.matmul %8, %11, %cst_9 {dimension_numbers = #tpu.dot_dimension_numbers<[1], [0], [0], [1], [0, 0, 1, 1], [], []>} : vector<32x32xbf16>, vector<32x256xbf16>, vector<32x256xf32> -> vector<32x256xf32>
    %13 = arith.addf %7, %12 : vector<32x256xf32>
    %c0_10 = arith.constant 0 : index
    %c0_11 = arith.constant 0 : index
    %14 = vector.load %arg4[%c0_10, %c0_11] : memref<32x1xf32, #tpu.memory_space<vmem>>, vector<32x1xf32>
    %cst_12 = arith.constant dense<0.000000e+00> : vector<32xf32>
    %15 = vector.multi_reduction <add>, %13, %cst_12 [1] : vector<32x256xf32> to vector<32xf32>
    %16 = vector.shape_cast %15 : vector<32xf32> to vector<32x1xf32>
    %17 = arith.addf %14, %16 : vector<32x1xf32>
    %c0_13 = arith.constant 0 : index
    %c0_14 = arith.constant 0 : index
    %18 = vector.load %arg4[%c0_13, %c0_14] : memref<32x1xf32, #tpu.memory_space<vmem>>, vector<32x1xf32>
    tpu.vector_store %arg4[%c0_13, %c0_14], %17 {strides = array<i32>} : memref<32x1xf32, #tpu.memory_space<vmem>>, vector<32x1xf32>,
    %c0_15 = arith.constant 0 : index
    %c0_16 = arith.constant 0 : index
    %19 = vector.load %arg5[%c0_15, %c0_16] : memref<32x1xf32, #tpu.memory_space<vmem>>, vector<32x1xf32>
    %20 = arith.mulf %13, %13 : vector<32x256xf32>
    %cst_17 = arith.constant dense<0.000000e+00> : vector<32xf32>
    %21 = vector.multi_reduction <add>, %20, %cst_17 [1] : vector<32x256xf32> to vector<32xf32>
    %22 = vector.shape_cast %21 : vector<32xf32> to vector<32x1xf32>
    %23 = arith.addf %19, %22 : vector<32x1xf32>
    %c0_18 = arith.constant 0 : index
    %c0_19 = arith.constant 0 : index
    %24 = vector.load %arg5[%c0_18, %c0_19] : memref<32x1xf32, #tpu.memory_space<vmem>>, vector<32x1xf32>
    tpu.vector_store %arg5[%c0_18, %c0_19], %23 {strides = array<i32>} : memref<32x1xf32, #tpu.memory_space<vmem>>, vector<32x1xf32>,
    return
  }
  func.func @transform_0(%arg0: i32) -> (i32, i32, i32) {
    %c0_i32 = arith.constant 0 : i32
    %c0_i32_0 = arith.constant 0 : i32
    %c0_i32_1 = arith.constant 0 : i32
    return %arg0, %c0_i32, %c0_i32_0 : i32, i32, i32
  }
  func.func @transform_1(%arg0: i32) -> (i32, i32, i32) {
    %c0_i32 = arith.constant 0 : i32
    %c0_i32_0 = arith.constant 0 : i32
    %c0_i32_1 = arith.constant 0 : i32
    return %arg0, %c0_i32, %c0_i32_0 : i32, i32, i32
  }
  func.func @transform_2(%arg0: i32) -> (i32, i32) {
    %c0_i32 = arith.constant 0 : i32
    %c0_i32_0 = arith.constant 0 : i32
    %c0_i32_1 = arith.constant 0 : i32
    return %c0_i32, %c0_i32_0 : i32, i32
  }
  func.func @transform_3(%arg0: i32) -> (i32, i32) {
    %c0_i32 = arith.constant 0 : i32
    %c0_i32_0 = arith.constant 0 : i32
    %c0_i32_1 = arith.constant 0 : i32
    return %c0_i32, %c0_i32_0 : i32, i32
  }
  func.func @transform_4(%arg0: i32) -> (i32, i32) {
    %c0_i32 = arith.constant 0 : i32
    %c0_i32_0 = arith.constant 0 : i32
    %c0_i32_1 = arith.constant 0 : i32
    return %c0_i32, %c0_i32_0 : i32, i32
  }
}

module attributes {stable_mosaic.version = 11 : i64} {
  func.func @_dual_cma_kernel(%arg0: i32, %arg1: i32, %arg2: memref<1x32x256xf32, #tpu.memory_space<vmem>>, %arg3: memref<1x32x256xf32, #tpu.memory_space<vmem>>, %arg4: memref<32x64xbf16, #tpu.memory_space<vmem>>, %arg5: memref<32x1xf32, #tpu.memory_space<vmem>>, %arg6: memref<32x1xf32, #tpu.memory_space<vmem>>, %arg7: memref<104x32xbf16, #tpu.memory_space<vmem>>, %arg8: memref<104x1xf32, #tpu.memory_space<vmem>>, %arg9: memref<256x256xbf16, #tpu.memory_space<vmem>>, %arg10: memref<1x256xf32, #tpu.memory_space<vmem>>, %arg11: memref<1x1xf32, #tpu.memory_space<smem>>, %arg12: memref<1x32x128xf32, #tpu.memory_space<vmem>>, %arg13: memref<1x32x128xf32, #tpu.memory_space<vmem>>) attributes {dimension_semantics = [#tpu.dimension_semantics<parallel>, #tpu.dimension_semantics<parallel>], iteration_bounds = array<i64: 2, 2>, scalar_prefetch = 0 : i64, scratch_operands = 0 : i64, tpu.core_type = #tpu.core_type<tc>, window_params = [{transform_indices = @transform_0, window_bounds = array<i64: 1, 32, 256>}, {transform_indices = @transform_1, window_bounds = array<i64: 1, 32, 256>}, {pipeline_mode = #tpu.pipeline_mode<synchronous>, transform_indices = @transform_2, window_bounds = array<i64: 32, 64>}, {pipeline_mode = #tpu.pipeline_mode<synchronous>, transform_indices = @transform_3, window_bounds = array<i64: 32, 1>}, {pipeline_mode = #tpu.pipeline_mode<synchronous>, transform_indices = @transform_4, window_bounds = array<i64: 32, 1>}, {pipeline_mode = #tpu.pipeline_mode<synchronous>, transform_indices = @transform_5, window_bounds = array<i64: 104, 32>}, {pipeline_mode = #tpu.pipeline_mode<synchronous>, transform_indices = @transform_6, window_bounds = array<i64: 104, 1>}, {pipeline_mode = #tpu.pipeline_mode<synchronous>, transform_indices = @transform_7, window_bounds = array<i64: 256, 256>}, {pipeline_mode = #tpu.pipeline_mode<synchronous>, transform_indices = @transform_8, window_bounds = array<i64: 1, 256>}, {transform_indices = @transform_9, window_bounds = array<i64: 1, 1>}, {transform_indices = @transform_10, window_bounds = array<i64: 1, 32, 128>}, {transform_indices = @transform_11, window_bounds = array<i64: 1, 32, 128>}]} {
    %c128_i32 = arith.constant 128 : i32
    %0 = arith.muli %arg1, %c128_i32 : i32
    %1 = tpu.assume_multiple %0, 128 : i32
    %c0 = arith.constant 0 : index
    %c0_0 = arith.constant 0 : index
    %c0_1 = arith.constant 0 : index
    %2 = vector.load %arg2[%c0, %c0_0, %c0_1] : memref<1x32x256xf32, #tpu.memory_space<vmem>>, vector<1x32x256xf32>
    %3 = vector.shape_cast %2 : vector<1x32x256xf32> to vector<32x256xf32>
    %4 = arith.truncf %3 : vector<32x256xf32> to vector<32x256xbf16>
    %c0_2 = arith.constant 0 : index
    %c0_3 = arith.constant 0 : index
    %c0_4 = arith.constant 0 : index
    %5 = vector.load %arg3[%c0_2, %c0_3, %c0_4] : memref<1x32x256xf32, #tpu.memory_space<vmem>>, vector<1x32x256xf32>
    %6 = vector.shape_cast %5 : vector<1x32x256xf32> to vector<32x256xf32>
    %7 = arith.truncf %6 : vector<32x256xf32> to vector<32x256xbf16>
    %c0_5 = arith.constant 0 : index
    %c0_6 = arith.constant 0 : index
    %8 = vector.load %arg4[%c0_5, %c0_6] : memref<32x64xbf16, #tpu.memory_space<vmem>>, vector<32x32xbf16>
    %cst = arith.constant dense<0.000000e+00> : vector<32x256xf32>
    %9 = tpu.matmul %8, %4, %cst {dimension_numbers = #tpu.dot_dimension_numbers<[1], [0], [0], [1], [0, 0, 1, 1], [], []>} : vector<32x32xbf16>, vector<32x256xbf16>, vector<32x256xf32> -> vector<32x256xf32>
    %c0_7 = arith.constant 0 : index
    %c32 = arith.constant 32 : index
    %10 = vector.load %arg4[%c0_7, %c32] : memref<32x64xbf16, #tpu.memory_space<vmem>>, vector<32x32xbf16>
    %cst_8 = arith.constant dense<0.000000e+00> : vector<32x256xf32>
    %11 = tpu.matmul %10, %7, %cst_8 {dimension_numbers = #tpu.dot_dimension_numbers<[1], [0], [0], [1], [0, 0, 1, 1], [], []>} : vector<32x32xbf16>, vector<32x256xbf16>, vector<32x256xf32> -> vector<32x256xf32>
    %12 = arith.addf %9, %11 : vector<32x256xf32>
    %c0_9 = arith.constant 0 : index
    %c0_10 = arith.constant 0 : index
    %13 = vector.load %arg5[%c0_9, %c0_10] : memref<32x1xf32, #tpu.memory_space<vmem>>, vector<32x1xf32>
    %14 = vector.broadcast %13 : vector<32x1xf32> to vector<32x256xf32>
    %15 = arith.mulf %12, %14 : vector<32x256xf32>
    %c0_11 = arith.constant 0 : index
    %c0_12 = arith.constant 0 : index
    %16 = vector.load %arg6[%c0_11, %c0_12] : memref<32x1xf32, #tpu.memory_space<vmem>>, vector<32x1xf32>
    %17 = vector.broadcast %16 : vector<32x1xf32> to vector<32x256xf32>
    %18 = arith.addf %15, %17 : vector<32x256xf32>
    %cst_13 = arith.constant 0.000000e+00 : f32
    %19 = vector.broadcast %cst_13 : f32 to vector<32x256xf32>
    %20 = arith.maximumf %18, %19 : vector<32x256xf32>
    %c0_14 = arith.constant 0 : index
    %c0_15 = arith.constant 0 : index
    %21 = vector.load %arg7[%c0_14, %c0_15] : memref<104x32xbf16, #tpu.memory_space<vmem>>, vector<104x32xbf16>
    %22 = arith.truncf %20 : vector<32x256xf32> to vector<32x256xbf16>
    %cst_16 = arith.constant dense<0.000000e+00> : vector<104x256xf32>
    %23 = tpu.matmul %21, %22, %cst_16 {dimension_numbers = #tpu.dot_dimension_numbers<[1], [0], [0], [1], [0, 0, 1, 1], [], []>} : vector<104x32xbf16>, vector<32x256xbf16>, vector<104x256xf32> -> vector<104x256xf32>
    %c0_17 = arith.constant 0 : index
    %c0_18 = arith.constant 0 : index
    %24 = vector.load %arg8[%c0_17, %c0_18] : memref<104x1xf32, #tpu.memory_space<vmem>>, vector<104x1xf32>
    %25 = vector.broadcast %24 : vector<104x1xf32> to vector<104x256xf32>
    %26 = arith.addf %23, %25 : vector<104x256xf32>
    %27 = vector.extract_strided_slice %26 {offsets = [0, 0], sizes = [32, 256], strides = [1, 1]} : vector<104x256xf32> to vector<32x256xf32>
    %28 = arith.truncf %27 : vector<32x256xf32> to vector<32x256xbf16>
    %29 = vector.extract_strided_slice %26 {offsets = [32, 0], sizes = [32, 256], strides = [1, 1]} : vector<104x256xf32> to vector<32x256xf32>
    %30 = arith.truncf %29 : vector<32x256xf32> to vector<32x256xbf16>
    %31 = vector.extract_strided_slice %26 {offsets = [64, 0], sizes = [2, 256], strides = [1, 1]} : vector<104x256xf32> to vector<2x256xf32>
    %32 = vector.extract_strided_slice %26 {offsets = [72, 0], sizes = [32, 256], strides = [1, 1]} : vector<104x256xf32> to vector<32x256xf32>
    %33 = arith.truncf %32 : vector<32x256xf32> to vector<32x256xbf16>
    %c0_19 = arith.constant 0 : index
    %c0_20 = arith.constant 0 : index
    %34 = arith.index_cast %1 : i32 to index
    %35 = vector.load %arg2[%c0_19, %c0_20, %34] : memref<1x32x256xf32, #tpu.memory_space<vmem>>, vector<1x32x128xf32>
    %36 = vector.shape_cast %35 : vector<1x32x128xf32> to vector<32x128xf32>
    %c0_21 = arith.constant 0 : index
    %c0_22 = arith.constant 0 : index
    %37 = arith.index_cast %1 : i32 to index
    %38 = vector.load %arg3[%c0_21, %c0_22, %37] : memref<1x32x256xf32, #tpu.memory_space<vmem>>, vector<1x32x128xf32>
    %39 = vector.shape_cast %38 : vector<1x32x128xf32> to vector<32x128xf32>
    %40 = arith.truncf %36 : vector<32x128xf32> to vector<32x128xbf16>
    %cst_23 = arith.constant dense<0.000000e+00> : vector<128x256xf32>
    %41 = tpu.matmul %40, %28, %cst_23 {dimension_numbers = #tpu.dot_dimension_numbers<[0], [0], [1], [1], [0, 1, 1, 1], [], []>} : vector<32x128xbf16>, vector<32x256xbf16>, vector<128x256xf32> -> vector<128x256xf32>
    %42 = vector.extract_strided_slice %31 {offsets = [0, 0], sizes = [1, 256], strides = [1, 1]} : vector<2x256xf32> to vector<1x256xf32>
    %43 = vector.broadcast %42 : vector<1x256xf32> to vector<128x256xf32>
    %44 = arith.addf %41, %43 : vector<128x256xf32>
    %45 = arith.truncf %39 : vector<32x128xf32> to vector<32x128xbf16>
    %cst_24 = arith.constant dense<0.000000e+00> : vector<128x256xf32>
    %46 = tpu.matmul %45, %30, %cst_24 {dimension_numbers = #tpu.dot_dimension_numbers<[0], [0], [1], [1], [0, 1, 1, 1], [], []>} : vector<32x128xbf16>, vector<32x256xbf16>, vector<128x256xf32> -> vector<128x256xf32>
    %47 = vector.extract_strided_slice %31 {offsets = [1, 0], sizes = [1, 256], strides = [1, 1]} : vector<2x256xf32> to vector<1x256xf32>
    %48 = vector.broadcast %47 : vector<1x256xf32> to vector<128x256xf32>
    %49 = arith.addf %46, %48 : vector<128x256xf32>
    %c0_25 = arith.constant 0 : index
    %c0_26 = arith.constant 0 : index
    %50 = vector.load %arg9[%c0_25, %c0_26] : memref<256x256xbf16, #tpu.memory_space<vmem>>, vector<256x256xbf16>
    %c0_27 = arith.constant 0 : index
    %c0_28 = arith.constant 0 : index
    %51 = vector.load %arg10[%c0_27, %c0_28] : memref<1x256xf32, #tpu.memory_space<vmem>>, vector<1x256xf32>
    %52 = arith.truncf %44 : vector<128x256xf32> to vector<128x256xbf16>
    %cst_29 = arith.constant dense<0.000000e+00> : vector<128x256xf32>
    %53 = tpu.matmul %52, %50, %cst_29 {dimension_numbers = #tpu.dot_dimension_numbers<[1], [0], [0], [1], [0, 0, 1, 1], [], []>} : vector<128x256xbf16>, vector<256x256xbf16>, vector<128x256xf32> -> vector<128x256xf32>
    %54 = vector.broadcast %51 : vector<1x256xf32> to vector<128x256xf32>
    %55 = arith.addf %53, %54 : vector<128x256xf32>
    %cst_30 = arith.constant dense<0xFF800000> : vector<128xf32>
    %56 = vector.multi_reduction <maximumf>, %55, %cst_30 [1] : vector<128x256xf32> to vector<128xf32>
    %57 = vector.shape_cast %56 : vector<128xf32> to vector<128x1xf32>
    %58 = vector.broadcast %57 : vector<128x1xf32> to vector<128x256xf32>
    %59 = arith.subf %55, %58 : vector<128x256xf32>
    %60 = math.exp %59 : vector<128x256xf32>
    %cst_31 = arith.constant dense<0.000000e+00> : vector<128xf32>
    %61 = vector.multi_reduction <add>, %60, %cst_31 [1] : vector<128x256xf32> to vector<128xf32>
    %62 = vector.shape_cast %61 : vector<128xf32> to vector<128x1xf32>
    %63 = tpu.reciprocal %62 {approx = true} : vector<128x1xf32> -> vector<128x1xf32>
    %64 = vector.broadcast %63 : vector<128x1xf32> to vector<128x256xf32>
    %65 = arith.mulf %60, %64 : vector<128x256xf32>
    %66 = arith.truncf %49 : vector<128x256xf32> to vector<128x256xbf16>
    %cst_32 = arith.constant dense<0.000000e+00> : vector<128x256xf32>
    %67 = tpu.matmul %66, %50, %cst_32 {dimension_numbers = #tpu.dot_dimension_numbers<[1], [0], [0], [1], [0, 0, 1, 1], [], []>} : vector<128x256xbf16>, vector<256x256xbf16>, vector<128x256xf32> -> vector<128x256xf32>
    %68 = vector.broadcast %51 : vector<1x256xf32> to vector<128x256xf32>
    %69 = arith.addf %67, %68 : vector<128x256xf32>
    %cst_33 = arith.constant dense<0xFF800000> : vector<128xf32>
    %70 = vector.multi_reduction <maximumf>, %69, %cst_33 [1] : vector<128x256xf32> to vector<128xf32>
    %71 = vector.shape_cast %70 : vector<128xf32> to vector<128x1xf32>
    %72 = vector.broadcast %71 : vector<128x1xf32> to vector<128x256xf32>
    %73 = arith.subf %69, %72 : vector<128x256xf32>
    %74 = math.exp %73 : vector<128x256xf32>
    %cst_34 = arith.constant dense<0.000000e+00> : vector<128xf32>
    %75 = vector.multi_reduction <add>, %74, %cst_34 [1] : vector<128x256xf32> to vector<128xf32>
    %76 = vector.shape_cast %75 : vector<128xf32> to vector<128x1xf32>
    %77 = tpu.reciprocal %76 {approx = true} : vector<128x1xf32> -> vector<128x1xf32>
    %78 = vector.broadcast %77 : vector<128x1xf32> to vector<128x256xf32>
    %79 = arith.mulf %74, %78 : vector<128x256xf32>
    %80 = arith.truncf %65 : vector<128x256xf32> to vector<128x256xbf16>
    %cst_35 = arith.constant dense<0.000000e+00> : vector<32x128xf32>
    %81 = tpu.matmul %33, %80, %cst_35 {dimension_numbers = #tpu.dot_dimension_numbers<[1], [1], [0], [0], [0, 0, 1, 0], [], []>} : vector<32x256xbf16>, vector<128x256xbf16>, vector<32x128xf32> -> vector<32x128xf32>
    %82 = arith.truncf %79 : vector<128x256xf32> to vector<128x256xbf16>
    %cst_36 = arith.constant dense<0.000000e+00> : vector<32x128xf32>
    %83 = tpu.matmul %33, %82, %cst_36 {dimension_numbers = #tpu.dot_dimension_numbers<[1], [1], [0], [0], [0, 0, 1, 0], [], []>} : vector<32x256xbf16>, vector<128x256xbf16>, vector<32x128xf32> -> vector<32x128xf32>
    %c0_37 = arith.constant 0 : index
    %c0_38 = arith.constant 0 : index
    %84 = memref.load %arg11[%c0_37, %c0_38] : memref<1x1xf32, #tpu.memory_space<smem>>
    %85 = vector.broadcast %84 : f32 to vector<32x128xf32>
    %86 = arith.mulf %85, %81 : vector<32x128xf32>
    %87 = arith.addf %86, %36 : vector<32x128xf32>
    %c0_39 = arith.constant 0 : index
    %c0_40 = arith.constant 0 : index
    %c0_41 = arith.constant 0 : index
    %88 = vector.load %arg12[%c0_39, %c0_40, %c0_41] : memref<1x32x128xf32, #tpu.memory_space<vmem>>, vector<1x32x128xf32>
    %89 = vector.shape_cast %88 : vector<1x32x128xf32> to vector<32x128xf32>
    %90 = vector.shape_cast %87 : vector<32x128xf32> to vector<1x32x128xf32>
    tpu.vector_store %arg12[%c0_39, %c0_40, %c0_41], %90 {strides = array<i32>} : memref<1x32x128xf32, #tpu.memory_space<vmem>>, vector<1x32x128xf32>,
    %91 = vector.broadcast %84 : f32 to vector<32x128xf32>
    %92 = arith.mulf %91, %83 : vector<32x128xf32>
    %93 = arith.addf %92, %39 : vector<32x128xf32>
    %c0_42 = arith.constant 0 : index
    %c0_43 = arith.constant 0 : index
    %c0_44 = arith.constant 0 : index
    %94 = vector.load %arg13[%c0_42, %c0_43, %c0_44] : memref<1x32x128xf32, #tpu.memory_space<vmem>>, vector<1x32x128xf32>
    %95 = vector.shape_cast %94 : vector<1x32x128xf32> to vector<32x128xf32>
    %96 = vector.shape_cast %93 : vector<32x128xf32> to vector<1x32x128xf32>
    tpu.vector_store %arg13[%c0_42, %c0_43, %c0_44], %96 {strides = array<i32>} : memref<1x32x128xf32, #tpu.memory_space<vmem>>, vector<1x32x128xf32>,
    return
  }
  func.func @transform_0(%arg0: i32, %arg1: i32) -> (i32, i32, i32) {
    %c0_i32 = arith.constant 0 : i32
    %c0_i32_0 = arith.constant 0 : i32
    %c0_i32_1 = arith.constant 0 : i32
    return %arg0, %c0_i32, %c0_i32_0 : i32, i32, i32
  }
  func.func @transform_1(%arg0: i32, %arg1: i32) -> (i32, i32, i32) {
    %c0_i32 = arith.constant 0 : i32
    %c0_i32_0 = arith.constant 0 : i32
    %c0_i32_1 = arith.constant 0 : i32
    return %arg0, %c0_i32, %c0_i32_0 : i32, i32, i32
  }
  func.func @transform_2(%arg0: i32, %arg1: i32) -> (i32, i32) {
    %c0_i32 = arith.constant 0 : i32
    %c0_i32_0 = arith.constant 0 : i32
    %c0_i32_1 = arith.constant 0 : i32
    return %c0_i32, %c0_i32_0 : i32, i32
  }
  func.func @transform_3(%arg0: i32, %arg1: i32) -> (i32, i32) {
    %c0_i32 = arith.constant 0 : i32
    %c0_i32_0 = arith.constant 0 : i32
    %c0_i32_1 = arith.constant 0 : i32
    return %c0_i32, %c0_i32_0 : i32, i32
  }
  func.func @transform_4(%arg0: i32, %arg1: i32) -> (i32, i32) {
    %c0_i32 = arith.constant 0 : i32
    %c0_i32_0 = arith.constant 0 : i32
    %c0_i32_1 = arith.constant 0 : i32
    return %c0_i32, %c0_i32_0 : i32, i32
  }
  func.func @transform_5(%arg0: i32, %arg1: i32) -> (i32, i32) {
    %c0_i32 = arith.constant 0 : i32
    %c0_i32_0 = arith.constant 0 : i32
    %c0_i32_1 = arith.constant 0 : i32
    return %c0_i32, %c0_i32_0 : i32, i32
  }
  func.func @transform_6(%arg0: i32, %arg1: i32) -> (i32, i32) {
    %c0_i32 = arith.constant 0 : i32
    %c0_i32_0 = arith.constant 0 : i32
    %c0_i32_1 = arith.constant 0 : i32
    return %c0_i32, %c0_i32_0 : i32, i32
  }
  func.func @transform_7(%arg0: i32, %arg1: i32) -> (i32, i32) {
    %c0_i32 = arith.constant 0 : i32
    %c0_i32_0 = arith.constant 0 : i32
    %c0_i32_1 = arith.constant 0 : i32
    return %c0_i32, %c0_i32_0 : i32, i32
  }
  func.func @transform_8(%arg0: i32, %arg1: i32) -> (i32, i32) {
    %c0_i32 = arith.constant 0 : i32
    %c0_i32_0 = arith.constant 0 : i32
    %c0_i32_1 = arith.constant 0 : i32
    return %c0_i32, %c0_i32_0 : i32, i32
  }
  func.func @transform_9(%arg0: i32, %arg1: i32) -> (i32, i32) {
    %c0_i32 = arith.constant 0 : i32
    %c0_i32_0 = arith.constant 0 : i32
    %c0_i32_1 = arith.constant 0 : i32
    return %c0_i32, %c0_i32_0 : i32, i32
  }
  func.func @transform_10(%arg0: i32, %arg1: i32) -> (i32, i32, i32) {
    %c0_i32 = arith.constant 0 : i32
    %c0_i32_0 = arith.constant 0 : i32
    return %arg0, %c0_i32, %arg1 : i32, i32, i32
  }
  func.func @transform_11(%arg0: i32, %arg1: i32) -> (i32, i32, i32) {
    %c0_i32 = arith.constant 0 : i32
    %c0_i32_0 = arith.constant 0 : i32
    return %arg0, %c0_i32, %arg1 : i32, i32, i32
  }
}

</mosaic_0001>

<llo_original>
// kernel: _lambda_.2
$region0: #{_lambda_.2}
  #allocation0 [shape = 'u32[]', space=smem, size = 0x4, offset = 0x4, fixed_abs, tag = 'smem constant byte address 0x4 - core index']
  #allocation1 [shape = 'u32[144,128]{1,0:T(1,128)}', space=vmem, size = 0x12000, scoped, tag = 'internal scratch']
  %s0 = inlined_call_operand.vmem [shape: f32[2,32,256], index: 0, kind: input, shape index: {}]
  %s1 = inlined_call_operand.vmem [shape: f32[2,32,256], index: 1, kind: input, shape index: {}]
  %s2 = inlined_call_operand.vmem [shape: bf16[32,64], index: 2, kind: input, shape index: {}]
  %s3 = inlined_call_operand.vmem [shape: f32[32,1], index: 3, kind: output, shape index: {0}]
  %s4 = inlined_call_operand.vmem [shape: f32[32,1], index: 4, kind: output, shape index: {1}]
  %5 = xla_tuple %s3, %s4
  %s6 = sld [smem:[#allocation0]]
  $region57: #{_lambda_.2} parent=0
    _
  %s8 = ssub.s32 1, %s6
  %s9 = scalar_select 0, %s8, %s6
  loop: start=0, step=1, limit=4
  $region2: #{_lambda_.2} parent=0 // loop_pre_header
    _
  $region3: #{_lambda_.2} parent=0 // loop_header
    %s11 = sphi 0, %s15
    %p12 = scmp.ge.s32.totalorder %s11, 4
    %s21 = sphi 0, %s23
    %s24 = sphi 0, %s21
    %s25 = sphi 0, %s24
    %s41 = sphi 0, %s25
    %s47 = sphi 0, %s49
    %s50 = sphi 0, %s47
    %s51 = sphi 0, %s50
    %s67 = sphi 0, %s51
    %s71 = sphi 0, %s71
    %s73 = sphi 0, %s71
    %s74 = sphi 0, %s73
    %s88 = sphi 0, %s74
    %s92 = sphi 0, %s92
    %s94 = sphi 0, %s92
    %s95 = sphi 0, %s94
    %s109 = sphi 0, %s95
    %s113 = sphi 0, %s113
    %s115 = sphi 0, %s113
    %s116 = sphi 0, %s115
    %s130 = sphi 0, %s116
  $region4: #{_lambda_.2} parent=0 // loop_header_branch
    %14 = sbr.rel (%p12) target = $region8
  $region5: #{_lambda_.2} parent=0 // loop_body
    %s16 = ssub.s32 %s11, 1
    %s17 = ssub.s32 %s11, 2
    %s18 = sadd.s32 %s11, 1
    %s19 = ssub.s32 %s11, %s18
    %p20 = scmp.eq.s32.totalorder %s19, 0
    %s22 = sadd.s32 %s21, 1
    %s23 = scalar_select %p20, %s21, %s22
    %p26 = pneg %p20
    %p27 = scmp.eq.s32.totalorder %s11, 1
    %p28 = por %p26, %p27
    %p29 = scmp.ne.s32.totalorder %s21, %s24
    %p30 = scmp.eq.s32.totalorder %s11, 0
    %p31 = por %p29, %p30
    %p32 = scmp.ne.s32.totalorder %s21, %s24
    %p33 = scmp.eq.s32.totalorder %s16, 1
    %p34 = por %p32, %p33
    %p35 = scmp.ne.s32.totalorder %s24, %s25
    %p36 = scmp.eq.s32.totalorder %s16, 0
    %p37 = por %p35, %p36
    %p38 = scmp.ne.s32.totalorder %s24, %s25
    %p39 = scmp.eq.s32.totalorder %s17, 1
    %p40 = por %p38, %p39
    %p42 = scmp.ne.s32.totalorder %s25, %s41
    %p43 = scmp.eq.s32.totalorder %s17, 0
    %p44 = por %p42, %p43
    %s45 = ssub.s32 %s11, %s18
    %p46 = scmp.eq.s32.totalorder %s45, 0
    %s48 = sadd.s32 %s47, 1
    %s49 = scalar_select %p46, %s47, %s48
    %p52 = pneg %p46
    %p53 = scmp.eq.s32.totalorder %s11, 1
    %p54 = por %p52, %p53
    %p55 = scmp.ne.s32.totalorder %s47, %s50
    %p56 = scmp.eq.s32.totalorder %s11, 0
    %p57 = por %p55, %p56
    %p58 = scmp.ne.s32.totalorder %s47, %s50
    %p59 = scmp.eq.s32.totalorder %s16, 1
    %p60 = por %p58, %p59
    %p61 = scmp.ne.s32.totalorder %s50, %s51
    %p62 = scmp.eq.s32.totalorder %s16, 0
    %p63 = por %p61, %p62
    %p64 = scmp.ne.s32.totalorder %s50, %s51
    %p65 = scmp.eq.s32.totalorder %s17, 1
    %p66 = por %p64, %p65
    %p68 = scmp.ne.s32.totalorder %s51, %s67
    %p69 = scmp.eq.s32.totalorder %s17, 0
    %p70 = por %p68, %p69
    %s72 = sadd.s32 %s71, 1
    %p75 = scmp.eq.s32.totalorder %s11, 1
    %p76 = scmp.ne.s32.totalorder %s71, %s73
    %p77 = scmp.eq.s32.totalorder %s11, 0
    %p78 = por %p76, %p77
    %p79 = scmp.ne.s32.totalorder %s71, %s73
    %p80 = scmp.eq.s32.totalorder %s16, 1
    %p81 = por %p79, %p80
    %p82 = scmp.ne.s32.totalorder %s73, %s74
    %p83 = scmp.eq.s32.totalorder %s16, 0
    %p84 = por %p82, %p83
    %p85 = scmp.ne.s32.totalorder %s73, %s74
    %p86 = scmp.eq.s32.totalorder %s17, 1
    %p87 = por %p85, %p86
    %p89 = scmp.ne.s32.totalorder %s74, %s88
    %p90 = scmp.eq.s32.totalorder %s17, 0
    %p91 = por %p89, %p90
    %s93 = sadd.s32 %s92, 1
    %p96 = scmp.eq.s32.totalorder %s11, 1
    %p97 = scmp.ne.s32.totalorder %s92, %s94
    %p98 = scmp.eq.s32.totalorder %s11, 0
    %p99 = por %p97, %p98
    %p100 = scmp.ne.s32.totalorder %s92, %s94
    %p101 = scmp.eq.s32.totalorder %s16, 1
    %p102 = por %p100, %p101
    %p103 = scmp.ne.s32.totalorder %s94, %s95
    %p104 = scmp.eq.s32.totalorder %s16, 0
    %p105 = por %p103, %p104
    %p106 = scmp.ne.s32.totalorder %s94, %s95
    %p107 = scmp.eq.s32.totalorder %s17, 1
    %p108 = por %p106, %p107
    %p110 = scmp.ne.s32.totalorder %s95, %s109
    %p111 = scmp.eq.s32.totalorder %s17, 0
    %p112 = por %p110, %p111
    %s114 = sadd.s32 %s113, 1
    %p117 = scmp.eq.s32.totalorder %s11, 1
    %p118 = scmp.ne.s32.totalorder %s113, %s115
    %p119 = scmp.eq.s32.totalorder %s11, 0
    %p120 = por %p118, %p119
    %p121 = scmp.ne.s32.totalorder %s113, %s115
    %p122 = scmp.eq.s32.totalorder %s16, 1
    %p123 = por %p121, %p122
    %p124 = scmp.ne.s32.totalorder %s115, %s116
    %p125 = scmp.eq.s32.totalorder %s16, 0
    %p126 = por %p124, %p125
    %p127 = scmp.ne.s32.totalorder %s115, %s116
    %p128 = scmp.eq.s32.totalorder %s17, 1
    %p129 = por %p127, %p128
    %p131 = scmp.ne.s32.totalorder %s116, %s130
    %p132 = scmp.eq.s32.totalorder %s17, 0
    %p133 = por %p131, %p132
    %p134 = scmp.le.s32.totalorder 1, %s11
    %p135 = scmp.lt.s32.totalorder %s11, 3
    %p136 = pnand %p134, %p135
    %p137 = pneg %p136
    // Predicated region
    $region9: #{_lambda_.2} parent=5 // pred_check
      _
    $region10: #{_lambda_.2} parent=5 // pred_check_branch
      %139 = sbr.rel (%p136) target = $region12
    $region11: #{_lambda_.2} parent=5 // pred_region
      %s140 = ssub.s32 %s11, 1
      // Predicated region
      $region13: #{_lambda_.2} parent=11 // pred_check
        %p141 = pneg %p84
      $region14: #{_lambda_.2} parent=11 // pred_check_branch
        %143 = sbr.rel (%p141) target = $region16
      $region15: #{_lambda_.2} parent=11 // pred_region
        _
      $region16: #{_lambda_.2} parent=11 // pred_fallthru
        _
    $region12: #{_lambda_.2} parent=5 // pred_fallthru
      _
    %p144 = scmp.lt.s32.totalorder %s11, 2
    // Predicated region
    $region17: #{_lambda_.2} parent=5 // pred_check
      %p145 = pneg %p144
    $region18: #{_lambda_.2} parent=5 // pred_check_branch
      %147 = sbr.rel (%p145) target = $region20
    $region19: #{_lambda_.2} parent=5 // pred_region
      // Predicated region
      $region21: #{_lambda_.2} parent=19 // pred_check
        %p148 = pneg %p31
      $region22: #{_lambda_.2} parent=19 // pred_check_branch
        %150 = sbr.rel (%p148) target = $region24
      $region23: #{_lambda_.2} parent=19 // pred_region
        %p151 = scmp.lt.s32.totalorder %s11, 1
        %s152 = scalar_select %p151, %s11, 1
        %s153 = smul.addr %s152, 8
        %s154 = smul.addr %s153, 8
        %s155 = scalar_lea.vmem %s0, %s154
      $region24: #{_lambda_.2} parent=19 // pred_fallthru
        _
      // Predicated region
      $region25: #{_lambda_.2} parent=19 // pred_check
        %p156 = pneg %p57
      $region26: #{_lambda_.2} parent=19 // pred_check_branch
        %158 = sbr.rel (%p156) target = $region28
      $region27: #{_lambda_.2} parent=19 // pred_region
        %p159 = scmp.lt.s32.totalorder %s11, 1
        %s160 = scalar_select %p159, %s11, 1
        %s161 = smul.addr %s160, 8
        %s162 = smul.addr %s161, 8
        %s163 = scalar_lea.vmem %s1, %s162
      $region28: #{_lambda_.2} parent=19 // pred_fallthru
        _
    $region20: #{_lambda_.2} parent=5 // pred_fallthru
      _
    %p164 = scmp.le.s32.totalorder 1, %s11
    %p165 = scmp.lt.s32.totalorder %s11, 3
    %p166 = pnand %p164, %p165
    %p167 = pneg %p166
    // Predicated region
    $region29: #{_lambda_.2} parent=5 // pred_check
      _
    $region30: #{_lambda_.2} parent=5 // pred_check_branch
      %169 = sbr.rel (%p166) target = $region32
    $region31: #{_lambda_.2} parent=5 // pred_region
      %s170 = ssub.s32 %s11, 1
      %p171 = scmp.lt.s32.totalorder %s16, 1
      %s172 = scalar_select %p171, %s16, 1
      %s173 = smul.addr %s172, 8
      %s174 = smul.addr %s173, 8
      %s175 = scalar_lea.vmem %s0, %s174
      %p176 = pneg %p37
      %p177 = pneg %p34
      %p178 = scmp.lt.s32.totalorder %s16, 1
      %s179 = scalar_select %p178, %s16, 1
      %s180 = smul.addr %s179, 8
      %s181 = smul.addr %s180, 8
      %s182 = scalar_lea.vmem %s1, %s181
      %p183 = pneg %p63
      %p184 = pneg %p60
      %p185 = pneg %p84
      %p186 = pneg %p81
      %p187 = pneg %p105
      %p188 = pneg %p102
      %p189 = pneg %p126
      %p190 = pneg %p123
      %p191 = scmp.lt.s32.totalorder %s16, 1
      %s192 = scalar_select %p191, %s16, 1
      %s193 = smul.addr %s192, 8
      %s194 = smul.addr %s193, 8
      %s195 = scalar_lea.vmem %s0, %s194
      %p196 = scmp.lt.s32.totalorder %s16, 1
      %s197 = scalar_select %p196, %s16, 1
      %s198 = smul.addr %s197, 8
      %s199 = smul.addr %s198, 8
      %s200 = scalar_lea.vmem %s1, %s199
      %p202 = scmp.eq.s32.totalorder %s16, 0
      // Predicated region
      $region33: #{_lambda_.2} parent=31 // pred_check
        %p203 = pneg %p202
      $region34: #{_lambda_.2} parent=31 // pred_check_branch
        %205 = sbr.rel (%p203) target = $region36
      $region35: #{_lambda_.2} parent=31 // pred_region
        %vm206 = vcmask 7168
        %207 = vst.msk [vmem:[%s3] sm:$0xff] %vm206, 0.0
        %208 = vst.msk [vmem:[%s3 + $0x8] sm:$0xff] %vm206, 0.0
        %209 = vst.msk [vmem:[%s3 + $0x10] sm:$0xff] %vm206, 0.0
        %210 = vst.msk [vmem:[%s3 + $0x18] sm:$0xff] %vm206, 0.0
        %211 = vst.msk [vmem:[%s4] sm:$0xff] %vm206, 0.0
        %212 = vst.msk [vmem:[%s4 + $0x8] sm:$0xff] %vm206, 0.0
        %213 = vst.msk [vmem:[%s4 + $0x10] sm:$0xff] %vm206, 0.0
        %214 = vst.msk [vmem:[%s4 + $0x18] sm:$0xff] %vm206, 0.0
      $region36: #{_lambda_.2} parent=31 // pred_fallthru
        _
      %v215 = vld [vmem:[%s2] sm:$0xf]
      %v216 = vld [vmem:[%s2 + $0x4] sm:$0xf]
      %v217 = vld [vmem:[%s2 + $0x8] sm:$0xf]
      %v218 = vld [vmem:[%s2 + $0xc] sm:$0xf]
      %v219 = vld [vmem:[%s195] sm:$0xff]
      %v220 = vld [vmem:[%s195 + $0x8] sm:$0xff]
      %v221 = vld [vmem:[%s195 + $0x10] sm:$0xff]
      %v222 = vld [vmem:[%s195 + $0x18] sm:$0xff]
      %v223 = vld [vmem:[%s195 + $0x20] sm:$0xff]
      %v224 = vld [vmem:[%s195 + $0x28] sm:$0xff]
      %v225 = vld [vmem:[%s195 + $0x30] sm:$0xff]
      %v226 = vld [vmem:[%s195 + $0x38] sm:$0xff]
      %v227 = vpack.c.bf16 %v221, %v219
      %v228 = vpack.c.bf16 %v222, %v220
      %v229 = vpack.c.bf16 %v225, %v223
      %v230 = vpack.c.bf16 %v226, %v224
      %v231 = vld [vmem:[%s200] sm:$0xff]
      %v232 = vld [vmem:[%s200 + $0x8] sm:$0xff]
      %v233 = vld [vmem:[%s200 + $0x10] sm:$0xff]
      %v234 = vld [vmem:[%s200 + $0x18] sm:$0xff]
      %v235 = vld [vmem:[%s200 + $0x20] sm:$0xff]
      %v236 = vld [vmem:[%s200 + $0x28] sm:$0xff]
      %v237 = vld [vmem:[%s200 + $0x30] sm:$0xff]
      %v238 = vld [vmem:[%s200 + $0x38] sm:$0xff]
      %v239 = vpack.c.bf16 %v233, %v231
      %v240 = vpack.c.bf16 %v234, %v232
      %v241 = vpack.c.bf16 %v237, %v235
      %v242 = vpack.c.bf16 %v238, %v236
      %v247 = vunpack.c.l.b16 %v215
      %v248 = vunpack.c.l.b16 %v216
      %v249 = vunpack.c.l.b16 %v217
      %v250 = vunpack.c.l.b16 %v218
      %v251 = vpack.c.b16 %v248, %v247
      %v252 = vpack.c.b16 %v250, %v249
      %253 = vrot.lane.b32.xlu0 %v251, 96
      %v254 = vpop.permute.xlu0 %253
      %255 = vrot.lane.b32.xlu0 %v252, 96
      %v256 = vpop.permute.xlu0 %255
      %vm257 = vcmask 261120
      %v259 = vsel %vm257, %v254, 0
      %v262 = vsel %vm257, %v256, 0
      %264 = vmatprep.subr.bf16.mxu0 %v240
      %265 = vmatpush1.bf16.msra.mxu0 %v239
      %266 = vmatprep.subr.bf16.mxu0 %v242
      %267 = vmatpush1.bf16.msra.mxu0 %v241
      %268 = vmatprep.subr.bf16.mxu0 0
      %269 = vmatpush1.bf16.msra.mxu0 0
      %270 = vmatprep.subr.bf16.mxu0 0
      %271 = vmatpush1.bf16.msra.mxu0 0
      %272 = vmatprep.subr.bf16.mxu0 0
      %273 = vmatpush1.bf16.msra.mxu0 0
      %274 = vmatprep.subr.bf16.mxu0 0
      %275 = vmatpush1.bf16.msra.mxu0 0
      %276 = vmatprep.subr.bf16.mxu0 0
      %277 = vmatpush1.bf16.msra.mxu0 0
      %278 = vmatprep.subr.bf16.mxu0 0
      %279 = vmatpush1.bf16.msra.mxu0 0
      %280 = vmatprep.subr.bf16.mxu0 0
      %281 = vmatpush1.bf16.msra.mxu0 0
      %282 = vmatprep.subr.bf16.mxu0 0
      %283 = vmatpush1.bf16.msra.mxu0 0
      %284 = vmatprep.subr.bf16.mxu0 0
      %285 = vmatpush1.bf16.msra.mxu0 0
      %286 = vmatprep.subr.bf16.mxu0 0
      %287 = vmatpush1.bf16.msra.mxu0 0
      %288 = vmatprep.subr.bf16.mxu0 0
      %289 = vmatpush1.bf16.msra.mxu0 0
      %290 = vmatprep.subr.bf16.mxu0 0
      %291 = vmatpush1.bf16.msra.mxu0 0
      %292 = vmatprep.subr.bf16.mxu0 0
      %293 = vmatpush1.bf16.msra.mxu0 0
      %294 = vmatprep.subr.bf16.mxu0 0
      %295 = vmatpush1.bf16.msra.mxu0 0
      %296 = vmatprep.mubr.bf16.mxu0 0
      %297 = vmatmul.mubr.bf16.gmra.mrb[0].mxu0 %v259
      %v298 = vpop.f32.mrb[0].mxu0
      %v299 = vadd.f32 0.0, %v298
      %v300 = vpop.f32.mrb[0].mxu0
      %v301 = vadd.f32 0.0, %v300
      %v302 = vpop.f32.mrb[0].mxu0
      %v303 = vadd.f32 0.0, %v302
      %v304 = vpop.f32.mrb[0].mxu0
      %v305 = vadd.f32 0.0, %v304
      %306 = vmatprep.mubr.bf16.mxu0 0
      %307 = vmatmul.mubr.bf16.gmra.mrb[0].mxu0 %v262
      %v308 = vpop.f32.mrb[0].mxu0
      %v309 = vadd.f32 0.0, %v308
      %v310 = vpop.f32.mrb[0].mxu0
      %v311 = vadd.f32 0.0, %v310
      %v312 = vpop.f32.mrb[0].mxu0
      %v313 = vadd.f32 0.0, %v312
      %v314 = vpop.f32.mrb[0].mxu0
      %v315 = vadd.f32 0.0, %v314
      %316 = vdwg.mxu0
      %v318 = vsel %vm257, %v251, 0
      %v321 = vsel %vm257, %v252, 0
      %323 = vmatprep.subr.bf16.mxu0 %v228
      %324 = vmatpush1.bf16.msra.mxu0 %v227
      %325 = vmatprep.subr.bf16.mxu0 %v230
      %326 = vmatpush1.bf16.msra.mxu0 %v229
      %327 = vmatprep.subr.bf16.mxu0 0
      %328 = vmatpush1.bf16.msra.mxu0 0
      %329 = vmatprep.subr.bf16.mxu0 0
      %330 = vmatpush1.bf16.msra.mxu0 0
      %331 = vmatprep.subr.bf16.mxu0 0
      %332 = vmatpush1.bf16.msra.mxu0 0
      %333 = vmatprep.subr.bf16.mxu0 0
      %334 = vmatpush1.bf16.msra.mxu0 0
      %335 = vmatprep.subr.bf16.mxu0 0
      %336 = vmatpush1.bf16.msra.mxu0 0
      %337 = vmatprep.subr.bf16.mxu0 0
      %338 = vmatpush1.bf16.msra.mxu0 0
      %339 = vmatprep.subr.bf16.mxu0 0
      %340 = vmatpush1.bf16.msra.mxu0 0
      %341 = vmatprep.subr.bf16.mxu0 0
      %342 = vmatpush1.bf16.msra.mxu0 0
      %343 = vmatprep.subr.bf16.mxu0 0
      %344 = vmatpush1.bf16.msra.mxu0 0
      %345 = vmatprep.subr.bf16.mxu0 0
      %346 = vmatpush1.bf16.msra.mxu0 0
      %347 = vmatprep.subr.bf16.mxu0 0
      %348 = vmatpush1.bf16.msra.mxu0 0
      %349 = vmatprep.subr.bf16.mxu0 0
      %350 = vmatpush1.bf16.msra.mxu0 0
      %351 = vmatprep.subr.bf16.mxu0 0
      %352 = vmatpush1.bf16.msra.mxu0 0
      %353 = vmatprep.subr.bf16.mxu0 0
      %354 = vmatpush1.bf16.msra.mxu0 0
      %355 = vmatprep.mubr.bf16.mxu0 0
      %356 = vmatmul.mubr.bf16.gmra.mrb[0].mxu0 %v318
      %v357 = vpop.f32.mrb[0].mxu0
      %v358 = vadd.f32 %v299, %v357
      %v359 = vpop.f32.mrb[0].mxu0
      %v360 = vadd.f32 %v301, %v359
      %v361 = vpop.f32.mrb[0].mxu0
      %v362 = vadd.f32 %v303, %v361
      %v363 = vpop.f32.mrb[0].mxu0
      %v364 = vadd.f32 %v305, %v363
      %365 = vmatprep.mubr.bf16.mxu0 0
      %366 = vmatmul.mubr.bf16.gmra.mrb[0].mxu0 %v321
      %v367 = vpop.f32.mrb[0].mxu0
      %v368 = vadd.f32 %v309, %v367
      %v369 = vpop.f32.mrb[0].mxu0
      %v370 = vadd.f32 %v311, %v369
      %v371 = vpop.f32.mrb[0].mxu0
      %v372 = vadd.f32 %v313, %v371
      %v373 = vpop.f32.mrb[0].mxu0
      %v374 = vadd.f32 %v315, %v373
      %375 = vdwg.mxu0
      %v376 = vld [vmem:[%s3] sm:$0xff]
      %v377 = vld [vmem:[%s3 + $0x8] sm:$0xff]
      %v378 = vld [vmem:[%s3 + $0x10] sm:$0xff]
      %v379 = vld [vmem:[%s3 + $0x18] sm:$0xff]
      %v380 = vadd.f32 %v358, %v360
      %381 = vadd.xlane.f32.xlu0 %v380
      %v382 = vpop.xlane.xlu0 %381
      %v383 = vadd.f32 %v362, %v364
      %384 = vadd.xlane.f32.xlu0 %v383
      %v385 = vpop.xlane.xlu0 %384
      %v386 = vadd.f32 %v368, %v370
      %387 = vadd.xlane.f32.xlu0 %v386
      %v388 = vpop.xlane.xlu0 %387
      %v389 = vadd.f32 %v372, %v374
      %390 = vadd.xlane.f32.xlu0 %v389
      %v391 = vpop.xlane.xlu0 %390
      %v392 = vadd.f32 %v376, %v382
      %v393 = vadd.f32 %v377, %v385
      %v394 = vadd.f32 %v378, %v388
      %v395 = vadd.f32 %v379, %v391
      %vm396 = vcmask 7168
      %397 = vst.msk [vmem:[%s3] sm:$0xff] %vm396, %v392
      %398 = vst.msk [vmem:[%s3 + $0x8] sm:$0xff] %vm396, %v393
      %399 = vst.msk [vmem:[%s3 + $0x10] sm:$0xff] %vm396, %v394
      %400 = vst.msk [vmem:[%s3 + $0x18] sm:$0xff] %vm396, %v395
      %v401 = vld [vmem:[%s4] sm:$0xff]
      %v402 = vld [vmem:[%s4 + $0x8] sm:$0xff]
      %v403 = vld [vmem:[%s4 + $0x10] sm:$0xff]
      %v404 = vld [vmem:[%s4 + $0x18] sm:$0xff]
      %v405 = vmul.f32 %v358, %v358
      %v406 = vmul.f32 %v360, %v360
      %v407 = vmul.f32 %v362, %v362
      %v408 = vmul.f32 %v364, %v364
      %v409 = vmul.f32 %v368, %v368
      %v410 = vmul.f32 %v370, %v370
      %v411 = vmul.f32 %v372, %v372
      %v412 = vmul.f32 %v374, %v374
      %v413 = vadd.f32 %v405, %v406
      %414 = vadd.xlane.f32.xlu0 %v413
      %v415 = vpop.xlane.xlu0 %414
      %v416 = vadd.f32 %v407, %v408
      %417 = vadd.xlane.f32.xlu0 %v416
      %v418 = vpop.xlane.xlu0 %417
      %v419 = vadd.f32 %v409, %v410
      %420 = vadd.xlane.f32.xlu0 %v419
      %v421 = vpop.xlane.xlu0 %420
      %v422 = vadd.f32 %v411, %v412
      %423 = vadd.xlane.f32.xlu0 %v422
      %v424 = vpop.xlane.xlu0 %423
      %v425 = vadd.f32 %v401, %v415
      %v426 = vadd.f32 %v402, %v418
      %v427 = vadd.f32 %v403, %v421
      %v428 = vadd.f32 %v404, %v424
      %429 = vst.msk [vmem:[%s4] sm:$0xff] %vm396, %v425
      %430 = vst.msk [vmem:[%s4 + $0x8] sm:$0xff] %vm396, %v426
      %431 = vst.msk [vmem:[%s4 + $0x10] sm:$0xff] %vm396, %v427
      %432 = vst.msk [vmem:[%s4 + $0x18] sm:$0xff] %vm396, %v428
      // Predicated region
      $region37: #{_lambda_.2} parent=31 // pred_check
        %p433 = pneg %p102
      $region38: #{_lambda_.2} parent=31 // pred_check_branch
        %435 = sbr.rel (%p433) target = $region40
      $region39: #{_lambda_.2} parent=31 // pred_region
        _
      $region40: #{_lambda_.2} parent=31 // pred_fallthru
        _
      // Predicated region
      $region41: #{_lambda_.2} parent=31 // pred_check
        %p436 = pneg %p123
      $region42: #{_lambda_.2} parent=31 // pred_check_branch
        %438 = sbr.rel (%p436) target = $region44
      $region43: #{_lambda_.2} parent=31 // pred_region
        _
      $region44: #{_lambda_.2} parent=31 // pred_fallthru
        _
      // Predicated region
      $region45: #{_lambda_.2} parent=31 // pred_check
        %p439 = pneg %p102
      $region46: #{_lambda_.2} parent=31 // pred_check_branch
        %441 = sbr.rel (%p439) target = $region48
      $region47: #{_lambda_.2} parent=31 // pred_region
        _
      $region48: #{_lambda_.2} parent=31 // pred_fallthru
        _
      // Predicated region
      $region49: #{_lambda_.2} parent=31 // pred_check
        %p442 = pneg %p123
      $region50: #{_lambda_.2} parent=31 // pred_check_branch
        %444 = sbr.rel (%p442) target = $region52
      $region51: #{_lambda_.2} parent=31 // pred_region
        _
      $region52: #{_lambda_.2} parent=31 // pred_fallthru
        _
    $region32: #{_lambda_.2} parent=5 // pred_fallthru
      _
    %p445 = scmp.le.s32.totalorder 2, %s11
    // Predicated region
    $region53: #{_lambda_.2} parent=5 // pred_check
      %p446 = pneg %p445
    $region54: #{_lambda_.2} parent=5 // pred_check_branch
      %448 = sbr.rel (%p446) target = $region56
    $region55: #{_lambda_.2} parent=5 // pred_region
      %s449 = ssub.s32 %s11, 2
    $region56: #{_lambda_.2} parent=5 // pred_fallthru
      _
  $region6: #{_lambda_.2} parent=0 // loop_footer
    %s15 = sadd.s32 1, %s11
  $region7: #{_lambda_.2} parent=0 // loop_footer_branch
    %10 = sbr.rel target = $region3
  $region8: #{_lambda_.2} parent=0 // loop_exit
    _

// kernel: _lambda_.3
$region0: #{_lambda_.3}
  #allocation0 [shape = 'u32[]', space=smem, size = 0x4, offset = 0x4, fixed_abs, tag = 'smem constant byte address 0x4 - core index']
  #allocation1 [shape = 'u32[144,128]{1,0:T(1,128)}', space=vmem, size = 0x12000, scoped, tag = 'internal scratch']
  #allocation2 [shape = 'f32[1,1]{1,0:T(1,128)S(6)}', space=smem, size = 0x200, scoped, tag = 'scoped memory for _lambda_.3']
  %s0 = inlined_call_operand.vmem [shape: f32[2,32,256], index: 0, kind: input, shape index: {}]
  %s1 = inlined_call_operand.vmem [shape: f32[2,32,256], index: 1, kind: input, shape index: {}]
  %s2 = inlined_call_operand.vmem [shape: bf16[32,64], index: 2, kind: input, shape index: {}]
  %s3 = inlined_call_operand.vmem [shape: f32[32,1], index: 3, kind: input, shape index: {}]
  %s4 = inlined_call_operand.vmem [shape: f32[32,1], index: 4, kind: input, shape index: {}]
  %s5 = inlined_call_operand.vmem [shape: bf16[104,32], index: 5, kind: input, shape index: {}]
  %s6 = inlined_call_operand.vmem [shape: f32[104,1], index: 6, kind: input, shape index: {}]
  %s7 = inlined_call_operand.vmem [shape: bf16[256,256], index: 7, kind: input, shape index: {}]
  %s8 = inlined_call_operand.vmem [shape: f32[1,256], index: 8, kind: input, shape index: {}]
  %s9 = inlined_call_operand.<no memory space> [shape: f32[1,1], index: 9, kind: input, shape index: {}]
  %s10 = inlined_call_operand.vmem [shape: f32[2,32,256], index: 10, kind: output, shape index: {0}]
  %s11 = inlined_call_operand.vmem [shape: f32[2,32,256], index: 11, kind: output, shape index: {1}]
  %12 = xla_tuple %s10, %s11
  %s13 = sld [smem:[#allocation0]]
  $region149: #{_lambda_.3} parent=0
    _
  %s15 = ssub.s32 1, %s13
  %s16 = scalar_select 0, %s15, %s13
  %17 = sst [smem:[#allocation2]] %s9
  $region1: #{_lambda_.3} parent=0
    #allocation3 [shape = 'u8[32768]{0}', space=vmem, size = 0x8000, scoped, tag = 'output window, operand 0']
    #allocation4 [shape = 'u8[32768]{0}', space=vmem, size = 0x8000, scoped, tag = 'output window, operand 1']
    loop: start=0, step=1, limit=6
    $region2: #{_lambda_.3} parent=1 // loop_pre_header
      _
    $region3: #{_lambda_.3} parent=1 // loop_header
      %s19 = sphi 0, %s23
      %p20 = scmp.ge.s32.totalorder %s19, 6
      %s26 = sphi 0, %s38
      %s27 = sphi 0, %s34
      %s28 = sphi 0, %s26
      %s29 = sphi 0, %s27
      %s30 = sphi 0, %s28
      %s31 = sphi 0, %s29
      %s41 = sphi 0, %s43
      %s44 = sphi 0, %s41
      %s45 = sphi 0, %s44
      %s61 = sphi 0, %s45
      %s67 = sphi 0, %s69
      %s70 = sphi 0, %s67
      %s71 = sphi 0, %s70
      %s87 = sphi 0, %s71
      %s91 = sphi 0, %s91
      %s93 = sphi 0, %s91
      %s94 = sphi 0, %s93
      %s108 = sphi 0, %s94
      %s112 = sphi 0, %s112
      %s114 = sphi 0, %s112
      %s115 = sphi 0, %s114
      %s129 = sphi 0, %s115
      %s133 = sphi 0, %s133
      %s135 = sphi 0, %s133
      %s136 = sphi 0, %s135
      %s150 = sphi 0, %s136
      %s154 = sphi 0, %s154
      %s156 = sphi 0, %s154
      %s157 = sphi 0, %s156
      %s171 = sphi 0, %s157
      %s175 = sphi 0, %s175
      %s177 = sphi 0, %s175
      %s178 = sphi 0, %s177
      %s192 = sphi 0, %s178
      %s196 = sphi 0, %s196
      %s198 = sphi 0, %s196
      %s199 = sphi 0, %s198
      %s213 = sphi 0, %s199
      %s217 = sphi 0, %s217
      %s219 = sphi 0, %s217
      %s220 = sphi 0, %s219
      %s234 = sphi 0, %s220
      %s238 = sphi 0, %s238
      %s240 = sphi 0, %s238
      %s241 = sphi 0, %s240
      %s255 = sphi 0, %s241
      %s263 = sphi 0, %s265
      %s266 = sphi 0, %s263
      %s267 = sphi 0, %s266
      %s283 = sphi 0, %s267
      %s291 = sphi 0, %s293
      %s294 = sphi 0, %s291
      %s295 = sphi 0, %s294
      %s311 = sphi 0, %s295
    $region4: #{_lambda_.3} parent=1 // loop_header_branch
      %22 = sbr.rel (%p20) target = $region8
    $region5: #{_lambda_.3} parent=1 // loop_body
      %s24 = ssub.s32 %s19, 1
      %s25 = ssub.s32 %s19, 2
      %s32 = sadd.s32 1, %s27
      %p33 = scmp.ge.s32.totalorder %s32, 2
      %s34 = scalar_select %p33, 0, %s32
      %s35 = sadd.s32 1, %s26
      %s36 = scalar_select %p33, %s35, %s26
      %p37 = scmp.ge.s32.totalorder %s36, 2
      %s38 = scalar_select %p37, 0, %s36
      %s39 = ssub.s32 %s26, %s38
      %p40 = scmp.eq.s32.totalorder %s39, 0
      %s42 = sadd.s32 %s41, 1
      %s43 = scalar_select %p40, %s41, %s42
      %p46 = pneg %p40
      %p47 = scmp.eq.s32.totalorder %s19, 3
      %p48 = por %p46, %p47
      %p49 = scmp.ne.s32.totalorder %s41, %s44
      %p50 = scmp.eq.s32.totalorder %s19, 0
      %p51 = por %p49, %p50
      %p52 = scmp.ne.s32.totalorder %s41, %s44
      %p53 = scmp.eq.s32.totalorder %s24, 3
      %p54 = por %p52, %p53
      %p55 = scmp.ne.s32.totalorder %s44, %s45
      %p56 = scmp.eq.s32.totalorder %s24, 0
      %p57 = por %p55, %p56
      %p58 = scmp.ne.s32.totalorder %s44, %s45
      %p59 = scmp.eq.s32.totalorder %s25, 3
      %p60 = por %p58, %p59
      %p62 = scmp.ne.s32.totalorder %s45, %s61
      %p63 = scmp.eq.s32.totalorder %s25, 0
      %p64 = por %p62, %p63
      %s65 = ssub.s32 %s26, %s38
      %p66 = scmp.eq.s32.totalorder %s65, 0
      %s68 = sadd.s32 %s67, 1
      %s69 = scalar_select %p66, %s67, %s68
      %p72 = pneg %p66
      %p73 = scmp.eq.s32.totalorder %s19, 3
      %p74 = por %p72, %p73
      %p75 = scmp.ne.s32.totalorder %s67, %s70
      %p76 = scmp.eq.s32.totalorder %s19, 0
      %p77 = por %p75, %p76
      %p78 = scmp.ne.s32.totalorder %s67, %s70
      %p79 = scmp.eq.s32.totalorder %s24, 3
      %p80 = por %p78, %p79
      %p81 = scmp.ne.s32.totalorder %s70, %s71
      %p82 = scmp.eq.s32.totalorder %s24, 0
      %p83 = por %p81, %p82
      %p84 = scmp.ne.s32.totalorder %s70, %s71
      %p85 = scmp.eq.s32.totalorder %s25, 3
      %p86 = por %p84, %p85
      %p88 = scmp.ne.s32.totalorder %s71, %s87
      %p89 = scmp.eq.s32.totalorder %s25, 0
      %p90 = por %p88, %p89
      %s92 = sadd.s32 %s91, 1
      %p95 = scmp.eq.s32.totalorder %s19, 3
      %p96 = scmp.ne.s32.totalorder %s91, %s93
      %p97 = scmp.eq.s32.totalorder %s19, 0
      %p98 = por %p96, %p97
      %p99 = scmp.ne.s32.totalorder %s91, %s93
      %p100 = scmp.eq.s32.totalorder %s24, 3
      %p101 = por %p99, %p100
      %p102 = scmp.ne.s32.totalorder %s93, %s94
      %p103 = scmp.eq.s32.totalorder %s24, 0
      %p104 = por %p102, %p103
      %p105 = scmp.ne.s32.totalorder %s93, %s94
      %p106 = scmp.eq.s32.totalorder %s25, 3
      %p107 = por %p105, %p106
      %p109 = scmp.ne.s32.totalorder %s94, %s108
      %p110 = scmp.eq.s32.totalorder %s25, 0
      %p111 = por %p109, %p110
      %s113 = sadd.s32 %s112, 1
      %p116 = scmp.eq.s32.totalorder %s19, 3
      %p117 = scmp.ne.s32.totalorder %s112, %s114
      %p118 = scmp.eq.s32.totalorder %s19, 0
      %p119 = por %p117, %p118
      %p120 = scmp.ne.s32.totalorder %s112, %s114
      %p121 = scmp.eq.s32.totalorder %s24, 3
      %p122 = por %p120, %p121
      %p123 = scmp.ne.s32.totalorder %s114, %s115
      %p124 = scmp.eq.s32.totalorder %s24, 0
      %p125 = por %p123, %p124
      %p126 = scmp.ne.s32.totalorder %s114, %s115
      %p127 = scmp.eq.s32.totalorder %s25, 3
      %p128 = por %p126, %p127
      %p130 = scmp.ne.s32.totalorder %s115, %s129
      %p131 = scmp.eq.s32.totalorder %s25, 0
      %p132 = por %p130, %p131
      %s134 = sadd.s32 %s133, 1
      %p137 = scmp.eq.s32.totalorder %s19, 3
      %p138 = scmp.ne.s32.totalorder %s133, %s135
      %p139 = scmp.eq.s32.totalorder %s19, 0
      %p140 = por %p138, %p139
      %p141 = scmp.ne.s32.totalorder %s133, %s135
      %p142 = scmp.eq.s32.totalorder %s24, 3
      %p143 = por %p141, %p142
      %p144 = scmp.ne.s32.totalorder %s135, %s136
      %p145 = scmp.eq.s32.totalorder %s24, 0
      %p146 = por %p144, %p145
      %p147 = scmp.ne.s32.totalorder %s135, %s136
      %p148 = scmp.eq.s32.totalorder %s25, 3
      %p149 = por %p147, %p148
      %p151 = scmp.ne.s32.totalorder %s136, %s150
      %p152 = scmp.eq.s32.totalorder %s25, 0
      %p153 = por %p151, %p152
      %s155 = sadd.s32 %s154, 1
      %p158 = scmp.eq.s32.totalorder %s19, 3
      %p159 = scmp.ne.s32.totalorder %s154, %s156
      %p160 = scmp.eq.s32.totalorder %s19, 0
      %p161 = por %p159, %p160
      %p162 = scmp.ne.s32.totalorder %s154, %s156
      %p163 = scmp.eq.s32.totalorder %s24, 3
      %p164 = por %p162, %p163
      %p165 = scmp.ne.s32.totalorder %s156, %s157
      %p166 = scmp.eq.s32.totalorder %s24, 0
      %p167 = por %p165, %p166
      %p168 = scmp.ne.s32.totalorder %s156, %s157
      %p169 = scmp.eq.s32.totalorder %s25, 3
      %p170 = por %p168, %p169
      %p172 = scmp.ne.s32.totalorder %s157, %s171
      %p173 = scmp.eq.s32.totalorder %s25, 0
      %p174 = por %p172, %p173
      %s176 = sadd.s32 %s175, 1
      %p179 = scmp.eq.s32.totalorder %s19, 3
      %p180 = scmp.ne.s32.totalorder %s175, %s177
      %p181 = scmp.eq.s32.totalorder %s19, 0
      %p182 = por %p180, %p181
      %p183 = scmp.ne.s32.totalorder %s175, %s177
      %p184 = scmp.eq.s32.totalorder %s24, 3
      %p185 = por %p183, %p184
      %p186 = scmp.ne.s32.totalorder %s177, %s178
      %p187 = scmp.eq.s32.totalorder %s24, 0
      %p188 = por %p186, %p187
      %p189 = scmp.ne.s32.totalorder %s177, %s178
      %p190 = scmp.eq.s32.totalorder %s25, 3
      %p191 = por %p189, %p190
      %p193 = scmp.ne.s32.totalorder %s178, %s192
      %p194 = scmp.eq.s32.totalorder %s25, 0
      %p195 = por %p193, %p194
      %s197 = sadd.s32 %s196, 1
      %p200 = scmp.eq.s32.totalorder %s19, 3
      %p201 = scmp.ne.s32.totalorder %s196, %s198
      %p202 = scmp.eq.s32.totalorder %s19, 0
      %p203 = por %p201, %p202
      %p204 = scmp.ne.s32.totalorder %s196, %s198
      %p205 = scmp.eq.s32.totalorder %s24, 3
      %p206 = por %p204, %p205
      %p207 = scmp.ne.s32.totalorder %s198, %s199
      %p208 = scmp.eq.s32.totalorder %s24, 0
      %p209 = por %p207, %p208
      %p210 = scmp.ne.s32.totalorder %s198, %s199
      %p211 = scmp.eq.s32.totalorder %s25, 3
      %p212 = por %p210, %p211
      %p214 = scmp.ne.s32.totalorder %s199, %s213
      %p215 = scmp.eq.s32.totalorder %s25, 0
      %p216 = por %p214, %p215
      %s218 = sadd.s32 %s217, 1
      %p221 = scmp.eq.s32.totalorder %s19, 3
      %p222 = scmp.ne.s32.totalorder %s217, %s219
      %p223 = scmp.eq.s32.totalorder %s19, 0
      %p224 = por %p222, %p223
      %p225 = scmp.ne.s32.totalorder %s217, %s219
      %p226 = scmp.eq.s32.totalorder %s24, 3
      %p227 = por %p225, %p226
      %p228 = scmp.ne.s32.totalorder %s219, %s220
      %p229 = scmp.eq.s32.totalorder %s24, 0
      %p230 = por %p228, %p229
      %p231 = scmp.ne.s32.totalorder %s219, %s220
      %p232 = scmp.eq.s32.totalorder %s25, 3
      %p233 = por %p231, %p232
      %p235 = scmp.ne.s32.totalorder %s220, %s234
      %p236 = scmp.eq.s32.totalorder %s25, 0
      %p237 = por %p235, %p236
      %s239 = sadd.s32 %s238, 1
      %p242 = scmp.eq.s32.totalorder %s19, 3
      %p243 = scmp.ne.s32.totalorder %s238, %s240
      %p244 = scmp.eq.s32.totalorder %s19, 0
      %p245 = por %p243, %p244
      %p246 = scmp.ne.s32.totalorder %s238, %s240
      %p247 = scmp.eq.s32.totalorder %s24, 3
      %p248 = por %p246, %p247
      %p249 = scmp.ne.s32.totalorder %s240, %s241
      %p250 = scmp.eq.s32.totalorder %s24, 0
      %p251 = por %p249, %p250
      %p252 = scmp.ne.s32.totalorder %s240, %s241
      %p253 = scmp.eq.s32.totalorder %s25, 3
      %p254 = por %p252, %p253
      %p256 = scmp.ne.s32.totalorder %s241, %s255
      %p257 = scmp.eq.s32.totalorder %s25, 0
      %p258 = por %p256, %p257
      %s259 = ssub.s32 %s26, %s38
      %s260 = ssub.s32 %s27, %s34
      %s261 = sor.u32 %s259, %s260
      %p262 = scmp.eq.s32.totalorder %s261, 0
      %s264 = sadd.s32 %s263, 1
      %s265 = scalar_select %p262, %s263, %s264
      %p268 = pneg %p262
      %p269 = scmp.eq.s32.totalorder %s19, 3
      %p270 = por %p268, %p269
      %p271 = scmp.ne.s32.totalorder %s263, %s266
      %p272 = scmp.eq.s32.totalorder %s19, 0
      %p273 = por %p271, %p272
      %p274 = scmp.ne.s32.totalorder %s263, %s266
      %p275 = scmp.eq.s32.totalorder %s24, 3
      %p276 = por %p274, %p275
      %p277 = scmp.ne.s32.totalorder %s266, %s267
      %p278 = scmp.eq.s32.totalorder %s24, 0
      %p279 = por %p277, %p278
      %p280 = scmp.ne.s32.totalorder %s266, %s267
      %p281 = scmp.eq.s32.totalorder %s25, 3
      %p282 = por %p280, %p281
      %p284 = scmp.ne.s32.totalorder %s267, %s283
      %p285 = scmp.eq.s32.totalorder %s25, 0
      %p286 = por %p284, %p285
      %s287 = ssub.s32 %s26, %s38
      %s288 = ssub.s32 %s27, %s34
      %s289 = sor.u32 %s287, %s288
      %p290 = scmp.eq.s32.totalorder %s289, 0
      %s292 = sadd.s32 %s291, 1
      %s293 = scalar_select %p290, %s291, %s292
      %p296 = pneg %p290
      %p297 = scmp.eq.s32.totalorder %s19, 3
      %p298 = por %p296, %p297
      %p299 = scmp.ne.s32.totalorder %s291, %s294
      %p300 = scmp.eq.s32.totalorder %s19, 0
      %p301 = por %p299, %p300
      %p302 = scmp.ne.s32.totalorder %s291, %s294
      %p303 = scmp.eq.s32.totalorder %s24, 3
      %p304 = por %p302, %p303
      %p305 = scmp.ne.s32.totalorder %s294, %s295
      %p306 = scmp.eq.s32.totalorder %s24, 0
      %p307 = por %p305, %p306
      %p308 = scmp.ne.s32.totalorder %s294, %s295
      %p309 = scmp.eq.s32.totalorder %s25, 3
      %p310 = por %p308, %p309
      %p312 = scmp.ne.s32.totalorder %s295, %s311
      %p313 = scmp.eq.s32.totalorder %s25, 0
      %p314 = por %p312, %p313
      %p315 = scmp.le.s32.totalorder 1, %s19
      %p316 = scmp.lt.s32.totalorder %s19, 5
      %p317 = pnand %p315, %p316
      %p318 = pneg %p317
      // Predicated region
      $region9: #{_lambda_.3} parent=5 // pred_check
        _
      $region10: #{_lambda_.3} parent=5 // pred_check_branch
        %320 = sbr.rel (%p317) target = $region12
      $region11: #{_lambda_.3} parent=5 // pred_region
        %s321 = ssub.s32 %s19, 1
        // Predicated region
        $region13: #{_lambda_.3} parent=11 // pred_check
          %p322 = pneg %p104
        $region14: #{_lambda_.3} parent=11 // pred_check_branch
          %324 = sbr.rel (%p322) target = $region16
        $region15: #{_lambda_.3} parent=11 // pred_region
          _
        $region16: #{_lambda_.3} parent=11 // pred_fallthru
          _
        // Predicated region
        $region17: #{_lambda_.3} parent=11 // pred_check
          %p325 = pneg %p125
        $region18: #{_lambda_.3} parent=11 // pred_check_branch
          %327 = sbr.rel (%p325) target = $region20
        $region19: #{_lambda_.3} parent=11 // pred_region
          _
        $region20: #{_lambda_.3} parent=11 // pred_fallthru
          _
        // Predicated region
        $region21: #{_lambda_.3} parent=11 // pred_check
          %p328 = pneg %p146
        $region22: #{_lambda_.3} parent=11 // pred_check_branch
          %330 = sbr.rel (%p328) target = $region24
        $region23: #{_lambda_.3} parent=11 // pred_region
          _
        $region24: #{_lambda_.3} parent=11 // pred_fallthru
          _
        // Predicated region
        $region25: #{_lambda_.3} parent=11 // pred_check
          %p331 = pneg %p167
        $region26: #{_lambda_.3} parent=11 // pred_check_branch
          %333 = sbr.rel (%p331) target = $region28
        $region27: #{_lambda_.3} parent=11 // pred_region
          _
        $region28: #{_lambda_.3} parent=11 // pred_fallthru
          _
        // Predicated region
        $region29: #{_lambda_.3} parent=11 // pred_check
          %p334 = pneg %p188
        $region30: #{_lambda_.3} parent=11 // pred_check_branch
          %336 = sbr.rel (%p334) target = $region32
        $region31: #{_lambda_.3} parent=11 // pred_region
          _
        $region32: #{_lambda_.3} parent=11 // pred_fallthru
          _
        // Predicated region
        $region33: #{_lambda_.3} parent=11 // pred_check
          %p337 = pneg %p209
        $region34: #{_lambda_.3} parent=11 // pred_check_branch
          %339 = sbr.rel (%p337) target = $region36
        $region35: #{_lambda_.3} parent=11 // pred_region
          _
        $region36: #{_lambda_.3} parent=11 // pred_fallthru
          _
        // Predicated region
        $region37: #{_lambda_.3} parent=11 // pred_check
          %p340 = pneg %p230
        $region38: #{_lambda_.3} parent=11 // pred_check_branch
          %342 = sbr.rel (%p340) target = $region40
        $region39: #{_lambda_.3} parent=11 // pred_region
          _
        $region40: #{_lambda_.3} parent=11 // pred_fallthru
          _
        // Predicated region
        $region41: #{_lambda_.3} parent=11 // pred_check
          %p343 = pneg %p251
        $region42: #{_lambda_.3} parent=11 // pred_check_branch
          %345 = sbr.rel (%p343) target = $region44
        $region43: #{_lambda_.3} parent=11 // pred_region
          _
        $region44: #{_lambda_.3} parent=11 // pred_fallthru
          _
      $region12: #{_lambda_.3} parent=5 // pred_fallthru
        _
      %p346 = scmp.lt.s32.totalorder %s19, 4
      // Predicated region
      $region45: #{_lambda_.3} parent=5 // pred_check
        %p347 = pneg %p346
      $region46: #{_lambda_.3} parent=5 // pred_check_branch
        %349 = sbr.rel (%p347) target = $region48
      $region47: #{_lambda_.3} parent=5 // pred_region
        // Predicated region
        $region49: #{_lambda_.3} parent=47 // pred_check
          %p350 = pneg %p51
        $region50: #{_lambda_.3} parent=47 // pred_check_branch
          %352 = sbr.rel (%p350) target = $region52
        $region51: #{_lambda_.3} parent=47 // pred_region
          %p353 = scmp.lt.s32.totalorder %s26, 1
          %s354 = scalar_select %p353, %s26, 1
          %s355 = smul.addr %s354, 8
          %s356 = smul.addr %s355, 8
          %s357 = scalar_lea.vmem %s0, %s356
        $region52: #{_lambda_.3} parent=47 // pred_fallthru
          _
        // Predicated region
        $region53: #{_lambda_.3} parent=47 // pred_check
          %p358 = pneg %p77
        $region54: #{_lambda_.3} parent=47 // pred_check_branch
          %360 = sbr.rel (%p358) target = $region56
        $region55: #{_lambda_.3} parent=47 // pred_region
          %p361 = scmp.lt.s32.totalorder %s26, 1
          %s362 = scalar_select %p361, %s26, 1
          %s363 = smul.addr %s362, 8
          %s364 = smul.addr %s363, 8
          %s365 = scalar_lea.vmem %s1, %s364
        $region56: #{_lambda_.3} parent=47 // pred_fallthru
          _
      $region48: #{_lambda_.3} parent=5 // pred_fallthru
        _
      %p366 = scmp.le.s32.totalorder 1, %s19
      %p367 = scmp.lt.s32.totalorder %s19, 5
      %p368 = pnand %p366, %p367
      %p369 = pneg %p368
      // Predicated region
      $region57: #{_lambda_.3} parent=5 // pred_check
        _
      $region58: #{_lambda_.3} parent=5 // pred_check_branch
        %371 = sbr.rel (%p368) target = $region60
      $region59: #{_lambda_.3} parent=5 // pred_region
        %s372 = ssub.s32 %s19, 1
        %p373 = scmp.lt.s32.totalorder %s28, 1
        %s374 = scalar_select %p373, %s28, 1
        %s375 = smul.addr %s374, 8
        %s376 = smul.addr %s375, 8
        %s377 = scalar_lea.vmem %s0, %s376
        %p378 = pneg %p57
        %p379 = pneg %p54
        %p380 = scmp.lt.s32.totalorder %s28, 1
        %s381 = scalar_select %p380, %s28, 1
        %s382 = smul.addr %s381, 8
        %s383 = smul.addr %s382, 8
        %s384 = scalar_lea.vmem %s1, %s383
        %p385 = pneg %p83
        %p386 = pneg %p80
        %p387 = pneg %p104
        %p388 = pneg %p101
        %p389 = pneg %p125
        %p390 = pneg %p122
        %p391 = pneg %p146
        %p392 = pneg %p143
        %p393 = pneg %p167
        %p394 = pneg %p164
        %p395 = pneg %p188
        %p396 = pneg %p185
        %p397 = pneg %p209
        %p398 = pneg %p206
        %p399 = pneg %p230
        %p400 = pneg %p227
        %p401 = pneg %p251
        %p402 = pneg %p248
        %p403 = pneg %p279
        %p404 = pneg %p276
        %s405 = sand.u32 %s266, 1
        %s406 = sand.u32 %s266, 1
        %s407 = smul.addr %s406, 32
        %s408 = scalar_lea.vmem [#allocation3], %s407
        %p409 = pneg %p307
        %p410 = pneg %p304
        %s411 = sand.u32 %s294, 1
        %s412 = sand.u32 %s294, 1
        %s413 = smul.addr %s412, 32
        %s414 = scalar_lea.vmem [#allocation4], %s413
        %p415 = scmp.lt.s32.totalorder %s28, 1
        %s416 = scalar_select %p415, %s28, 1
        %s417 = smul.addr %s416, 8
        %s418 = smul.addr %s417, 8
        %s419 = scalar_lea.vmem %s0, %s418
        %p420 = scmp.lt.s32.totalorder %s28, 1
        %s421 = scalar_select %p420, %s28, 1
        %s422 = smul.addr %s421, 8
        %s423 = smul.addr %s422, 8
        %s424 = scalar_lea.vmem %s1, %s423
        %s426 = smul.u32 %s29, 128
        %v427 = vld [vmem:[%s419] sm:$0xff]
        %v428 = vld [vmem:[%s419 + $0x8] sm:$0xff]
        %v429 = vld [vmem:[%s419 + $0x10] sm:$0xff]
        %v430 = vld [vmem:[%s419 + $0x18] sm:$0xff]
        %v431 = vld [vmem:[%s419 + $0x20] sm:$0xff]
        %v432 = vld [vmem:[%s419 + $0x28] sm:$0xff]
        %v433 = vld [vmem:[%s419 + $0x30] sm:$0xff]
        %v434 = vld [vmem:[%s419 + $0x38] sm:$0xff]
        %v435 = vpack.c.bf16 %v429, %v427
        %v436 = vpack.c.bf16 %v430, %v428
        %v437 = vpack.c.bf16 %v433, %v431
        %v438 = vpack.c.bf16 %v434, %v432
        %v439 = vld [vmem:[%s424] sm:$0xff]
        %v440 = vld [vmem:[%s424 + $0x8] sm:$0xff]
        %v441 = vld [vmem:[%s424 + $0x10] sm:$0xff]
        %v442 = vld [vmem:[%s424 + $0x18] sm:$0xff]
        %v443 = vld [vmem:[%s424 + $0x20] sm:$0xff]
        %v444 = vld [vmem:[%s424 + $0x28] sm:$0xff]
        %v445 = vld [vmem:[%s424 + $0x30] sm:$0xff]
        %v446 = vld [vmem:[%s424 + $0x38] sm:$0xff]
        %v447 = vpack.c.bf16 %v441, %v439
        %v448 = vpack.c.bf16 %v442, %v440
        %v449 = vpack.c.bf16 %v445, %v443
        %v450 = vpack.c.bf16 %v446, %v444
        %v451 = vld [vmem:[%s2] sm:$0xf]
        %v452 = vld [vmem:[%s2 + $0x4] sm:$0xf]
        %v453 = vld [vmem:[%s2 + $0x8] sm:$0xf]
        %v454 = vld [vmem:[%s2 + $0xc] sm:$0xf]
        %v459 = vunpack.c.l.b16 %v451
        %v460 = vunpack.c.l.b16 %v452
        %v461 = vunpack.c.l.b16 %v453
        %v462 = vunpack.c.l.b16 %v454
        %v463 = vpack.c.b16 %v460, %v459
        %v464 = vpack.c.b16 %v462, %v461
        %465 = vrot.lane.b32.xlu0 %v463, 96
        %v466 = vpop.permute.xlu0 %465
        %467 = vrot.lane.b32.xlu0 %v464, 96
        %v468 = vpop.permute.xlu0 %467
        %vm469 = vcmask 261120
        %v471 = vsel %vm469, %v466, 0
        %v474 = vsel %vm469, %v468, 0
        %476 = vmatprep.subr.bf16.mxu0 %v448
        %477 = vmatpush1.bf16.msra.mxu0 %v447
        %478 = vmatprep.subr.bf16.mxu0 %v450
        %479 = vmatpush1.bf16.msra.mxu0 %v449
        %480 = vmatprep.subr.bf16.mxu0 0
        %481 = vmatpush1.bf16.msra.mxu0 0
        %482 = vmatprep.subr.bf16.mxu0 0
        %483 = vmatpush1.bf16.msra.mxu0 0
        %484 = vmatprep.subr.bf16.mxu0 0
        %485 = vmatpush1.bf16.msra.mxu0 0
        %486 = vmatprep.subr.bf16.mxu0 0
        %487 = vmatpush1.bf16.msra.mxu0 0
        %488 = vmatprep.subr.bf16.mxu0 0
        %489 = vmatpush1.bf16.msra.mxu0 0
        %490 = vmatprep.subr.bf16.mxu0 0
        %491 = vmatpush1.bf16.msra.mxu0 0
        %492 = vmatprep.subr.bf16.mxu0 0
        %493 = vmatpush1.bf16.msra.mxu0 0
        %494 = vmatprep.subr.bf16.mxu0 0
        %495 = vmatpush1.bf16.msra.mxu0 0
        %496 = vmatprep.subr.bf16.mxu0 0
        %497 = vmatpush1.bf16.msra.mxu0 0
        %498 = vmatprep.subr.bf16.mxu0 0
        %499 = vmatpush1.bf16.msra.mxu0 0
        %500 = vmatprep.subr.bf16.mxu0 0
        %501 = vmatpush1.bf16.msra.mxu0 0
        %502 = vmatprep.subr.bf16.mxu0 0
        %503 = vmatpush1.bf16.msra.mxu0 0
        %504 = vmatprep.subr.bf16.mxu0 0
        %505 = vmatpush1.bf16.msra.mxu0 0
        %506 = vmatprep.subr.bf16.mxu0 0
        %507 = vmatpush1.bf16.msra.mxu0 0
        %508 = vmatprep.mubr.bf16.mxu0 0
        %509 = vmatmul.mubr.bf16.gmra.mrb[0].mxu0 %v471
        %v510 = vpop.f32.mrb[0].mxu0
        %v511 = vadd.f32 0.0, %v510
        %v512 = vpop.f32.mrb[0].mxu0
        %v513 = vadd.f32 0.0, %v512
        %v514 = vpop.f32.mrb[0].mxu0
        %v515 = vadd.f32 0.0, %v514
        %v516 = vpop.f32.mrb[0].mxu0
        %v517 = vadd.f32 0.0, %v516
        %518 = vmatprep.mubr.bf16.mxu0 0
        %519 = vmatmul.mubr.bf16.gmra.mrb[0].mxu0 %v474
        %v520 = vpop.f32.mrb[0].mxu0
        %v521 = vadd.f32 0.0, %v520
        %v522 = vpop.f32.mrb[0].mxu0
        %v523 = vadd.f32 0.0, %v522
        %v524 = vpop.f32.mrb[0].mxu0
        %v525 = vadd.f32 0.0, %v524
        %v526 = vpop.f32.mrb[0].mxu0
        %v527 = vadd.f32 0.0, %v526
        %528 = vdwg.mxu0
        %v530 = vsel %vm469, %v463, 0
        %v533 = vsel %vm469, %v464, 0
        %535 = vmatprep.subr.bf16.mxu0 %v436
        %536 = vmatpush1.bf16.msra.mxu0 %v435
        %537 = vmatprep.subr.bf16.mxu0 %v438
        %538 = vmatpush1.bf16.msra.mxu0 %v437
        %539 = vmatprep.subr.bf16.mxu0 0
        %540 = vmatpush1.bf16.msra.mxu0 0
        %541 = vmatprep.subr.bf16.mxu0 0
        %542 = vmatpush1.bf16.msra.mxu0 0
        %543 = vmatprep.subr.bf16.mxu0 0
        %544 = vmatpush1.bf16.msra.mxu0 0
        %545 = vmatprep.subr.bf16.mxu0 0
        %546 = vmatpush1.bf16.msra.mxu0 0
        %547 = vmatprep.subr.bf16.mxu0 0
        %548 = vmatpush1.bf16.msra.mxu0 0
        %549 = vmatprep.subr.bf16.mxu0 0
        %550 = vmatpush1.bf16.msra.mxu0 0
        %551 = vmatprep.subr.bf16.mxu0 0
        %552 = vmatpush1.bf16.msra.mxu0 0
        %553 = vmatprep.subr.bf16.mxu0 0
        %554 = vmatpush1.bf16.msra.mxu0 0
        %555 = vmatprep.subr.bf16.mxu0 0
        %556 = vmatpush1.bf16.msra.mxu0 0
        %557 = vmatprep.subr.bf16.mxu0 0
        %558 = vmatpush1.bf16.msra.mxu0 0
        %559 = vmatprep.subr.bf16.mxu0 0
        %560 = vmatpush1.bf16.msra.mxu0 0
        %561 = vmatprep.subr.bf16.mxu0 0
        %562 = vmatpush1.bf16.msra.mxu0 0
        %563 = vmatprep.subr.bf16.mxu0 0
        %564 = vmatpush1.bf16.msra.mxu0 0
        %565 = vmatprep.subr.bf16.mxu0 0
        %566 = vmatpush1.bf16.msra.mxu0 0
        %567 = vmatprep.mubr.bf16.mxu0 0
        %568 = vmatmul.mubr.bf16.gmra.mrb[0].mxu0 %v530
        %v569 = vpop.f32.mrb[0].mxu0
        %v570 = vadd.f32 %v511, %v569
        %v571 = vpop.f32.mrb[0].mxu0
        %v572 = vadd.f32 %v513, %v571
        %v573 = vpop.f32.mrb[0].mxu0
        %v574 = vadd.f32 %v515, %v573
        %v575 = vpop.f32.mrb[0].mxu0
        %v576 = vadd.f32 %v517, %v575
        %577 = vmatprep.mubr.bf16.mxu0 0
        %578 = vmatmul.mubr.bf16.gmra.mrb[0].mxu0 %v533
        %v579 = vpop.f32.mrb[0].mxu0
        %v580 = vadd.f32 %v521, %v579
        %v581 = vpop.f32.mrb[0].mxu0
        %v582 = vadd.f32 %v523, %v581
        %v583 = vpop.f32.mrb[0].mxu0
        %v584 = vadd.f32 %v525, %v583
        %v585 = vpop.f32.mrb[0].mxu0
        %v586 = vadd.f32 %v527, %v585
        %587 = vdwg.mxu0
        %v588 = vld [vmem:[%s3] sm:$0xff]
        %v589 = vld [vmem:[%s3 + $0x8] sm:$0xff]
        %v590 = vld [vmem:[%s3 + $0x10] sm:$0xff]
        %v591 = vld [vmem:[%s3 + $0x18] sm:$0xff]
        %593 = vset.pattern.permute.xlu0 0
        %594 = vperm.xlu0 %593, %v588
        %v595 = vpop.permute.xlu0 %594
        %598 = vset.pattern.permute.xlu0 0
        %599 = vperm.xlu0 %598, %v589
        %v600 = vpop.permute.xlu0 %599
        %603 = vset.pattern.permute.xlu0 0
        %604 = vperm.xlu0 %603, %v590
        %v605 = vpop.permute.xlu0 %604
        %608 = vset.pattern.permute.xlu0 0
        %609 = vperm.xlu0 %608, %v591
        %v610 = vpop.permute.xlu0 %609
        %v612 = vmul.f32 %v570, %v595
        %v613 = vmul.f32 %v572, %v595
        %v614 = vmul.f32 %v574, %v600
        %v615 = vmul.f32 %v576, %v600
        %v616 = vmul.f32 %v580, %v605
        %v617 = vmul.f32 %v582, %v605
        %v618 = vmul.f32 %v584, %v610
        %v619 = vmul.f32 %v586, %v610
        %v620 = vld [vmem:[%s4] sm:$0xff]
        %v621 = vld [vmem:[%s4 + $0x8] sm:$0xff]
        %v622 = vld [vmem:[%s4 + $0x10] sm:$0xff]
        %v623 = vld [vmem:[%s4 + $0x18] sm:$0xff]
        %625 = vset.pattern.permute.xlu0 0
        %626 = vperm.xlu0 %625, %v620
        %v627 = vpop.permute.xlu0 %626
        %630 = vset.pattern.permute.xlu0 0
        %631 = vperm.xlu0 %630, %v621
        %v632 = vpop.permute.xlu0 %631
        %635 = vset.pattern.permute.xlu0 0
        %636 = vperm.xlu0 %635, %v622
        %v637 = vpop.permute.xlu0 %636
        %640 = vset.pattern.permute.xlu0 0
        %641 = vperm.xlu0 %640, %v623
        %v642 = vpop.permute.xlu0 %641
        %v644 = vadd.f32 %v612, %v627
        %v645 = vadd.f32 %v613, %v627
        %v646 = vadd.f32 %v614, %v632
        %v647 = vadd.f32 %v615, %v632
        %v648 = vadd.f32 %v616, %v637
        %v649 = vadd.f32 %v617, %v637
        %v650 = vadd.f32 %v618, %v642
        %v651 = vadd.f32 %v619, %v642
        %v652 = vmax.f32 %v644, 0.0
        %v653 = vmax.f32 %v645, 0.0
        %v654 = vmax.f32 %v646, 0.0
        %v655 = vmax.f32 %v647, 0.0
        %v656 = vmax.f32 %v648, 0.0
        %v657 = vmax.f32 %v649, 0.0
        %v658 = vmax.f32 %v650, 0.0
        %v659 = vmax.f32 %v651, 0.0
        %v660 = vld [vmem:[%s5] sm:$0xf]
        %v661 = vld [vmem:[%s5 + $0x4] sm:$0xf]
        %v662 = vld [vmem:[%s5 + $0x8] sm:$0xf]
        %v663 = vld [vmem:[%s5 + $0xc] sm:$0xf]
        %v664 = vld [vmem:[%s5 + $0x10] sm:$0xf]
        %v665 = vld [vmem:[%s5 + $0x14] sm:$0xf]
        %v666 = vld [vmem:[%s5 + $0x18] sm:$0xf]
        %v667 = vld [vmem:[%s5 + $0x1c] sm:$0xf]
        %v668 = vld [vmem:[%s5 + $0x20] sm:$0xf]
        %v669 = vld [vmem:[%s5 + $0x24] sm:$0xf]
        %v670 = vld [vmem:[%s5 + $0x28] sm:$0xf]
        %v671 = vld [vmem:[%s5 + $0x2c] sm:$0xf]
        %v672 = vld [vmem:[%s5 + $0x30] sm:$0xf]
        %v673 = vpack.c.bf16 %v654, %v652
        %v674 = vpack.c.bf16 %v655, %v653
        %v675 = vpack.c.bf16 %v658, %v656
        %v676 = vpack.c.bf16 %v659, %v657
        %v677 = vld [vmem:[%s6] sm:$0xff]
        %v678 = vld [vmem:[%s6 + $0x8] sm:$0xff]
        %v679 = vld [vmem:[%s6 + $0x10] sm:$0xff]
        %v680 = vld [vmem:[%s6 + $0x18] sm:$0xff]
        %v681 = vld [vmem:[%s6 + $0x20] sm:$0xff]
        %v682 = vld [vmem:[%s6 + $0x28] sm:$0xff]
        %v683 = vld [vmem:[%s6 + $0x30] sm:$0xff]
        %v684 = vld [vmem:[%s6 + $0x38] sm:$0xff]
        %v685 = vld [vmem:[%s6 + $0x40] sm:$0xff]
        %v686 = vld [vmem:[%s6 + $0x48] sm:$0xff]
        %v687 = vld [vmem:[%s6 + $0x50] sm:$0xff]
        %v688 = vld [vmem:[%s6 + $0x58] sm:$0xff]
        %v689 = vld [vmem:[%s6 + $0x60] sm:$0xff]
        %691 = vset.pattern.permute.xlu0 0
        %692 = vperm.xlu0 %691, %v677
        %v693 = vpop.permute.xlu0 %692
        %696 = vset.pattern.permute.xlu0 0
        %697 = vperm.xlu0 %696, %v678
        %v698 = vpop.permute.xlu0 %697
        %701 = vset.pattern.permute.xlu0 0
        %702 = vperm.xlu0 %701, %v679
        %v703 = vpop.permute.xlu0 %702
        %706 = vset.pattern.permute.xlu0 0
        %707 = vperm.xlu0 %706, %v680
        %v708 = vpop.permute.xlu0 %707
        %711 = vset.pattern.permute.xlu0 0
        %712 = vperm.xlu0 %711, %v681
        %v713 = vpop.permute.xlu0 %712
        %716 = vset.pattern.permute.xlu0 0
        %717 = vperm.xlu0 %716, %v682
        %v718 = vpop.permute.xlu0 %717
        %721 = vset.pattern.permute.xlu0 0
        %722 = vperm.xlu0 %721, %v683
        %v723 = vpop.permute.xlu0 %722
        %726 = vset.pattern.permute.xlu0 0
        %727 = vperm.xlu0 %726, %v684
        %v728 = vpop.permute.xlu0 %727
        %731 = vset.pattern.permute.xlu0 0
        %732 = vperm.xlu0 %731, %v685
        %v733 = vpop.permute.xlu0 %732
        %736 = vset.pattern.permute.xlu0 0
        %737 = vperm.xlu0 %736, %v686
        %v738 = vpop.permute.xlu0 %737
        %741 = vset.pattern.permute.xlu0 0
        %742 = vperm.xlu0 %741, %v687
        %v743 = vpop.permute.xlu0 %742
        %746 = vset.pattern.permute.xlu0 0
        %747 = vperm.xlu0 %746, %v688
        %v748 = vpop.permute.xlu0 %747
        %751 = vset.pattern.permute.xlu0 0
        %752 = vperm.xlu0 %751, %v689
        %v753 = vpop.permute.xlu0 %752
        %v768 = vunpack.c.l.b16 %v660
        %v769 = vunpack.c.l.b16 %v661
        %v770 = vunpack.c.l.b16 %v662
        %v771 = vunpack.c.l.b16 %v663
        %v772 = vunpack.c.l.b16 %v664
        %v773 = vunpack.c.l.b16 %v665
        %v774 = vunpack.c.l.b16 %v666
        %v775 = vunpack.c.l.b16 %v667
        %v776 = vunpack.c.l.b16 %v668
        %v777 = vunpack.c.l.b16 %v669
        %v778 = vunpack.c.l.b16 %v670
        %v779 = vunpack.c.l.b16 %v671
        %v780 = vunpack.c.l.b16 %v672
        %v781 = vpack.c.b16 %v769, %v768
        %v782 = vpack.c.b16 %v771, %v770
        %v783 = vpack.c.b16 %v773, %v772
        %v784 = vpack.c.b16 %v775, %v774
        %v785 = vpack.c.b16 %v777, %v776
        %v786 = vpack.c.b16 %v779, %v778
        %v787 = vpack.c.b16 %v780, %v780
        %v789 = vsel %vm469, %v781, 0
        %v792 = vsel %vm469, %v782, 0
        %v795 = vsel %vm469, %v783, 0
        %v798 = vsel %vm469, %v784, 0
        %v801 = vsel %vm469, %v785, 0
        %v804 = vsel %vm469, %v786, 0
        %v807 = vsel %vm469, %v787, 0
        %809 = vmatprep.subr.bf16.mxu0 %v674
        %810 = vmatpush1.bf16.msra.mxu0 %v673
        %811 = vmatprep.subr.bf16.mxu0 %v676
        %812 = vmatpush1.bf16.msra.mxu0 %v675
        %813 = vmatprep.subr.bf16.mxu0 0
        %814 = vmatpush1.bf16.msra.mxu0 0
        %815 = vmatprep.subr.bf16.mxu0 0
        %816 = vmatpush1.bf16.msra.mxu0 0
        %817 = vmatprep.subr.bf16.mxu0 0
        %818 = vmatpush1.bf16.msra.mxu0 0
        %819 = vmatprep.subr.bf16.mxu0 0
        %820 = vmatpush1.bf16.msra.mxu0 0
        %821 = vmatprep.subr.bf16.mxu0 0
        %822 = vmatpush1.bf16.msra.mxu0 0
        %823 = vmatprep.subr.bf16.mxu0 0
        %824 = vmatpush1.bf16.msra.mxu0 0
        %825 = vmatprep.subr.bf16.mxu0 0
        %826 = vmatpush1.bf16.msra.mxu0 0
        %827 = vmatprep.subr.bf16.mxu0 0
        %828 = vmatpush1.bf16.msra.mxu0 0
        %829 = vmatprep.subr.bf16.mxu0 0
        %830 = vmatpush1.bf16.msra.mxu0 0
        %831 = vmatprep.subr.bf16.mxu0 0
        %832 = vmatpush1.bf16.msra.mxu0 0
        %833 = vmatprep.subr.bf16.mxu0 0
        %834 = vmatpush1.bf16.msra.mxu0 0
        %835 = vmatprep.subr.bf16.mxu0 0
        %836 = vmatpush1.bf16.msra.mxu0 0
        %837 = vmatprep.subr.bf16.mxu0 0
        %838 = vmatpush1.bf16.msra.mxu0 0
        %839 = vmatprep.subr.bf16.mxu0 0
        %840 = vmatpush1.bf16.msra.mxu0 0
        %841 = vmatprep.mubr.bf16.mxu0 0
        %842 = vmatmul.mubr.bf16.gmra.mrb[0].mxu0 %v789
        %v843 = vpop.f32.mrb[0].mxu0
        %v844 = vadd.f32 %v693, %v843
        %v845 = vpop.f32.mrb[0].mxu0
        %v846 = vadd.f32 %v693, %v845
        %v847 = vpop.f32.mrb[0].mxu0
        %v848 = vadd.f32 %v698, %v847
        %v849 = vpop.f32.mrb[0].mxu0
        %v850 = vadd.f32 %v698, %v849
        %851 = vmatprep.mubr.bf16.mxu0 0
        %852 = vmatmul.mubr.bf16.gmra.mrb[0].mxu0 %v792
        %v853 = vpop.f32.mrb[0].mxu0
        %v854 = vadd.f32 %v703, %v853
        %v855 = vpop.f32.mrb[0].mxu0
        %v856 = vadd.f32 %v703, %v855
        %v857 = vpop.f32.mrb[0].mxu0
        %v858 = vadd.f32 %v708, %v857
        %v859 = vpop.f32.mrb[0].mxu0
        %v860 = vadd.f32 %v708, %v859
        %861 = vmatprep.mubr.bf16.mxu0 0
        %862 = vmatmul.mubr.bf16.gmra.mrb[0].mxu0 %v795
        %v863 = vpop.f32.mrb[0].mxu0
        %v864 = vadd.f32 %v713, %v863
        %v865 = vpop.f32.mrb[0].mxu0
        %v866 = vadd.f32 %v713, %v865
        %v867 = vpop.f32.mrb[0].mxu0
        %v868 = vadd.f32 %v718, %v867
        %v869 = vpop.f32.mrb[0].mxu0
        %v870 = vadd.f32 %v718, %v869
        %871 = vmatprep.mubr.bf16.mxu0 0
        %872 = vmatmul.mubr.bf16.gmra.mrb[0].mxu0 %v798
        %v873 = vpop.f32.mrb[0].mxu0
        %v874 = vadd.f32 %v723, %v873
        %v875 = vpop.f32.mrb[0].mxu0
        %v876 = vadd.f32 %v723, %v875
        %v877 = vpop.f32.mrb[0].mxu0
        %v878 = vadd.f32 %v728, %v877
        %v879 = vpop.f32.mrb[0].mxu0
        %v880 = vadd.f32 %v728, %v879
        %881 = vmatprep.mubr.bf16.mxu0 0
        %882 = vmatmul.mubr.bf16.gmra.mrb[0].mxu0 %v801
        %v883 = vpop.f32.mrb[0].mxu0
        %v884 = vadd.f32 %v733, %v883
        %v885 = vpop.f32.mrb[0].mxu0
        %v886 = vadd.f32 %v733, %v885
        %v887 = vpop.f32.mrb[0].mxu0
        %v888 = vadd.f32 %v738, %v887
        %v889 = vpop.f32.mrb[0].mxu0
        %v890 = vadd.f32 %v738, %v889
        %891 = vmatprep.mubr.bf16.mxu0 0
        %892 = vmatmul.mubr.bf16.gmra.mrb[0].mxu0 %v804
        %v893 = vpop.f32.mrb[0].mxu0
        %v894 = vadd.f32 %v743, %v893
        %v895 = vpop.f32.mrb[0].mxu0
        %v896 = vadd.f32 %v743, %v895
        %v897 = vpop.f32.mrb[0].mxu0
        %v898 = vadd.f32 %v748, %v897
        %v899 = vpop.f32.mrb[0].mxu0
        %v900 = vadd.f32 %v748, %v899
        %901 = vmatprep.mubr.bf16.mxu0 0
        %902 = vmatmul.mubr.bf16.gmra.mrb[0].mxu0 %v807
        %v903 = vpop.f32.mrb[0].mxu0
        %v904 = vadd.f32 %v753, %v903
        %v905 = vpop.f32.mrb[0].mxu0
        %v906 = vadd.f32 %v753, %v905
        %v907 = vpop.f32.mrb[0].mxu0
        %v908 = vpop.f32.mrb[0].mxu0
        %909 = vdwg.mxu0
        %v910 = vpack.c.bf16 %v848, %v844
        %v911 = vpack.c.bf16 %v850, %v846
        %v912 = vpack.c.bf16 %v858, %v854
        %v913 = vpack.c.bf16 %v860, %v856
        %v914 = vpack.c.bf16 %v868, %v864
        %v915 = vpack.c.bf16 %v870, %v866
        %v916 = vpack.c.bf16 %v878, %v874
        %v917 = vpack.c.bf16 %v880, %v876
        %v918 = vpack.c.bf16 %v894, %v888
        %v919 = vpack.c.bf16 %v896, %v890
        %v920 = vpack.c.bf16 %v904, %v898
        %v921 = vpack.c.bf16 %v906, %v900
        %s922 = sshra.s32 %s426, 7
        %s923 = sand.u32 %s426, 127
        %s924 = smul.addr %s922, 8
        %s925 = scalar_lea.vmem %s419, %s924
        %v926 = vld [vmem:[%s925] sm:$0xff]
        %v927 = vld [vmem:[%s925 + $0x10] sm:$0xff]
        %v928 = vld [vmem:[%s925 + $0x20] sm:$0xff]
        %v929 = vld [vmem:[%s925 + $0x30] sm:$0xff]
        %s930 = smul.addr %s922, 8
        %s931 = scalar_lea.vmem %s424, %s930
        %v932 = vld [vmem:[%s931] sm:$0xff]
        %v933 = vld [vmem:[%s931 + $0x10] sm:$0xff]
        %v934 = vld [vmem:[%s931 + $0x20] sm:$0xff]
        %v935 = vld [vmem:[%s931 + $0x30] sm:$0xff]
        %v936 = vpack.c.bf16 %v927, %v926
        %v937 = vpack.c.bf16 %v929, %v928
        %v938 = vlaneseq
        %v939 = vshrl.u32 %v938, 7
        %v940 = vsub.s32 0, %v939
        %v941 = vrot.slane %v884, %v940
        %v942 = vlaneseq
        %v943 = vshrl.u32 %v942, 7
        %v944 = vsub.s32 0, %v943
        %v945 = vrot.slane %v886, %v944
        %946 = vxpose.xlu0.c.b16.start [1/8] %v936, 128
        %947 = vxpose.xlu0.c.b16.cont [2/8] %v937, 128
        %948 = vxpose.xlu0.c.b16.cont [3/8] 0, 128
        %949 = vxpose.xlu0.c.b16.cont [4/8] 0, 128
        %950 = vxpose.xlu0.c.b16.cont [5/8] 0, 128
        %951 = vxpose.xlu0.c.b16.cont [6/8] 0, 128
        %952 = vxpose.xlu0.c.b16.cont [7/8] 0, 128
        %953 = vxpose.xlu0.c.b16.end [8/8] 0, 128
        %v954 = vpop.trf.xlu0
        %v955 = vpop.trf.xlu0
        %v956 = vpop.trf.xlu0
        %v957 = vpop.trf.xlu0
        %v958 = vpop.trf.xlu0
        %v959 = vpop.trf.xlu0
        %v960 = vpop.trf.xlu0
        %v961 = vpop.trf.xlu0
        %v963 = vsel %vm469, %v954, 0
        %v966 = vsel %vm469, %v955, 0
        %v969 = vsel %vm469, %v956, 0
        %v972 = vsel %vm469, %v957, 0
        %v975 = vsel %vm469, %v958, 0
        %v978 = vsel %vm469, %v959, 0
        %v981 = vsel %vm469, %v960, 0
        %v984 = vsel %vm469, %v961, 0
        %986 = vmatprep.subr.bf16.mxu0 %v911
        %987 = vmatpush1.bf16.msra.mxu0 %v910
        %988 = vmatprep.subr.bf16.mxu0 %v913
        %989 = vmatpush1.bf16.msra.mxu0 %v912
        %990 = vmatprep.subr.bf16.mxu0 0
        %991 = vmatpush1.bf16.msra.mxu0 0
        %992 = vmatprep.subr.bf16.mxu0 0
        %993 = vmatpush1.bf16.msra.mxu0 0
        %994 = vmatprep.subr.bf16.mxu0 0
        %995 = vmatpush1.bf16.msra.mxu0 0
        %996 = vmatprep.subr.bf16.mxu0 0
        %997 = vmatpush1.bf16.msra.mxu0 0
        %998 = vmatprep.subr.bf16.mxu0 0
        %999 = vmatpush1.bf16.msra.mxu0 0
        %1000 = vmatprep.subr.bf16.mxu0 0
        %1001 = vmatpush1.bf16.msra.mxu0 0
        %1002 = vmatprep.subr.bf16.mxu0 0
        %1003 = vmatpush1.bf16.msra.mxu0 0
        %1004 = vmatprep.subr.bf16.mxu0 0
        %1005 = vmatpush1.bf16.msra.mxu0 0
        %1006 = vmatprep.subr.bf16.mxu0 0
        %1007 = vmatpush1.bf16.msra.mxu0 0
        %1008 = vmatprep.subr.bf16.mxu0 0
        %1009 = vmatpush1.bf16.msra.mxu0 0
        %1010 = vmatprep.subr.bf16.mxu0 0
        %1011 = vmatpush1.bf16.msra.mxu0 0
        %1012 = vmatprep.subr.bf16.mxu0 0
        %1013 = vmatpush1.bf16.msra.mxu0 0
        %1014 = vmatprep.subr.bf16.mxu0 0
        %1015 = vmatpush1.bf16.msra.mxu0 0
        %1016 = vmatprep.subr.bf16.mxu0 0
        %1017 = vmatpush1.bf16.msra.mxu0 0
        %1018 = vmatprep.mubr.bf16.mxu0 0
        %1019 = vmatmul.mubr.bf16.gmra.mrb[0].mxu0 %v963
        %v1020 = vpop.f32.mrb[0].mxu0
        %v1021 = vadd.f32 %v941, %v1020
        %v1022 = vpop.f32.mrb[0].mxu0
        %v1023 = vadd.f32 %v945, %v1022
        %v1024 = vpop.f32.mrb[0].mxu0
        %v1025 = vadd.f32 %v941, %v1024
        %v1026 = vpop.f32.mrb[0].mxu0
        %v1027 = vadd.f32 %v945, %v1026
        %1028 = vmatprep.mubr.bf16.mxu0 0
        %1029 = vmatmul.mubr.bf16.gmra.mrb[0].mxu0 %v966
        %v1030 = vpop.f32.mrb[0].mxu0
        %v1031 = vadd.f32 %v941, %v1030
        %v1032 = vpop.f32.mrb[0].mxu0
        %v1033 = vadd.f32 %v945, %v1032
        %v1034 = vpop.f32.mrb[0].mxu0
        %v1035 = vadd.f32 %v941, %v1034
        %v1036 = vpop.f32.mrb[0].mxu0
        %v1037 = vadd.f32 %v945, %v1036
        %1038 = vmatprep.mubr.bf16.mxu0 0
        %1039 = vmatmul.mubr.bf16.gmra.mrb[0].mxu0 %v969
        %v1040 = vpop.f32.mrb[0].mxu0
        %v1041 = vadd.f32 %v941, %v1040
        %v1042 = vpop.f32.mrb[0].mxu0
        %v1043 = vadd.f32 %v945, %v1042
        %v1044 = vpop.f32.mrb[0].mxu0
        %v1045 = vadd.f32 %v941, %v1044
        %v1046 = vpop.f32.mrb[0].mxu0
        %v1047 = vadd.f32 %v945, %v1046
        %1048 = vmatprep.mubr.bf16.mxu0 0
        %1049 = vmatmul.mubr.bf16.gmra.mrb[0].mxu0 %v972
        %v1050 = vpop.f32.mrb[0].mxu0
        %v1051 = vadd.f32 %v941, %v1050
        %v1052 = vpop.f32.mrb[0].mxu0
        %v1053 = vadd.f32 %v945, %v1052
        %v1054 = vpop.f32.mrb[0].mxu0
        %v1055 = vadd.f32 %v941, %v1054
        %v1056 = vpop.f32.mrb[0].mxu0
        %v1057 = vadd.f32 %v945, %v1056
        %1058 = vmatprep.mubr.bf16.mxu0 0
        %1059 = vmatmul.mubr.bf16.gmra.mrb[0].mxu0 %v975
        %v1060 = vpop.f32.mrb[0].mxu0
        %v1061 = vadd.f32 %v941, %v1060
        %v1062 = vpop.f32.mrb[0].mxu0
        %v1063 = vadd.f32 %v945, %v1062
        %v1064 = vpop.f32.mrb[0].mxu0
        %v1065 = vadd.f32 %v941, %v1064
        %v1066 = vpop.f32.mrb[0].mxu0
        %v1067 = vadd.f32 %v945, %v1066
        %1068 = vmatprep.mubr.bf16.mxu0 0
        %1069 = vmatmul.mubr.bf16.gmra.mrb[0].mxu0 %v978
        %v1070 = vpop.f32.mrb[0].mxu0
        %v1071 = vadd.f32 %v941, %v1070
        %v1072 = vpop.f32.mrb[0].mxu0
        %v1073 = vadd.f32 %v945, %v1072
        %v1074 = vpop.f32.mrb[0].mxu0
        %v1075 = vadd.f32 %v941, %v1074
        %v1076 = vpop.f32.mrb[0].mxu0
        %v1077 = vadd.f32 %v945, %v1076
        %1078 = vmatprep.mubr.bf16.mxu0 0
        %1079 = vmatmul.mubr.bf16.gmra.mrb[0].mxu0 %v981
        %v1080 = vpop.f32.mrb[0].mxu0
        %v1081 = vadd.f32 %v941, %v1080
        %v1082 = vpop.f32.mrb[0].mxu0
        %v1083 = vadd.f32 %v945, %v1082
        %v1084 = vpop.f32.mrb[0].mxu0
        %v1085 = vadd.f32 %v941, %v1084
        %v1086 = vpop.f32.mrb[0].mxu0
        %v1087 = vadd.f32 %v945, %v1086
        %1088 = vmatprep.mubr.bf16.mxu0 0
        %1089 = vmatmul.mubr.bf16.gmra.mrb[0].mxu0 %v984
        %v1090 = vpop.f32.mrb[0].mxu0
        %v1091 = vadd.f32 %v941, %v1090
        %v1092 = vpop.f32.mrb[0].mxu0
        %v1093 = vadd.f32 %v945, %v1092
        %v1094 = vpop.f32.mrb[0].mxu0
        %v1095 = vadd.f32 %v941, %v1094
        %v1096 = vpop.f32.mrb[0].mxu0
        %v1097 = vadd.f32 %v945, %v1096
        %1098 = vdwg.mxu0
        %v1099 = vpack.c.bf16 %v933, %v932
        %v1100 = vpack.c.bf16 %v935, %v934
        %v1101 = vlaneseq
        %v1102 = vshrl.u32 %v1101, 7
        %v1103 = vsub.s32 1, %v1102
        %v1104 = vrot.slane %v884, %v1103
        %v1105 = vlaneseq
        %v1106 = vshrl.u32 %v1105, 7
        %v1107 = vsub.s32 1, %v1106
        %v1108 = vrot.slane %v886, %v1107
        %1109 = vxpose.xlu0.c.b16.start [1/8] %v1099, 128
        %1110 = vxpose.xlu0.c.b16.cont [2/8] %v1100, 128
        %1111 = vxpose.xlu0.c.b16.cont [3/8] 0, 128
        %1112 = vxpose.xlu0.c.b16.cont [4/8] 0, 128
        %1113 = vxpose.xlu0.c.b16.cont [5/8] 0, 128
        %1114 = vxpose.xlu0.c.b16.cont [6/8] 0, 128
        %1115 = vxpose.xlu0.c.b16.cont [7/8] 0, 128
        %1116 = vxpose.xlu0.c.b16.end [8/8] 0, 128
        %v1117 = vpop.trf.xlu0
        %v1118 = vpop.trf.xlu0
        %v1119 = vpop.trf.xlu0
        %v1120 = vpop.trf.xlu0
        %v1121 = vpop.trf.xlu0
        %v1122 = vpop.trf.xlu0
        %v1123 = vpop.trf.xlu0
        %v1124 = vpop.trf.xlu0
        %v1126 = vsel %vm469, %v1117, 0
        %v1129 = vsel %vm469, %v1118, 0
        %v1132 = vsel %vm469, %v1119, 0
        %v1135 = vsel %vm469, %v1120, 0
        %v1138 = vsel %vm469, %v1121, 0
        %v1141 = vsel %vm469, %v1122, 0
        %v1144 = vsel %vm469, %v1123, 0
        %v1147 = vsel %vm469, %v1124, 0
        %1149 = vmatprep.subr.bf16.mxu0 %v915
        %1150 = vmatpush1.bf16.msra.mxu0 %v914
        %1151 = vmatprep.subr.bf16.mxu0 %v917
        %1152 = vmatpush1.bf16.msra.mxu0 %v916
        %1153 = vmatprep.subr.bf16.mxu0 0
        %1154 = vmatpush1.bf16.msra.mxu0 0
        %1155 = vmatprep.subr.bf16.mxu0 0
        %1156 = vmatpush1.bf16.msra.mxu0 0
        %1157 = vmatprep.subr.bf16.mxu0 0
        %1158 = vmatpush1.bf16.msra.mxu0 0
        %1159 = vmatprep.subr.bf16.mxu0 0
        %1160 = vmatpush1.bf16.msra.mxu0 0
        %1161 = vmatprep.subr.bf16.mxu0 0
        %1162 = vmatpush1.bf16.msra.mxu0 0
        %1163 = vmatprep.subr.bf16.mxu0 0
        %1164 = vmatpush1.bf16.msra.mxu0 0
        %1165 = vmatprep.subr.bf16.mxu0 0
        %1166 = vmatpush1.bf16.msra.mxu0 0
        %1167 = vmatprep.subr.bf16.mxu0 0
        %1168 = vmatpush1.bf16.msra.mxu0 0
        %1169 = vmatprep.subr.bf16.mxu0 0
        %1170 = vmatpush1.bf16.msra.mxu0 0
        %1171 = vmatprep.subr.bf16.mxu0 0
        %1172 = vmatpush1.bf16.msra.mxu0 0
        %1173 = vmatprep.subr.bf16.mxu0 0
        %1174 = vmatpush1.bf16.msra.mxu0 0
        %1175 = vmatprep.subr.bf16.mxu0 0
        %1176 = vmatpush1.bf16.msra.mxu0 0
        %1177 = vmatprep.subr.bf16.mxu0 0
        %1178 = vmatpush1.bf16.msra.mxu0 0
        %1179 = vmatprep.subr.bf16.mxu0 0
        %1180 = vmatpush1.bf16.msra.mxu0 0
        %1181 = vmatprep.mubr.bf16.mxu0 0
        %1182 = vmatmul.mubr.bf16.gmra.mrb[0].mxu0 %v1126
        %v1183 = vpop.f32.mrb[0].mxu0
        %v1184 = vadd.f32 %v1104, %v1183
        %v1185 = vpop.f32.mrb[0].mxu0
        %v1186 = vadd.f32 %v1108, %v1185
        %v1187 = vpop.f32.mrb[0].mxu0
        %v1188 = vadd.f32 %v1104, %v1187
        %v1189 = vpop.f32.mrb[0].mxu0
        %v1190 = vadd.f32 %v1108, %v1189
        %1191 = vmatprep.mubr.bf16.mxu0 0
        %1192 = vmatmul.mubr.bf16.gmra.mrb[0].mxu0 %v1129
        %v1193 = vpop.f32.mrb[0].mxu0
        %v1194 = vadd.f32 %v1104, %v1193
        %v1195 = vpop.f32.mrb[0].mxu0
        %v1196 = vadd.f32 %v1108, %v1195
        %v1197 = vpop.f32.mrb[0].mxu0
        %v1198 = vadd.f32 %v1104, %v1197
        %v1199 = vpop.f32.mrb[0].mxu0
        %v1200 = vadd.f32 %v1108, %v1199
        %1201 = vmatprep.mubr.bf16.mxu0 0
        %1202 = vmatmul.mubr.bf16.gmra.mrb[0].mxu0 %v1132
        %v1203 = vpop.f32.mrb[0].mxu0
        %v1204 = vadd.f32 %v1104, %v1203
        %v1205 = vpop.f32.mrb[0].mxu0
        %v1206 = vadd.f32 %v1108, %v1205
        %v1207 = vpop.f32.mrb[0].mxu0
        %v1208 = vadd.f32 %v1104, %v1207
        %v1209 = vpop.f32.mrb[0].mxu0
        %v1210 = vadd.f32 %v1108, %v1209
        %1211 = vmatprep.mubr.bf16.mxu0 0
        %1212 = vmatmul.mubr.bf16.gmra.mrb[0].mxu0 %v1135
        %v1213 = vpop.f32.mrb[0].mxu0
        %v1214 = vadd.f32 %v1104, %v1213
        %v1215 = vpop.f32.mrb[0].mxu0
        %v1216 = vadd.f32 %v1108, %v1215
        %v1217 = vpop.f32.mrb[0].mxu0
        %v1218 = vadd.f32 %v1104, %v1217
        %v1219 = vpop.f32.mrb[0].mxu0
        %v1220 = vadd.f32 %v1108, %v1219
        %1221 = vmatprep.mubr.bf16.mxu0 0
        %1222 = vmatmul.mubr.bf16.gmra.mrb[0].mxu0 %v1138
        %v1223 = vpop.f32.mrb[0].mxu0
        %v1224 = vadd.f32 %v1104, %v1223
        %v1225 = vpop.f32.mrb[0].mxu0
        %v1226 = vadd.f32 %v1108, %v1225
        %v1227 = vpop.f32.mrb[0].mxu0
        %v1228 = vadd.f32 %v1104, %v1227
        %v1229 = vpop.f32.mrb[0].mxu0
        %v1230 = vadd.f32 %v1108, %v1229
        %1231 = vmatprep.mubr.bf16.mxu0 0
        %1232 = vmatmul.mubr.bf16.gmra.mrb[0].mxu0 %v1141
        %v1233 = vpop.f32.mrb[0].mxu0
        %v1234 = vadd.f32 %v1104, %v1233
        %v1235 = vpop.f32.mrb[0].mxu0
        %v1236 = vadd.f32 %v1108, %v1235
        %v1237 = vpop.f32.mrb[0].mxu0
        %v1238 = vadd.f32 %v1104, %v1237
        %v1239 = vpop.f32.mrb[0].mxu0
        %v1240 = vadd.f32 %v1108, %v1239
        %1241 = vmatprep.mubr.bf16.mxu0 0
        %1242 = vmatmul.mubr.bf16.gmra.mrb[0].mxu0 %v1144
        %v1243 = vpop.f32.mrb[0].mxu0
        %v1244 = vadd.f32 %v1104, %v1243
        %v1245 = vpop.f32.mrb[0].mxu0
        %v1246 = vadd.f32 %v1108, %v1245
        %v1247 = vpop.f32.mrb[0].mxu0
        %v1248 = vadd.f32 %v1104, %v1247
        %v1249 = vpop.f32.mrb[0].mxu0
        %v1250 = vadd.f32 %v1108, %v1249
        %1251 = vmatprep.mubr.bf16.mxu0 0
        %1252 = vmatmul.mubr.bf16.gmra.mrb[0].mxu0 %v1147
        %v1253 = vpop.f32.mrb[0].mxu0
        %v1254 = vadd.f32 %v1104, %v1253
        %v1255 = vpop.f32.mrb[0].mxu0
        %v1256 = vadd.f32 %v1108, %v1255
        %v1257 = vpop.f32.mrb[0].mxu0
        %v1258 = vadd.f32 %v1104, %v1257
        %v1259 = vpop.f32.mrb[0].mxu0
        %v1260 = vadd.f32 %v1108, %v1259
        %1261 = vdwg.mxu0
        %v1262 = vld [vmem:[%s7] sm:$0xff]
        %v1263 = vld [vmem:[%s7 + $0x8] sm:$0xff]
        %v1264 = vld [vmem:[%s7 + $0x10] sm:$0xff]
        %v1265 = vld [vmem:[%s7 + $0x18] sm:$0xff]
        %v1266 = vld [vmem:[%s7 + $0x20] sm:$0xff]
        %v1267 = vld [vmem:[%s7 + $0x28] sm:$0xff]
        %v1268 = vld [vmem:[%s7 + $0x30] sm:$0xff]
        %v1269 = vld [vmem:[%s7 + $0x38] sm:$0xff]
        %v1270 = vld [vmem:[%s7 + $0x40] sm:$0xff]
        %v1271 = vld [vmem:[%s7 + $0x48] sm:$0xff]
        %v1272 = vld [vmem:[%s7 + $0x50] sm:$0xff]
        %v1273 = vld [vmem:[%s7 + $0x58] sm:$0xff]
        %v1274 = vld [vmem:[%s7 + $0x60] sm:$0xff]
        %v1275 = vld [vmem:[%s7 + $0x68] sm:$0xff]
        %v1276 = vld [vmem:[%s7 + $0x70] sm:$0xff]
        %v1277 = vld [vmem:[%s7 + $0x78] sm:$0xff]
        %v1278 = vld [vmem:[%s7 + $0x80] sm:$0xff]
        %v1279 = vld [vmem:[%s7 + $0x88] sm:$0xff]
        %v1280 = vld [vmem:[%s7 + $0x90] sm:$0xff]
        %v1281 = vld [vmem:[%s7 + $0x98] sm:$0xff]
        %v1282 = vld [vmem:[%s7 + $0xa0] sm:$0xff]
        %v1283 = vld [vmem:[%s7 + $0xa8] sm:$0xff]
        %v1284 = vld [vmem:[%s7 + $0xb0] sm:$0xff]
        %v1285 = vld [vmem:[%s7 + $0xb8] sm:$0xff]
        %v1286 = vld [vmem:[%s7 + $0xc0] sm:$0xff]
        %v1287 = vld [vmem:[%s7 + $0xc8] sm:$0xff]
        %v1288 = vld [vmem:[%s7 + $0xd0] sm:$0xff]
        %v1289 = vld [vmem:[%s7 + $0xd8] sm:$0xff]
        %v1290 = vld [vmem:[%s7 + $0xe0] sm:$0xff]
        %v1291 = vld [vmem:[%s7 + $0xe8] sm:$0xff]
        %v1292 = vld [vmem:[%s7 + $0xf0] sm:$0xff]
        %v1293 = vld [vmem:[%s7 + $0xf8] sm:$0xff]
        %v1294 = vld [vmem:[%s8] sm:$0x3]
        %v1295 = vpack.c.bf16 %v1025, %v1021
        %v1296 = vpack.c.bf16 %v1027, %v1023
        %v1297 = vpack.c.bf16 %v1035, %v1031
        %v1298 = vpack.c.bf16 %v1037, %v1033
        %v1299 = vpack.c.bf16 %v1045, %v1041
        %v1300 = vpack.c.bf16 %v1047, %v1043
        %v1301 = vpack.c.bf16 %v1055, %v1051
        %v1302 = vpack.c.bf16 %v1057, %v1053
        %v1303 = vpack.c.bf16 %v1065, %v1061
        %v1304 = vpack.c.bf16 %v1067, %v1063
        %v1305 = vpack.c.bf16 %v1075, %v1071
        %v1306 = vpack.c.bf16 %v1077, %v1073
        %v1307 = vpack.c.bf16 %v1085, %v1081
        %v1308 = vpack.c.bf16 %v1087, %v1083
        %v1309 = vpack.c.bf16 %v1095, %v1091
        %v1310 = vpack.c.bf16 %v1097, %v1093
        %v1312 = vlaneseq
        %v1313 = vshrl.u32 %v1312, 7
        %v1314 = vsub.s32 0, %v1313
        %v1315 = vrot.slane %v1294, %v1314
        %v1316 = vlaneseq
        %v1317 = vshrl.u32 %v1316, 7
        %v1318 = vsub.s32 1, %v1317
        %v1319 = vrot.slane %v1294, %v1318
        %v1354 = vunpack.c.l.b16 %v1262
        %v1355 = vunpack.c.h.b16 %v1262
        %v1356 = vunpack.c.l.b16 %v1263
        %v1357 = vunpack.c.h.b16 %v1263
        %v1358 = vunpack.c.l.b16 %v1264
        %v1359 = vunpack.c.h.b16 %v1264
        %v1360 = vunpack.c.l.b16 %v1265
        %v1361 = vunpack.c.h.b16 %v1265
        %v1362 = vunpack.c.l.b16 %v1266
        %v1363 = vunpack.c.h.b16 %v1266
        %v1364 = vunpack.c.l.b16 %v1267
        %v1365 = vunpack.c.h.b16 %v1267
        %v1366 = vunpack.c.l.b16 %v1268
        %v1367 = vunpack.c.h.b16 %v1268
        %v1368 = vunpack.c.l.b16 %v1269
        %v1369 = vunpack.c.h.b16 %v1269
        %v1370 = vunpack.c.l.b16 %v1270
        %v1371 = vunpack.c.h.b16 %v1270
        %v1372 = vunpack.c.l.b16 %v1271
        %v1373 = vunpack.c.h.b16 %v1271
        %v1374 = vunpack.c.l.b16 %v1272
        %v1375 = vunpack.c.h.b16 %v1272
        %v1376 = vunpack.c.l.b16 %v1273
        %v1377 = vunpack.c.h.b16 %v1273
        %v1378 = vunpack.c.l.b16 %v1274
        %v1379 = vunpack.c.h.b16 %v1274
        %v1380 = vunpack.c.l.b16 %v1275
        %v1381 = vunpack.c.h.b16 %v1275
        %v1382 = vunpack.c.l.b16 %v1276
        %v1383 = vunpack.c.h.b16 %v1276
        %v1384 = vunpack.c.l.b16 %v1277
        %v1385 = vunpack.c.h.b16 %v1277
        %v1386 = vunpack.c.l.b16 %v1278
        %v1387 = vunpack.c.h.b16 %v1278
        %v1388 = vunpack.c.l.b16 %v1279
        %v1389 = vunpack.c.h.b16 %v1279
        %v1390 = vunpack.c.l.b16 %v1280
        %v1391 = vunpack.c.h.b16 %v1280
        %v1392 = vunpack.c.l.b16 %v1281
        %v1393 = vunpack.c.h.b16 %v1281
        %v1394 = vunpack.c.l.b16 %v1282
        %v1395 = vunpack.c.h.b16 %v1282
        %v1396 = vunpack.c.l.b16 %v1283
        %v1397 = vunpack.c.h.b16 %v1283
        %v1398 = vunpack.c.l.b16 %v1284
        %v1399 = vunpack.c.h.b16 %v1284
        %v1400 = vunpack.c.l.b16 %v1285
        %v1401 = vunpack.c.h.b16 %v1285
        %v1402 = vunpack.c.l.b16 %v1286
        %v1403 = vunpack.c.h.b16 %v1286
        %v1404 = vunpack.c.l.b16 %v1287
        %v1405 = vunpack.c.h.b16 %v1287
        %v1406 = vunpack.c.l.b16 %v1288
        %v1407 = vunpack.c.h.b16 %v1288
        %v1408 = vunpack.c.l.b16 %v1289
        %v1409 = vunpack.c.h.b16 %v1289
        %v1410 = vunpack.c.l.b16 %v1290
        %v1411 = vunpack.c.h.b16 %v1290
        %v1412 = vunpack.c.l.b16 %v1291
        %v1413 = vunpack.c.h.b16 %v1291
        %v1414 = vunpack.c.l.b16 %v1292
        %v1415 = vunpack.c.h.b16 %v1292
        %v1416 = vunpack.c.l.b16 %v1293
        %v1417 = vunpack.c.h.b16 %v1293
        %v1418 = vpack.c.b16 %v1356, %v1354
        %v1419 = vpack.c.b16 %v1357, %v1355
        %v1420 = vpack.c.b16 %v1360, %v1358
        %v1421 = vpack.c.b16 %v1361, %v1359
        %v1422 = vpack.c.b16 %v1364, %v1362
        %v1423 = vpack.c.b16 %v1365, %v1363
        %v1424 = vpack.c.b16 %v1368, %v1366
        %v1425 = vpack.c.b16 %v1369, %v1367
        %v1426 = vpack.c.b16 %v1372, %v1370
        %v1427 = vpack.c.b16 %v1373, %v1371
        %v1428 = vpack.c.b16 %v1376, %v1374
        %v1429 = vpack.c.b16 %v1377, %v1375
        %v1430 = vpack.c.b16 %v1380, %v1378
        %v1431 = vpack.c.b16 %v1381, %v1379
        %v1432 = vpack.c.b16 %v1384, %v1382
        %v1433 = vpack.c.b16 %v1385, %v1383
        %v1434 = vpack.c.b16 %v1388, %v1386
        %v1435 = vpack.c.b16 %v1389, %v1387
        %v1436 = vpack.c.b16 %v1392, %v1390
        %v1437 = vpack.c.b16 %v1393, %v1391
        %v1438 = vpack.c.b16 %v1396, %v1394
        %v1439 = vpack.c.b16 %v1397, %v1395
        %v1440 = vpack.c.b16 %v1400, %v1398
        %v1441 = vpack.c.b16 %v1401, %v1399
        %v1442 = vpack.c.b16 %v1404, %v1402
        %v1443 = vpack.c.b16 %v1405, %v1403
        %v1444 = vpack.c.b16 %v1408, %v1406
        %v1445 = vpack.c.b16 %v1409, %v1407
        %v1446 = vpack.c.b16 %v1412, %v1410
        %v1447 = vpack.c.b16 %v1413, %v1411
        %v1448 = vpack.c.b16 %v1416, %v1414
        %v1449 = vpack.c.b16 %v1417, %v1415
        %1482 = vmatprep.subr.bf16.mxu0 %v1419
        %1483 = vmatpush1.bf16.msra.mxu0 %v1418
        %1484 = vmatprep.subr.bf16.mxu0 %v1421
        %1485 = vmatpush1.bf16.msra.mxu0 %v1420
        %1486 = vmatprep.subr.bf16.mxu0 %v1423
        %1487 = vmatpush1.bf16.msra.mxu0 %v1422
        %1488 = vmatprep.subr.bf16.mxu0 %v1425
        %1489 = vmatpush1.bf16.msra.mxu0 %v1424
        %1490 = vmatprep.subr.bf16.mxu0 %v1427
        %1491 = vmatpush1.bf16.msra.mxu0 %v1426
        %1492 = vmatprep.subr.bf16.mxu0 %v1429
        %1493 = vmatpush1.bf16.msra.mxu0 %v1428
        %1494 = vmatprep.subr.bf16.mxu0 %v1431
        %1495 = vmatpush1.bf16.msra.mxu0 %v1430
        %1496 = vmatprep.subr.bf16.mxu0 %v1433
        %1497 = vmatpush1.bf16.msra.mxu0 %v1432
        %1498 = vmatprep.subr.bf16.mxu0 %v1435
        %1499 = vmatpush1.bf16.msra.mxu0 %v1434
        %1500 = vmatprep.subr.bf16.mxu0 %v1437
        %1501 = vmatpush1.bf16.msra.mxu0 %v1436
        %1502 = vmatprep.subr.bf16.mxu0 %v1439
        %1503 = vmatpush1.bf16.msra.mxu0 %v1438
        %1504 = vmatprep.subr.bf16.mxu0 %v1441
        %1505 = vmatpush1.bf16.msra.mxu0 %v1440
        %1506 = vmatprep.subr.bf16.mxu0 %v1443
        %1507 = vmatpush1.bf16.msra.mxu0 %v1442
        %1508 = vmatprep.subr.bf16.mxu0 %v1445
        %1509 = vmatpush1.bf16.msra.mxu0 %v1444
        %1510 = vmatprep.subr.bf16.mxu0 %v1447
        %1511 = vmatpush1.bf16.msra.mxu0 %v1446
        %1512 = vmatprep.subr.bf16.mxu0 %v1449
        %1513 = vmatpush1.bf16.msra.mxu0 %v1448
        %1514 = vmatprep.mubr.bf16.mxu0 %v1296
        %1515 = vmatmul.mubr.bf16.gmra.mrb[0].mxu0 %v1295
        %v1516 = vpop.f32.mrb[0].mxu0
        %v1517 = vadd.f32 %v1315, %v1516
        %v1518 = vpop.f32.mrb[0].mxu0
        %v1519 = vadd.f32 %v1319, %v1518
        %v1520 = vpop.f32.mrb[0].mxu0
        %v1521 = vadd.f32 %v1315, %v1520
        %v1522 = vpop.f32.mrb[0].mxu0
        %v1523 = vadd.f32 %v1319, %v1522
        %1524 = vmatprep.mubr.bf16.mxu0 %v1298
        %1525 = vmatmul.mubr.bf16.gmra.mrb[0].mxu0 %v1297
        %v1526 = vpop.f32.mrb[0].mxu0
        %v1527 = vadd.f32 %v1315, %v1526
        %v1528 = vpop.f32.mrb[0].mxu0
        %v1529 = vadd.f32 %v1319, %v1528
        %v1530 = vpop.f32.mrb[0].mxu0
        %v1531 = vadd.f32 %v1315, %v1530
        %v1532 = vpop.f32.mrb[0].mxu0
        %v1533 = vadd.f32 %v1319, %v1532
        %1534 = vmatprep.mubr.bf16.mxu0 %v1300
        %1535 = vmatmul.mubr.bf16.gmra.mrb[0].mxu0 %v1299
        %v1536 = vpop.f32.mrb[0].mxu0
        %v1537 = vadd.f32 %v1315, %v1536
        %v1538 = vpop.f32.mrb[0].mxu0
        %v1539 = vadd.f32 %v1319, %v1538
        %v1540 = vpop.f32.mrb[0].mxu0
        %v1541 = vadd.f32 %v1315, %v1540
        %v1542 = vpop.f32.mrb[0].mxu0
        %v1543 = vadd.f32 %v1319, %v1542
        %1544 = vmatprep.mubr.bf16.mxu0 %v1302
        %1545 = vmatmul.mubr.bf16.gmra.mrb[0].mxu0 %v1301
        %v1546 = vpop.f32.mrb[0].mxu0
        %v1547 = vadd.f32 %v1315, %v1546
        %v1548 = vpop.f32.mrb[0].mxu0
        %v1549 = vadd.f32 %v1319, %v1548
        %v1550 = vpop.f32.mrb[0].mxu0
        %v1551 = vadd.f32 %v1315, %v1550
        %v1552 = vpop.f32.mrb[0].mxu0
        %v1553 = vadd.f32 %v1319, %v1552
        %1554 = vmatprep.mubr.bf16.mxu0 %v1304
        %1555 = vmatmul.mubr.bf16.gmra.mrb[0].mxu0 %v1303
        %v1556 = vpop.f32.mrb[0].mxu0
        %v1557 = vadd.f32 %v1315, %v1556
        %v1558 = vpop.f32.mrb[0].mxu0
        %v1559 = vadd.f32 %v1319, %v1558
        %v1560 = vpop.f32.mrb[0].mxu0
        %v1561 = vadd.f32 %v1315, %v1560
        %v1562 = vpop.f32.mrb[0].mxu0
        %v1563 = vadd.f32 %v1319, %v1562
        %1564 = vmatprep.mubr.bf16.mxu0 %v1306
        %1565 = vmatmul.mubr.bf16.gmra.mrb[0].mxu0 %v1305
        %v1566 = vpop.f32.mrb[0].mxu0
        %v1567 = vadd.f32 %v1315, %v1566
        %v1568 = vpop.f32.mrb[0].mxu0
        %v1569 = vadd.f32 %v1319, %v1568
        %v1570 = vpop.f32.mrb[0].mxu0
        %v1571 = vadd.f32 %v1315, %v1570
        %v1572 = vpop.f32.mrb[0].mxu0
        %v1573 = vadd.f32 %v1319, %v1572
        %1574 = vmatprep.mubr.bf16.mxu0 %v1308
        %1575 = vmatmul.mubr.bf16.gmra.mrb[0].mxu0 %v1307
        %v1576 = vpop.f32.mrb[0].mxu0
        %v1577 = vadd.f32 %v1315, %v1576
        %v1578 = vpop.f32.mrb[0].mxu0
        %v1579 = vadd.f32 %v1319, %v1578
        %v1580 = vpop.f32.mrb[0].mxu0
        %v1581 = vadd.f32 %v1315, %v1580
        %v1582 = vpop.f32.mrb[0].mxu0
        %v1583 = vadd.f32 %v1319, %v1582
        %1584 = vmatprep.mubr.bf16.mxu0 %v1310
        %1585 = vmatmul.mubr.bf16.gmra.mrb[0].mxu0 %v1309
        %v1586 = vpop.f32.mrb[0].mxu0
        %v1587 = vadd.f32 %v1315, %v1586
        %v1588 = vpop.f32.mrb[0].mxu0
        %v1589 = vadd.f32 %v1319, %v1588
        %v1590 = vpop.f32.mrb[0].mxu0
        %v1591 = vadd.f32 %v1315, %v1590
        %v1592 = vpop.f32.mrb[0].mxu0
        %v1593 = vadd.f32 %v1319, %v1592
        %1594 = vdwg.mxu0
        %v1595 = vmax.f32 %v1517, %v1519
        %1596 = vmax.xlane.f32.xlu0 %v1595
        %v1597 = vpop.xlane.xlu0 %1596
        %v1598 = vmax.f32 %v1521, %v1523
        %1599 = vmax.xlane.f32.xlu0 %v1598
        %v1600 = vpop.xlane.xlu0 %1599
        %v1601 = vmax.f32 %v1527, %v1529
        %1602 = vmax.xlane.f32.xlu0 %v1601
        %v1603 = vpop.xlane.xlu0 %1602
        %v1604 = vmax.f32 %v1531, %v1533
        %1605 = vmax.xlane.f32.xlu0 %v1604
        %v1606 = vpop.xlane.xlu0 %1605
        %v1607 = vmax.f32 %v1537, %v1539
        %1608 = vmax.xlane.f32.xlu0 %v1607
        %v1609 = vpop.xlane.xlu0 %1608
        %v1610 = vmax.f32 %v1541, %v1543
        %1611 = vmax.xlane.f32.xlu0 %v1610
        %v1612 = vpop.xlane.xlu0 %1611
        %v1613 = vmax.f32 %v1547, %v1549
        %1614 = vmax.xlane.f32.xlu0 %v1613
        %v1615 = vpop.xlane.xlu0 %1614
        %v1616 = vmax.f32 %v1551, %v1553
        %1617 = vmax.xlane.f32.xlu0 %v1616
        %v1618 = vpop.xlane.xlu0 %1617
        %v1619 = vmax.f32 %v1557, %v1559
        %1620 = vmax.xlane.f32.xlu0 %v1619
        %v1621 = vpop.xlane.xlu0 %1620
        %v1622 = vmax.f32 %v1561, %v1563
        %1623 = vmax.xlane.f32.xlu0 %v1622
        %v1624 = vpop.xlane.xlu0 %1623
        %v1625 = vmax.f32 %v1567, %v1569
        %1626 = vmax.xlane.f32.xlu0 %v1625
        %v1627 = vpop.xlane.xlu0 %1626
        %v1628 = vmax.f32 %v1571, %v1573
        %1629 = vmax.xlane.f32.xlu0 %v1628
        %v1630 = vpop.xlane.xlu0 %1629
        %v1631 = vmax.f32 %v1577, %v1579
        %1632 = vmax.xlane.f32.xlu0 %v1631
        %v1633 = vpop.xlane.xlu0 %1632
        %v1634 = vmax.f32 %v1581, %v1583
        %1635 = vmax.xlane.f32.xlu0 %v1634
        %v1636 = vpop.xlane.xlu0 %1635
        %v1637 = vmax.f32 %v1587, %v1589
        %1638 = vmax.xlane.f32.xlu0 %v1637
        %v1639 = vpop.xlane.xlu0 %1638
        %v1640 = vmax.f32 %v1591, %v1593
        %1641 = vmax.xlane.f32.xlu0 %v1640
        %v1642 = vpop.xlane.xlu0 %1641
        %v1643 = vsub.f32 %v1517, %v1597
        %v1644 = vsub.f32 %v1519, %v1597
        %v1645 = vsub.f32 %v1521, %v1600
        %v1646 = vsub.f32 %v1523, %v1600
        %v1647 = vsub.f32 %v1527, %v1603
        %v1648 = vsub.f32 %v1529, %v1603
        %v1649 = vsub.f32 %v1531, %v1606
        %v1650 = vsub.f32 %v1533, %v1606
        %v1651 = vsub.f32 %v1537, %v1609
        %v1652 = vsub.f32 %v1539, %v1609
        %v1653 = vsub.f32 %v1541, %v1612
        %v1654 = vsub.f32 %v1543, %v1612
        %v1655 = vsub.f32 %v1547, %v1615
        %v1656 = vsub.f32 %v1549, %v1615
        %v1657 = vsub.f32 %v1551, %v1618
        %v1658 = vsub.f32 %v1553, %v1618
        %v1659 = vsub.f32 %v1557, %v1621
        %v1660 = vsub.f32 %v1559, %v1621
        %v1661 = vsub.f32 %v1561, %v1624
        %v1662 = vsub.f32 %v1563, %v1624
        %v1663 = vsub.f32 %v1567, %v1627
        %v1664 = vsub.f32 %v1569, %v1627
        %v1665 = vsub.f32 %v1571, %v1630
        %v1666 = vsub.f32 %v1573, %v1630
        %v1667 = vsub.f32 %v1577, %v1633
        %v1668 = vsub.f32 %v1579, %v1633
        %v1669 = vsub.f32 %v1581, %v1636
        %v1670 = vsub.f32 %v1583, %v1636
        %v1671 = vsub.f32 %v1587, %v1639
        %v1672 = vsub.f32 %v1589, %v1639
        %v1673 = vsub.f32 %v1591, %v1642
        %v1674 = vsub.f32 %v1593, %v1642
        %v1675 = vmul.f32 %v1643, 1.442695
        %v1676 = vpow.pop %v1675
        %v1677 = vmul.f32 %v1644, 1.442695
        %v1678 = vpow.pop %v1677
        %v1679 = vmul.f32 %v1645, 1.442695
        %v1680 = vpow.pop %v1679
        %v1681 = vmul.f32 %v1646, 1.442695
        %v1682 = vpow.pop %v1681
        %v1683 = vmul.f32 %v1647, 1.442695
        %v1684 = vpow.pop %v1683
        %v1685 = vmul.f32 %v1648, 1.442695
        %v1686 = vpow.pop %v1685
        %v1687 = vmul.f32 %v1649, 1.442695
        %v1688 = vpow.pop %v1687
        %v1689 = vmul.f32 %v1650, 1.442695
        %v1690 = vpow.pop %v1689
        %v1691 = vmul.f32 %v1651, 1.442695
        %v1692 = vpow.pop %v1691
        %v1693 = vmul.f32 %v1652, 1.442695
        %v1694 = vpow.pop %v1693
        %v1695 = vmul.f32 %v1653, 1.442695
        %v1696 = vpow.pop %v1695
        %v1697 = vmul.f32 %v1654, 1.442695
        %v1698 = vpow.pop %v1697
        %v1699 = vmul.f32 %v1655, 1.442695
        %v1700 = vpow.pop %v1699
        %v1701 = vmul.f32 %v1656, 1.442695
        %v1702 = vpow.pop %v1701
        %v1703 = vmul.f32 %v1657, 1.442695
        %v1704 = vpow.pop %v1703
        %v1705 = vmul.f32 %v1658, 1.442695
        %v1706 = vpow.pop %v1705
        %v1707 = vmul.f32 %v1659, 1.442695
        %v1708 = vpow.pop %v1707
        %v1709 = vmul.f32 %v1660, 1.442695
        %v1710 = vpow.pop %v1709
        %v1711 = vmul.f32 %v1661, 1.442695
        %v1712 = vpow.pop %v1711
        %v1713 = vmul.f32 %v1662, 1.442695
        %v1714 = vpow.pop %v1713
        %v1715 = vmul.f32 %v1663, 1.442695
        %v1716 = vpow.pop %v1715
        %v1717 = vmul.f32 %v1664, 1.442695
        %v1718 = vpow.pop %v1717
        %v1719 = vmul.f32 %v1665, 1.442695
        %v1720 = vpow.pop %v1719
        %v1721 = vmul.f32 %v1666, 1.442695
        %v1722 = vpow.pop %v1721
        %v1723 = vmul.f32 %v1667, 1.442695
        %v1724 = vpow.pop %v1723
        %v1725 = vmul.f32 %v1668, 1.442695
        %v1726 = vpow.pop %v1725
        %v1727 = vmul.f32 %v1669, 1.442695
        %v1728 = vpow.pop %v1727
        %v1729 = vmul.f32 %v1670, 1.442695
        %v1730 = vpow.pop %v1729
        %v1731 = vmul.f32 %v1671, 1.442695
        %v1732 = vpow.pop %v1731
        %v1733 = vmul.f32 %v1672, 1.442695
        %v1734 = vpow.pop %v1733
        %v1735 = vmul.f32 %v1673, 1.442695
        %v1736 = vpow.pop %v1735
        %v1737 = vmul.f32 %v1674, 1.442695
        %v1738 = vpow.pop %v1737
        %v1739 = vadd.f32 %v1676, %v1678
        %1740 = vadd.xlane.f32.xlu0 %v1739
        %v1741 = vpop.xlane.xlu0 %1740
        %v1742 = vadd.f32 %v1680, %v1682
        %1743 = vadd.xlane.f32.xlu0 %v1742
        %v1744 = vpop.xlane.xlu0 %1743
        %v1745 = vadd.f32 %v1684, %v1686
        %1746 = vadd.xlane.f32.xlu0 %v1745
        %v1747 = vpop.xlane.xlu0 %1746
        %v1748 = vadd.f32 %v1688, %v1690
        %1749 = vadd.xlane.f32.xlu0 %v1748
        %v1750 = vpop.xlane.xlu0 %1749
        %v1751 = vadd.f32 %v1692, %v1694
        %1752 = vadd.xlane.f32.xlu0 %v1751
        %v1753 = vpop.xlane.xlu0 %1752
        %v1754 = vadd.f32 %v1696, %v1698
        %1755 = vadd.xlane.f32.xlu0 %v1754
        %v1756 = vpop.xlane.xlu0 %1755
        %v1757 = vadd.f32 %v1700, %v1702
        %1758 = vadd.xlane.f32.xlu0 %v1757
        %v1759 = vpop.xlane.xlu0 %1758
        %v1760 = vadd.f32 %v1704, %v1706
        %1761 = vadd.xlane.f32.xlu0 %v1760
        %v1762 = vpop.xlane.xlu0 %1761
        %v1763 = vadd.f32 %v1708, %v1710
        %1764 = vadd.xlane.f32.xlu0 %v1763
        %v1765 = vpop.xlane.xlu0 %1764
        %v1766 = vadd.f32 %v1712, %v1714
        %1767 = vadd.xlane.f32.xlu0 %v1766
        %v1768 = vpop.xlane.xlu0 %1767
        %v1769 = vadd.f32 %v1716, %v1718
        %1770 = vadd.xlane.f32.xlu0 %v1769
        %v1771 = vpop.xlane.xlu0 %1770
        %v1772 = vadd.f32 %v1720, %v1722
        %1773 = vadd.xlane.f32.xlu0 %v1772
        %v1774 = vpop.xlane.xlu0 %1773
        %v1775 = vadd.f32 %v1724, %v1726
        %1776 = vadd.xlane.f32.xlu0 %v1775
        %v1777 = vpop.xlane.xlu0 %1776
        %v1778 = vadd.f32 %v1728, %v1730
        %1779 = vadd.xlane.f32.xlu0 %v1778
        %v1780 = vpop.xlane.xlu0 %1779
        %v1781 = vadd.f32 %v1732, %v1734
        %1782 = vadd.xlane.f32.xlu0 %v1781
        %v1783 = vpop.xlane.xlu0 %1782
        %v1784 = vadd.f32 %v1736, %v1738
        %1785 = vadd.xlane.f32.xlu0 %v1784
        %v1786 = vpop.xlane.xlu0 %1785
        %v1787 = vrcp.pop %v1741
        %v1788 = vrcp.pop %v1744
        %v1789 = vrcp.pop %v1747
        %v1790 = vrcp.pop %v1750
        %v1791 = vrcp.pop %v1753
        %v1792 = vrcp.pop %v1756
        %v1793 = vrcp.pop %v1759
        %v1794 = vrcp.pop %v1762
        %v1795 = vrcp.pop %v1765
        %v1796 = vrcp.pop %v1768
        %v1797 = vrcp.pop %v1771
        %v1798 = vrcp.pop %v1774
        %v1799 = vrcp.pop %v1777
        %v1800 = vrcp.pop %v1780
        %v1801 = vrcp.pop %v1783
        %v1802 = vrcp.pop %v1786
        %v1803 = vmul.f32 %v1676, %v1787
        %v1804 = vmul.f32 %v1678, %v1787
        %v1805 = vmul.f32 %v1680, %v1788
        %v1806 = vmul.f32 %v1682, %v1788
        %v1807 = vmul.f32 %v1684, %v1789
        %v1808 = vmul.f32 %v1686, %v1789
        %v1809 = vmul.f32 %v1688, %v1790
        %v1810 = vmul.f32 %v1690, %v1790
        %v1811 = vmul.f32 %v1692, %v1791
        %v1812 = vmul.f32 %v1694, %v1791
        %v1813 = vmul.f32 %v1696, %v1792
        %v1814 = vmul.f32 %v1698, %v1792
        %v1815 = vmul.f32 %v1700, %v1793
        %v1816 = vmul.f32 %v1702, %v1793
        %v1817 = vmul.f32 %v1704, %v1794
        %v1818 = vmul.f32 %v1706, %v1794
        %v1819 = vmul.f32 %v1708, %v1795
        %v1820 = vmul.f32 %v1710, %v1795
        %v1821 = vmul.f32 %v1712, %v1796
        %v1822 = vmul.f32 %v1714, %v1796
        %v1823 = vmul.f32 %v1716, %v1797
        %v1824 = vmul.f32 %v1718, %v1797
        %v1825 = vmul.f32 %v1720, %v1798
        %v1826 = vmul.f32 %v1722, %v1798
        %v1827 = vmul.f32 %v1724, %v1799
        %v1828 = vmul.f32 %v1726, %v1799
        %v1829 = vmul.f32 %v1728, %v1800
        %v1830 = vmul.f32 %v1730, %v1800
        %v1831 = vmul.f32 %v1732, %v1801
        %v1832 = vmul.f32 %v1734, %v1801
        %v1833 = vmul.f32 %v1736, %v1802
        %v1834 = vmul.f32 %v1738, %v1802
        %v1835 = vpack.c.bf16 %v1188, %v1184
        %v1836 = vpack.c.bf16 %v1190, %v1186
        %v1837 = vpack.c.bf16 %v1198, %v1194
        %v1838 = vpack.c.bf16 %v1200, %v1196
        %v1839 = vpack.c.bf16 %v1208, %v1204
        %v1840 = vpack.c.bf16 %v1210, %v1206
        %v1841 = vpack.c.bf16 %v1218, %v1214
        %v1842 = vpack.c.bf16 %v1220, %v1216
        %v1843 = vpack.c.bf16 %v1228, %v1224
        %v1844 = vpack.c.bf16 %v1230, %v1226
        %v1845 = vpack.c.bf16 %v1238, %v1234
        %v1846 = vpack.c.bf16 %v1240, %v1236
        %v1847 = vpack.c.bf16 %v1248, %v1244
        %v1848 = vpack.c.bf16 %v1250, %v1246
        %v1849 = vpack.c.bf16 %v1258, %v1254
        %v1850 = vpack.c.bf16 %v1260, %v1256
        %1851 = vmatprep.subr.bf16.mxu0 %v1419
        %1852 = vmatpush1.bf16.msra.mxu0 %v1418
        %1853 = vmatprep.subr.bf16.mxu0 %v1421
        %1854 = vmatpush1.bf16.msra.mxu0 %v1420
        %1855 = vmatprep.subr.bf16.mxu0 %v1423
        %1856 = vmatpush1.bf16.msra.mxu0 %v1422
        %1857 = vmatprep.subr.bf16.mxu0 %v1425
        %1858 = vmatpush1.bf16.msra.mxu0 %v1424
        %1859 = vmatprep.subr.bf16.mxu0 %v1427
        %1860 = vmatpush1.bf16.msra.mxu0 %v1426
        %1861 = vmatprep.subr.bf16.mxu0 %v1429
        %1862 = vmatpush1.bf16.msra.mxu0 %v1428
        %1863 = vmatprep.subr.bf16.mxu0 %v1431
        %1864 = vmatpush1.bf16.msra.mxu0 %v1430
        %1865 = vmatprep.subr.bf16.mxu0 %v1433
        %1866 = vmatpush1.bf16.msra.mxu0 %v1432
        %1867 = vmatprep.subr.bf16.mxu0 %v1435
        %1868 = vmatpush1.bf16.msra.mxu0 %v1434
        %1869 = vmatprep.subr.bf16.mxu0 %v1437
        %1870 = vmatpush1.bf16.msra.mxu0 %v1436
        %1871 = vmatprep.subr.bf16.mxu0 %v1439
        %1872 = vmatpush1.bf16.msra.mxu0 %v1438
        %1873 = vmatprep.subr.bf16.mxu0 %v1441
        %1874 = vmatpush1.bf16.msra.mxu0 %v1440
        %1875 = vmatprep.subr.bf16.mxu0 %v1443
        %1876 = vmatpush1.bf16.msra.mxu0 %v1442
        %1877 = vmatprep.subr.bf16.mxu0 %v1445
        %1878 = vmatpush1.bf16.msra.mxu0 %v1444
        %1879 = vmatprep.subr.bf16.mxu0 %v1447
        %1880 = vmatpush1.bf16.msra.mxu0 %v1446
        %1881 = vmatprep.subr.bf16.mxu0 %v1449
        %1882 = vmatpush1.bf16.msra.mxu0 %v1448
        %1883 = vmatprep.mubr.bf16.mxu0 %v1836
        %1884 = vmatmul.mubr.bf16.gmra.mrb[0].mxu0 %v1835
        %v1885 = vpop.f32.mrb[0].mxu0
        %v1886 = vadd.f32 %v1315, %v1885
        %v1887 = vpop.f32.mrb[0].mxu0
        %v1888 = vadd.f32 %v1319, %v1887
        %v1889 = vpop.f32.mrb[0].mxu0
        %v1890 = vadd.f32 %v1315, %v1889
        %v1891 = vpop.f32.mrb[0].mxu0
        %v1892 = vadd.f32 %v1319, %v1891
        %1893 = vmatprep.mubr.bf16.mxu0 %v1838
        %1894 = vmatmul.mubr.bf16.gmra.mrb[0].mxu0 %v1837
        %v1895 = vpop.f32.mrb[0].mxu0
        %v1896 = vadd.f32 %v1315, %v1895
        %v1897 = vpop.f32.mrb[0].mxu0
        %v1898 = vadd.f32 %v1319, %v1897
        %v1899 = vpop.f32.mrb[0].mxu0
        %v1900 = vadd.f32 %v1315, %v1899
        %v1901 = vpop.f32.mrb[0].mxu0
        %v1902 = vadd.f32 %v1319, %v1901
        %1903 = vmatprep.mubr.bf16.mxu0 %v1840
        %1904 = vmatmul.mubr.bf16.gmra.mrb[0].mxu0 %v1839
        %v1905 = vpop.f32.mrb[0].mxu0
        %v1906 = vadd.f32 %v1315, %v1905
        %v1907 = vpop.f32.mrb[0].mxu0
        %v1908 = vadd.f32 %v1319, %v1907
        %v1909 = vpop.f32.mrb[0].mxu0
        %v1910 = vadd.f32 %v1315, %v1909
        %v1911 = vpop.f32.mrb[0].mxu0
        %v1912 = vadd.f32 %v1319, %v1911
        %1913 = vmatprep.mubr.bf16.mxu0 %v1842
        %1914 = vmatmul.mubr.bf16.gmra.mrb[0].mxu0 %v1841
        %v1915 = vpop.f32.mrb[0].mxu0
        %v1916 = vadd.f32 %v1315, %v1915
        %v1917 = vpop.f32.mrb[0].mxu0
        %v1918 = vadd.f32 %v1319, %v1917
        %v1919 = vpop.f32.mrb[0].mxu0
        %v1920 = vadd.f32 %v1315, %v1919
        %v1921 = vpop.f32.mrb[0].mxu0
        %v1922 = vadd.f32 %v1319, %v1921
        %1923 = vmatprep.mubr.bf16.mxu0 %v1844
        %1924 = vmatmul.mubr.bf16.gmra.mrb[0].mxu0 %v1843
        %v1925 = vpop.f32.mrb[0].mxu0
        %v1926 = vadd.f32 %v1315, %v1925
        %v1927 = vpop.f32.mrb[0].mxu0
        %v1928 = vadd.f32 %v1319, %v1927
        %v1929 = vpop.f32.mrb[0].mxu0
        %v1930 = vadd.f32 %v1315, %v1929
        %v1931 = vpop.f32.mrb[0].mxu0
        %v1932 = vadd.f32 %v1319, %v1931
        %1933 = vmatprep.mubr.bf16.mxu0 %v1846
        %1934 = vmatmul.mubr.bf16.gmra.mrb[0].mxu0 %v1845
        %v1935 = vpop.f32.mrb[0].mxu0
        %v1936 = vadd.f32 %v1315, %v1935
        %v1937 = vpop.f32.mrb[0].mxu0
        %v1938 = vadd.f32 %v1319, %v1937
        %v1939 = vpop.f32.mrb[0].mxu0
        %v1940 = vadd.f32 %v1315, %v1939
        %v1941 = vpop.f32.mrb[0].mxu0
        %v1942 = vadd.f32 %v1319, %v1941
        %1943 = vmatprep.mubr.bf16.mxu0 %v1848
        %1944 = vmatmul.mubr.bf16.gmra.mrb[0].mxu0 %v1847
        %v1945 = vpop.f32.mrb[0].mxu0
        %v1946 = vadd.f32 %v1315, %v1945
        %v1947 = vpop.f32.mrb[0].mxu0
        %v1948 = vadd.f32 %v1319, %v1947
        %v1949 = vpop.f32.mrb[0].mxu0
        %v1950 = vadd.f32 %v1315, %v1949
        %v1951 = vpop.f32.mrb[0].mxu0
        %v1952 = vadd.f32 %v1319, %v1951
        %1953 = vmatprep.mubr.bf16.mxu0 %v1850
        %1954 = vmatmul.mubr.bf16.gmra.mrb[0].mxu0 %v1849
        %v1955 = vpop.f32.mrb[0].mxu0
        %v1956 = vadd.f32 %v1315, %v1955
        %v1957 = vpop.f32.mrb[0].mxu0
        %v1958 = vadd.f32 %v1319, %v1957
        %v1959 = vpop.f32.mrb[0].mxu0
        %v1960 = vadd.f32 %v1315, %v1959
        %v1961 = vpop.f32.mrb[0].mxu0
        %v1962 = vadd.f32 %v1319, %v1961
        %1963 = vdwg.mxu0
        %v1964 = vmax.f32 %v1886, %v1888
        %1965 = vmax.xlane.f32.xlu0 %v1964
        %v1966 = vpop.xlane.xlu0 %1965
        %v1967 = vmax.f32 %v1890, %v1892
        %1968 = vmax.xlane.f32.xlu0 %v1967
        %v1969 = vpop.xlane.xlu0 %1968
        %v1970 = vmax.f32 %v1896, %v1898
        %1971 = vmax.xlane.f32.xlu0 %v1970
        %v1972 = vpop.xlane.xlu0 %1971
        %v1973 = vmax.f32 %v1900, %v1902
        %1974 = vmax.xlane.f32.xlu0 %v1973
        %v1975 = vpop.xlane.xlu0 %1974
        %v1976 = vmax.f32 %v1906, %v1908
        %1977 = vmax.xlane.f32.xlu0 %v1976
        %v1978 = vpop.xlane.xlu0 %1977
        %v1979 = vmax.f32 %v1910, %v1912
        %1980 = vmax.xlane.f32.xlu0 %v1979
        %v1981 = vpop.xlane.xlu0 %1980
        %v1982 = vmax.f32 %v1916, %v1918
        %1983 = vmax.xlane.f32.xlu0 %v1982
        %v1984 = vpop.xlane.xlu0 %1983
        %v1985 = vmax.f32 %v1920, %v1922
        %1986 = vmax.xlane.f32.xlu0 %v1985
        %v1987 = vpop.xlane.xlu0 %1986
        %v1988 = vmax.f32 %v1926, %v1928
        %1989 = vmax.xlane.f32.xlu0 %v1988
        %v1990 = vpop.xlane.xlu0 %1989
        %v1991 = vmax.f32 %v1930, %v1932
        %1992 = vmax.xlane.f32.xlu0 %v1991
        %v1993 = vpop.xlane.xlu0 %1992
        %v1994 = vmax.f32 %v1936, %v1938
        %1995 = vmax.xlane.f32.xlu0 %v1994
        %v1996 = vpop.xlane.xlu0 %1995
        %v1997 = vmax.f32 %v1940, %v1942
        %1998 = vmax.xlane.f32.xlu0 %v1997
        %v1999 = vpop.xlane.xlu0 %1998
        %v2000 = vmax.f32 %v1946, %v1948
        %2001 = vmax.xlane.f32.xlu0 %v2000
        %v2002 = vpop.xlane.xlu0 %2001
        %v2003 = vmax.f32 %v1950, %v1952
        %2004 = vmax.xlane.f32.xlu0 %v2003
        %v2005 = vpop.xlane.xlu0 %2004
        %v2006 = vmax.f32 %v1956, %v1958
        %2007 = vmax.xlane.f32.xlu0 %v2006
        %v2008 = vpop.xlane.xlu0 %2007
        %v2009 = vmax.f32 %v1960, %v1962
        %2010 = vmax.xlane.f32.xlu0 %v2009
        %v2011 = vpop.xlane.xlu0 %2010
        %v2012 = vsub.f32 %v1886, %v1966
        %v2013 = vsub.f32 %v1888, %v1966
        %v2014 = vsub.f32 %v1890, %v1969
        %v2015 = vsub.f32 %v1892, %v1969
        %v2016 = vsub.f32 %v1896, %v1972
        %v2017 = vsub.f32 %v1898, %v1972
        %v2018 = vsub.f32 %v1900, %v1975
        %v2019 = vsub.f32 %v1902, %v1975
        %v2020 = vsub.f32 %v1906, %v1978
        %v2021 = vsub.f32 %v1908, %v1978
        %v2022 = vsub.f32 %v1910, %v1981
        %v2023 = vsub.f32 %v1912, %v1981
        %v2024 = vsub.f32 %v1916, %v1984
        %v2025 = vsub.f32 %v1918, %v1984
        %v2026 = vsub.f32 %v1920, %v1987
        %v2027 = vsub.f32 %v1922, %v1987
        %v2028 = vsub.f32 %v1926, %v1990
        %v2029 = vsub.f32 %v1928, %v1990
        %v2030 = vsub.f32 %v1930, %v1993
        %v2031 = vsub.f32 %v1932, %v1993
        %v2032 = vsub.f32 %v1936, %v1996
        %v2033 = vsub.f32 %v1938, %v1996
        %v2034 = vsub.f32 %v1940, %v1999
        %v2035 = vsub.f32 %v1942, %v1999
        %v2036 = vsub.f32 %v1946, %v2002
        %v2037 = vsub.f32 %v1948, %v2002
        %v2038 = vsub.f32 %v1950, %v2005
        %v2039 = vsub.f32 %v1952, %v2005
        %v2040 = vsub.f32 %v1956, %v2008
        %v2041 = vsub.f32 %v1958, %v2008
        %v2042 = vsub.f32 %v1960, %v2011
        %v2043 = vsub.f32 %v1962, %v2011
        %v2044 = vmul.f32 %v2012, 1.442695
        %v2045 = vpow.pop %v2044
        %v2046 = vmul.f32 %v2013, 1.442695
        %v2047 = vpow.pop %v2046
        %v2048 = vmul.f32 %v2014, 1.442695
        %v2049 = vpow.pop %v2048
        %v2050 = vmul.f32 %v2015, 1.442695
        %v2051 = vpow.pop %v2050
        %v2052 = vmul.f32 %v2016, 1.442695
        %v2053 = vpow.pop %v2052
        %v2054 = vmul.f32 %v2017, 1.442695
        %v2055 = vpow.pop %v2054
        %v2056 = vmul.f32 %v2018, 1.442695
        %v2057 = vpow.pop %v2056
        %v2058 = vmul.f32 %v2019, 1.442695
        %v2059 = vpow.pop %v2058
        %v2060 = vmul.f32 %v2020, 1.442695
        %v2061 = vpow.pop %v2060
        %v2062 = vmul.f32 %v2021, 1.442695
        %v2063 = vpow.pop %v2062
        %v2064 = vmul.f32 %v2022, 1.442695
        %v2065 = vpow.pop %v2064
        %v2066 = vmul.f32 %v2023, 1.442695
        %v2067 = vpow.pop %v2066
        %v2068 = vmul.f32 %v2024, 1.442695
        %v2069 = vpow.pop %v2068
        %v2070 = vmul.f32 %v2025, 1.442695
        %v2071 = vpow.pop %v2070
        %v2072 = vmul.f32 %v2026, 1.442695
        %v2073 = vpow.pop %v2072
        %v2074 = vmul.f32 %v2027, 1.442695
        %v2075 = vpow.pop %v2074
        %v2076 = vmul.f32 %v2028, 1.442695
        %v2077 = vpow.pop %v2076
        %v2078 = vmul.f32 %v2029, 1.442695
        %v2079 = vpow.pop %v2078
        %v2080 = vmul.f32 %v2030, 1.442695
        %v2081 = vpow.pop %v2080
        %v2082 = vmul.f32 %v2031, 1.442695
        %v2083 = vpow.pop %v2082
        %v2084 = vmul.f32 %v2032, 1.442695
        %v2085 = vpow.pop %v2084
        %v2086 = vmul.f32 %v2033, 1.442695
        %v2087 = vpow.pop %v2086
        %v2088 = vmul.f32 %v2034, 1.442695
        %v2089 = vpow.pop %v2088
        %v2090 = vmul.f32 %v2035, 1.442695
        %v2091 = vpow.pop %v2090
        %v2092 = vmul.f32 %v2036, 1.442695
        %v2093 = vpow.pop %v2092
        %v2094 = vmul.f32 %v2037, 1.442695
        %v2095 = vpow.pop %v2094
        %v2096 = vmul.f32 %v2038, 1.442695
        %v2097 = vpow.pop %v2096
        %v2098 = vmul.f32 %v2039, 1.442695
        %v2099 = vpow.pop %v2098
        %v2100 = vmul.f32 %v2040, 1.442695
        %v2101 = vpow.pop %v2100
        %v2102 = vmul.f32 %v2041, 1.442695
        %v2103 = vpow.pop %v2102
        %v2104 = vmul.f32 %v2042, 1.442695
        %v2105 = vpow.pop %v2104
        %v2106 = vmul.f32 %v2043, 1.442695
        %v2107 = vpow.pop %v2106
        %v2108 = vadd.f32 %v2045, %v2047
        %2109 = vadd.xlane.f32.xlu0 %v2108
        %v2110 = vpop.xlane.xlu0 %2109
        %v2111 = vadd.f32 %v2049, %v2051
        %2112 = vadd.xlane.f32.xlu0 %v2111
        %v2113 = vpop.xlane.xlu0 %2112
        %v2114 = vadd.f32 %v2053, %v2055
        %2115 = vadd.xlane.f32.xlu0 %v2114
        %v2116 = vpop.xlane.xlu0 %2115
        %v2117 = vadd.f32 %v2057, %v2059
        %2118 = vadd.xlane.f32.xlu0 %v2117
        %v2119 = vpop.xlane.xlu0 %2118
        %v2120 = vadd.f32 %v2061, %v2063
        %2121 = vadd.xlane.f32.xlu0 %v2120
        %v2122 = vpop.xlane.xlu0 %2121
        %v2123 = vadd.f32 %v2065, %v2067
        %2124 = vadd.xlane.f32.xlu0 %v2123
        %v2125 = vpop.xlane.xlu0 %2124
        %v2126 = vadd.f32 %v2069, %v2071
        %2127 = vadd.xlane.f32.xlu0 %v2126
        %v2128 = vpop.xlane.xlu0 %2127
        %v2129 = vadd.f32 %v2073, %v2075
        %2130 = vadd.xlane.f32.xlu0 %v2129
        %v2131 = vpop.xlane.xlu0 %2130
        %v2132 = vadd.f32 %v2077, %v2079
        %2133 = vadd.xlane.f32.xlu0 %v2132
        %v2134 = vpop.xlane.xlu0 %2133
        %v2135 = vadd.f32 %v2081, %v2083
        %2136 = vadd.xlane.f32.xlu0 %v2135
        %v2137 = vpop.xlane.xlu0 %2136
        %v2138 = vadd.f32 %v2085, %v2087
        %2139 = vadd.xlane.f32.xlu0 %v2138
        %v2140 = vpop.xlane.xlu0 %2139
        %v2141 = vadd.f32 %v2089, %v2091
        %2142 = vadd.xlane.f32.xlu0 %v2141
        %v2143 = vpop.xlane.xlu0 %2142
        %v2144 = vadd.f32 %v2093, %v2095
        %2145 = vadd.xlane.f32.xlu0 %v2144
        %v2146 = vpop.xlane.xlu0 %2145
        %v2147 = vadd.f32 %v2097, %v2099
        %2148 = vadd.xlane.f32.xlu0 %v2147
        %v2149 = vpop.xlane.xlu0 %2148
        %v2150 = vadd.f32 %v2101, %v2103
        %2151 = vadd.xlane.f32.xlu0 %v2150
        %v2152 = vpop.xlane.xlu0 %2151
        %v2153 = vadd.f32 %v2105, %v2107
        %2154 = vadd.xlane.f32.xlu0 %v2153
        %v2155 = vpop.xlane.xlu0 %2154
        %v2156 = vrcp.pop %v2110
        %v2157 = vrcp.pop %v2113
        %v2158 = vrcp.pop %v2116
        %v2159 = vrcp.pop %v2119
        %v2160 = vrcp.pop %v2122
        %v2161 = vrcp.pop %v2125
        %v2162 = vrcp.pop %v2128
        %v2163 = vrcp.pop %v2131
        %v2164 = vrcp.pop %v2134
        %v2165 = vrcp.pop %v2137
        %v2166 = vrcp.pop %v2140
        %v2167 = vrcp.pop %v2143
        %v2168 = vrcp.pop %v2146
        %v2169 = vrcp.pop %v2149
        %v2170 = vrcp.pop %v2152
        %v2171 = vrcp.pop %v2155
        %v2172 = vmul.f32 %v2045, %v2156
        %v2173 = vmul.f32 %v2047, %v2156
        %v2174 = vmul.f32 %v2049, %v2157
        %v2175 = vmul.f32 %v2051, %v2157
        %v2176 = vmul.f32 %v2053, %v2158
        %v2177 = vmul.f32 %v2055, %v2158
        %v2178 = vmul.f32 %v2057, %v2159
        %v2179 = vmul.f32 %v2059, %v2159
        %v2180 = vmul.f32 %v2061, %v2160
        %v2181 = vmul.f32 %v2063, %v2160
        %v2182 = vmul.f32 %v2065, %v2161
        %v2183 = vmul.f32 %v2067, %v2161
        %v2184 = vmul.f32 %v2069, %v2162
        %v2185 = vmul.f32 %v2071, %v2162
        %v2186 = vmul.f32 %v2073, %v2163
        %v2187 = vmul.f32 %v2075, %v2163
        %v2188 = vmul.f32 %v2077, %v2164
        %v2189 = vmul.f32 %v2079, %v2164
        %v2190 = vmul.f32 %v2081, %v2165
        %v2191 = vmul.f32 %v2083, %v2165
        %v2192 = vmul.f32 %v2085, %v2166
        %v2193 = vmul.f32 %v2087, %v2166
        %v2194 = vmul.f32 %v2089, %v2167
        %v2195 = vmul.f32 %v2091, %v2167
        %v2196 = vmul.f32 %v2093, %v2168
        %v2197 = vmul.f32 %v2095, %v2168
        %v2198 = vmul.f32 %v2097, %v2169
        %v2199 = vmul.f32 %v2099, %v2169
        %v2200 = vmul.f32 %v2101, %v2170
        %v2201 = vmul.f32 %v2103, %v2170
        %v2202 = vmul.f32 %v2105, %v2171
        %v2203 = vmul.f32 %v2107, %v2171
        %v2204 = vpack.c.bf16 %v1805, %v1803
        %v2205 = vpack.c.bf16 %v1806, %v1804
        %v2206 = vpack.c.bf16 %v1809, %v1807
        %v2207 = vpack.c.bf16 %v1810, %v1808
        %v2208 = vpack.c.bf16 %v1813, %v1811
        %v2209 = vpack.c.bf16 %v1814, %v1812
        %v2210 = vpack.c.bf16 %v1817, %v1815
        %v2211 = vpack.c.bf16 %v1818, %v1816
        %v2212 = vpack.c.bf16 %v1821, %v1819
        %v2213 = vpack.c.bf16 %v1822, %v1820
        %v2214 = vpack.c.bf16 %v1825, %v1823
        %v2215 = vpack.c.bf16 %v1826, %v1824
        %v2216 = vpack.c.bf16 %v1829, %v1827
        %v2217 = vpack.c.bf16 %v1830, %v1828
        %v2218 = vpack.c.bf16 %v1833, %v1831
        %v2219 = vpack.c.bf16 %v1834, %v1832
        %2220 = vmatprep.subr.bf16.mxu0 %v2205
        %2221 = vmatpush1.bf16.xpose.msra.mxu0 %v2204
        %2222 = vmatprep.subr.bf16.mxu0 %v2207
        %2223 = vmatpush1.bf16.xpose.msra.mxu0 %v2206
        %2224 = vmatprep.subr.bf16.mxu0 %v2209
        %2225 = vmatpush1.bf16.xpose.msra.mxu0 %v2208
        %2226 = vmatprep.subr.bf16.mxu0 %v2211
        %2227 = vmatpush1.bf16.xpose.msra.mxu0 %v2210
        %2228 = vmatprep.subr.bf16.mxu0 %v2213
        %2229 = vmatpush1.bf16.xpose.msra.mxu0 %v2212
        %2230 = vmatprep.subr.bf16.mxu0 %v2215
        %2231 = vmatpush1.bf16.xpose.msra.mxu0 %v2214
        %2232 = vmatprep.subr.bf16.mxu0 %v2217
        %2233 = vmatpush1.bf16.xpose.msra.mxu0 %v2216
        %2234 = vmatprep.subr.bf16.mxu0 %v2219
        %2235 = vmatpush1.bf16.xpose.msra.mxu0 %v2218
        %2236 = vmatprep.subr.bf16.mxu0 0
        %2237 = vmatpush1.bf16.xpose.msra.mxu0 0
        %2238 = vmatprep.subr.bf16.mxu0 0
        %2239 = vmatpush1.bf16.xpose.msra.mxu0 0
        %2240 = vmatprep.subr.bf16.mxu0 0
        %2241 = vmatpush1.bf16.xpose.msra.mxu0 0
        %2242 = vmatprep.subr.bf16.mxu0 0
        %2243 = vmatpush1.bf16.xpose.msra.mxu0 0
        %2244 = vmatprep.subr.bf16.mxu0 0
        %2245 = vmatpush1.bf16.xpose.msra.mxu0 0
        %2246 = vmatprep.subr.bf16.mxu0 0
        %2247 = vmatpush1.bf16.xpose.msra.mxu0 0
        %2248 = vmatprep.subr.bf16.mxu0 0
        %2249 = vmatpush1.bf16.xpose.msra.mxu0 0
        %2250 = vmatprep.subr.bf16.mxu0 0
        %2251 = vmatpush1.bf16.xpose.msra.mxu0 0
        %2252 = vmatprep.mubr.bf16.mxu0 %v919
        %2253 = vmatmul.mubr.bf16.gmra.mrb[0].mxu0 %v918
        %v2254 = vpop.f32.mrb[0].mxu0
        %v2255 = vadd.f32 0.0, %v2254
        %v2256 = vpop.f32.mrb[0].mxu0
        %v2257 = vpop.f32.mrb[0].mxu0
        %v2258 = vadd.f32 0.0, %v2257
        %v2259 = vpop.f32.mrb[0].mxu0
        %2260 = vmatprep.mubr.bf16.mxu0 %v921
        %2261 = vmatmul.mubr.bf16.gmra.mrb[0].mxu0 %v920
        %v2262 = vpop.f32.mrb[0].mxu0
        %v2263 = vadd.f32 0.0, %v2262
        %v2264 = vpop.f32.mrb[0].mxu0
        %v2265 = vpop.f32.mrb[0].mxu0
        %v2266 = vadd.f32 0.0, %v2265
        %v2267 = vpop.f32.mrb[0].mxu0
        %2268 = vdwg.mxu0
        %v2269 = vpack.c.bf16 %v2174, %v2172
        %v2270 = vpack.c.bf16 %v2175, %v2173
        %v2271 = vpack.c.bf16 %v2178, %v2176
        %v2272 = vpack.c.bf16 %v2179, %v2177
        %v2273 = vpack.c.bf16 %v2182, %v2180
        %v2274 = vpack.c.bf16 %v2183, %v2181
        %v2275 = vpack.c.bf16 %v2186, %v2184
        %v2276 = vpack.c.bf16 %v2187, %v2185
        %v2277 = vpack.c.bf16 %v2190, %v2188
        %v2278 = vpack.c.bf16 %v2191, %v2189
        %v2279 = vpack.c.bf16 %v2194, %v2192
        %v2280 = vpack.c.bf16 %v2195, %v2193
        %v2281 = vpack.c.bf16 %v2198, %v2196
        %v2282 = vpack.c.bf16 %v2199, %v2197
        %v2283 = vpack.c.bf16 %v2202, %v2200
        %v2284 = vpack.c.bf16 %v2203, %v2201
        %2285 = vmatprep.subr.bf16.mxu0 %v2270
        %2286 = vmatpush1.bf16.xpose.msra.mxu0 %v2269
        %2287 = vmatprep.subr.bf16.mxu0 %v2272
        %2288 = vmatpush1.bf16.xpose.msra.mxu0 %v2271
        %2289 = vmatprep.subr.bf16.mxu0 %v2274
        %2290 = vmatpush1.bf16.xpose.msra.mxu0 %v2273
        %2291 = vmatprep.subr.bf16.mxu0 %v2276
        %2292 = vmatpush1.bf16.xpose.msra.mxu0 %v2275
        %2293 = vmatprep.subr.bf16.mxu0 %v2278
        %2294 = vmatpush1.bf16.xpose.msra.mxu0 %v2277
        %2295 = vmatprep.subr.bf16.mxu0 %v2280
        %2296 = vmatpush1.bf16.xpose.msra.mxu0 %v2279
        %2297 = vmatprep.subr.bf16.mxu0 %v2282
        %2298 = vmatpush1.bf16.xpose.msra.mxu0 %v2281
        %2299 = vmatprep.subr.bf16.mxu0 %v2284
        %2300 = vmatpush1.bf16.xpose.msra.mxu0 %v2283
        %2301 = vmatprep.subr.bf16.mxu0 0
        %2302 = vmatpush1.bf16.xpose.msra.mxu0 0
        %2303 = vmatprep.subr.bf16.mxu0 0
        %2304 = vmatpush1.bf16.xpose.msra.mxu0 0
        %2305 = vmatprep.subr.bf16.mxu0 0
        %2306 = vmatpush1.bf16.xpose.msra.mxu0 0
        %2307 = vmatprep.subr.bf16.mxu0 0
        %2308 = vmatpush1.bf16.xpose.msra.mxu0 0
        %2309 = vmatprep.subr.bf16.mxu0 0
        %2310 = vmatpush1.bf16.xpose.msra.mxu0 0
        %2311 = vmatprep.subr.bf16.mxu0 0
        %2312 = vmatpush1.bf16.xpose.msra.mxu0 0
        %2313 = vmatprep.subr.bf16.mxu0 0
        %2314 = vmatpush1.bf16.xpose.msra.mxu0 0
        %2315 = vmatprep.subr.bf16.mxu0 0
        %2316 = vmatpush1.bf16.xpose.msra.mxu0 0
        %2317 = vmatprep.mubr.bf16.mxu0 %v919
        %2318 = vmatmul.mubr.bf16.gmra.mrb[0].mxu0 %v918
        %v2319 = vpop.f32.mrb[0].mxu0
        %v2320 = vadd.f32 0.0, %v2319
        %v2321 = vpop.f32.mrb[0].mxu0
        %v2322 = vpop.f32.mrb[0].mxu0
        %v2323 = vadd.f32 0.0, %v2322
        %v2324 = vpop.f32.mrb[0].mxu0
        %2325 = vmatprep.mubr.bf16.mxu0 %v921
        %2326 = vmatmul.mubr.bf16.gmra.mrb[0].mxu0 %v920
        %v2327 = vpop.f32.mrb[0].mxu0
        %v2328 = vadd.f32 0.0, %v2327
        %v2329 = vpop.f32.mrb[0].mxu0
        %v2330 = vpop.f32.mrb[0].mxu0
        %v2331 = vadd.f32 0.0, %v2330
        %v2332 = vpop.f32.mrb[0].mxu0
        %2333 = vdwg.mxu0
        %s2334 = sld [smem:[#allocation2]]
        %v2335 = vstv %s2334
        %v2336 = vmul.f32 %v2335, %v2255
        %v2337 = vmul.f32 %v2335, %v2258
        %v2338 = vmul.f32 %v2335, %v2263
        %v2339 = vmul.f32 %v2335, %v2266
        %v2340 = vadd.f32 %v2336, %v926
        %v2341 = vadd.f32 %v2337, %v927
        %v2342 = vadd.f32 %v2338, %v928
        %v2343 = vadd.f32 %v2339, %v929
        %2344 = vst [vmem:[%s408] sm:$0xff] %v2340
        %2345 = vst [vmem:[%s408 + $0x8] sm:$0xff] %v2341
        %2346 = vst [vmem:[%s408 + $0x10] sm:$0xff] %v2342
        %2347 = vst [vmem:[%s408 + $0x18] sm:$0xff] %v2343
        %v2348 = vmul.f32 %v2335, %v2320
        %v2349 = vmul.f32 %v2335, %v2323
        %v2350 = vmul.f32 %v2335, %v2328
        %v2351 = vmul.f32 %v2335, %v2331
        %v2352 = vadd.f32 %v2348, %v932
        %v2353 = vadd.f32 %v2349, %v933
        %v2354 = vadd.f32 %v2350, %v934
        %v2355 = vadd.f32 %v2351, %v935
        %2356 = vst [vmem:[%s414] sm:$0xff] %v2352
        %2357 = vst [vmem:[%s414 + $0x8] sm:$0xff] %v2353
        %2358 = vst [vmem:[%s414 + $0x10] sm:$0xff] %v2354
        %2359 = vst [vmem:[%s414 + $0x18] sm:$0xff] %v2355
        %s2360 = sand.u32 %s266, 1
        %s2361 = sand.u32 %s266, 1
        %s2362 = smul.addr %s2361, 32
        %s2363 = scalar_lea.vmem [#allocation3], %s2362
        %s2364 = sand.u32 %s294, 1
        %s2365 = sand.u32 %s294, 1
        %s2366 = smul.addr %s2365, 32
        %s2367 = scalar_lea.vmem [#allocation4], %s2366
        // Predicated region
        $region61: #{_lambda_.3} parent=59 // pred_check
          %p2368 = pneg %p276
        $region62: #{_lambda_.3} parent=59 // pred_check_branch
          %2370 = sbr.rel (%p2368) target = $region64
        $region63: #{_lambda_.3} parent=59 // pred_region
          %s2371 = smul.addr %s28, 8
          %s2372 = sadd.s32 %s29, %s2371
          %s2373 = smul.addr %s2372, 8
          %s2374 = scalar_lea.vmem %s10, %s2373
          // Predicated region
          $region65: #{_lambda_.3} parent=63 // pred_check
            _
          $region66: #{_lambda_.3} parent=63 // pred_check_branch
            %2376 = sbr.rel (0) target = $region68
          $region67: #{_lambda_.3} parent=63 // pred_region
            // Predicated region
            $region69: #{_lambda_.3} parent=67 // pred_check
              _
            $region70: #{_lambda_.3} parent=67 // pred_check_branch
              %2378 = sbr.rel (0) target = $region72
            $region71: #{_lambda_.3} parent=67 // pred_region
              // Predicated region
              $region84: #{_lambda_.3} parent=71 // pred_check
                _
              $region85: #{_lambda_.3} parent=71 // pred_check_branch
                %2399 = sbr.rel (0) target = $region87
              $region86: #{_lambda_.3} parent=71 // pred_region
                loop: start=0, step=1, limit=1
                $region88: #{_lambda_.3} parent=86 // loop_pre_header
                  _
                $region89: #{_lambda_.3} parent=86 // loop_header
                  %s2401 = sphi 0, %s2405
                  %p2402 = scmp.ge.s32.totalorder %s2401, 1
                  %s2406 = sphi %s2363, %s2363
                  %s2407 = sphi %s2374, %s2374
                $region90: #{_lambda_.3} parent=86 // loop_header_branch
                  %2404 = sbr.rel (%p2402) target = $region94
                $region91: #{_lambda_.3} parent=86 // loop_body
                  %v2408 = vld [vmem:[%s2406] sm:$0xff]
                  %2409 = vst [vmem:[%s2407] sm:$0xff] %v2408
                  %v2410 = vld [vmem:[%s2406 + $0x8] sm:$0xff]
                  %2411 = vst [vmem:[%s2407 + $0x10] sm:$0xff] %v2410
                  %v2412 = vld [vmem:[%s2406 + $0x10] sm:$0xff]
                  %2413 = vst [vmem:[%s2407 + $0x20] sm:$0xff] %v2412
                  %v2414 = vld [vmem:[%s2406 + $0x18] sm:$0xff]
                  %2415 = vst [vmem:[%s2407 + $0x30] sm:$0xff] %v2414
                $region92: #{_lambda_.3} parent=86 // loop_footer
                  %s2405 = sadd.s32 1, %s2401
                $region93: #{_lambda_.3} parent=86 // loop_footer_branch
                  %2400 = sbr.rel target = $region89
                $region94: #{_lambda_.3} parent=86 // loop_exit
                  _
              $region87: #{_lambda_.3} parent=71 // pred_fallthru
                _
              // Predicated region
              $region95: #{_lambda_.3} parent=71 // pred_check
                _
              $region96: #{_lambda_.3} parent=71 // pred_check_branch
                %2417 = sbr.rel target = $region98
              $region97: #{_lambda_.3} parent=71 // pred_region
                _
              $region98: #{_lambda_.3} parent=71 // pred_fallthru
                _
            $region72: #{_lambda_.3} parent=67 // pred_fallthru
              _
            // Predicated region
            $region73: #{_lambda_.3} parent=67 // pred_check
              _
            $region74: #{_lambda_.3} parent=67 // pred_check_branch
              %2380 = sbr.rel target = $region76
            $region75: #{_lambda_.3} parent=67 // pred_region
              loop: start=0, step=1, limit=1
              $region77: #{_lambda_.3} parent=75 // loop_pre_header
                _
              $region78: #{_lambda_.3} parent=75 // loop_header
                %s2383 = sphi 0, %s2387
                %p2384 = scmp.ge.s32.totalorder %s2383, 1
                %s2388 = sphi %s2363, %s2363
                %s2389 = sphi %s2374, %s2374
              $region79: #{_lambda_.3} parent=75 // loop_header_branch
                %2386 = sbr.rel (%p2384) target = $region83
              $region80: #{_lambda_.3} parent=75 // loop_body
                %v2390 = vld [vmem:[%s2388] sm:$0xff]
                %2391 = vst [vmem:[%s2389] sm:$0xff] %v2390
                %v2392 = vld [vmem:[%s2388 + $0x8] sm:$0xff]
                %2393 = vst [vmem:[%s2389 + $0x10] sm:$0xff] %v2392
                %v2394 = vld [vmem:[%s2388 + $0x10] sm:$0xff]
                %2395 = vst [vmem:[%s2389 + $0x20] sm:$0xff] %v2394
                %v2396 = vld [vmem:[%s2388 + $0x18] sm:$0xff]
                %2397 = vst [vmem:[%s2389 + $0x30] sm:$0xff] %v2396
              $region81: #{_lambda_.3} parent=75 // loop_footer
                %s2387 = sadd.s32 1, %s2383
              $region82: #{_lambda_.3} parent=75 // loop_footer_branch
                %2382 = sbr.rel target = $region78
              $region83: #{_lambda_.3} parent=75 // loop_exit
                _
            $region76: #{_lambda_.3} parent=67 // pred_fallthru
              _
          $region68: #{_lambda_.3} parent=63 // pred_fallthru
            _
          %2418 = vnop
        $region64: #{_lambda_.3} parent=59 // pred_fallthru
          _
        // Predicated region
        $region99: #{_lambda_.3} parent=59 // pred_check
          %p2419 = pneg %p304
        $region100: #{_lambda_.3} parent=59 // pred_check_branch
          %2421 = sbr.rel (%p2419) target = $region102
        $region101: #{_lambda_.3} parent=59 // pred_region
          %s2422 = smul.addr %s28, 8
          %s2423 = sadd.s32 %s29, %s2422
          %s2424 = smul.addr %s2423, 8
          %s2425 = scalar_lea.vmem %s11, %s2424
          // Predicated region
          $region103: #{_lambda_.3} parent=101 // pred_check
            _
          $region104: #{_lambda_.3} parent=101 // pred_check_branch
            %2427 = sbr.rel (0) target = $region106
          $region105: #{_lambda_.3} parent=101 // pred_region
            // Predicated region
            $region107: #{_lambda_.3} parent=105 // pred_check
              _
            $region108: #{_lambda_.3} parent=105 // pred_check_branch
              %2429 = sbr.rel (0) target = $region110
            $region109: #{_lambda_.3} parent=105 // pred_region
              // Predicated region
              $region122: #{_lambda_.3} parent=109 // pred_check
                _
              $region123: #{_lambda_.3} parent=109 // pred_check_branch
                %2450 = sbr.rel (0) target = $region125
              $region124: #{_lambda_.3} parent=109 // pred_region
                loop: start=0, step=1, limit=1
                $region126: #{_lambda_.3} parent=124 // loop_pre_header
                  _
                $region127: #{_lambda_.3} parent=124 // loop_header
                  %s2452 = sphi 0, %s2456
                  %p2453 = scmp.ge.s32.totalorder %s2452, 1
                  %s2457 = sphi %s2367, %s2367
                  %s2458 = sphi %s2425, %s2425
                $region128: #{_lambda_.3} parent=124 // loop_header_branch
                  %2455 = sbr.rel (%p2453) target = $region132
                $region129: #{_lambda_.3} parent=124 // loop_body
                  %v2459 = vld [vmem:[%s2457] sm:$0xff]
                  %2460 = vst [vmem:[%s2458] sm:$0xff] %v2459
                  %v2461 = vld [vmem:[%s2457 + $0x8] sm:$0xff]
                  %2462 = vst [vmem:[%s2458 + $0x10] sm:$0xff] %v2461
                  %v2463 = vld [vmem:[%s2457 + $0x10] sm:$0xff]
                  %2464 = vst [vmem:[%s2458 + $0x20] sm:$0xff] %v2463
                  %v2465 = vld [vmem:[%s2457 + $0x18] sm:$0xff]
                  %2466 = vst [vmem:[%s2458 + $0x30] sm:$0xff] %v2465
                $region130: #{_lambda_.3} parent=124 // loop_footer
                  %s2456 = sadd.s32 1, %s2452
                $region131: #{_lambda_.3} parent=124 // loop_footer_branch
                  %2451 = sbr.rel target = $region127
                $region132: #{_lambda_.3} parent=124 // loop_exit
                  _
              $region125: #{_lambda_.3} parent=109 // pred_fallthru
                _
              // Predicated region
              $region133: #{_lambda_.3} parent=109 // pred_check
                _
              $region134: #{_lambda_.3} parent=109 // pred_check_branch
                %2468 = sbr.rel target = $region136
              $region135: #{_lambda_.3} parent=109 // pred_region
                _
              $region136: #{_lambda_.3} parent=109 // pred_fallthru
                _
            $region110: #{_lambda_.3} parent=105 // pred_fallthru
              _
            // Predicated region
            $region111: #{_lambda_.3} parent=105 // pred_check
              _
            $region112: #{_lambda_.3} parent=105 // pred_check_branch
              %2431 = sbr.rel target = $region114
            $region113: #{_lambda_.3} parent=105 // pred_region
              loop: start=0, step=1, limit=1
              $region115: #{_lambda_.3} parent=113 // loop_pre_header
                _
              $region116: #{_lambda_.3} parent=113 // loop_header
                %s2434 = sphi 0, %s2438
                %p2435 = scmp.ge.s32.totalorder %s2434, 1
                %s2439 = sphi %s2367, %s2367
                %s2440 = sphi %s2425, %s2425
              $region117: #{_lambda_.3} parent=113 // loop_header_branch
                %2437 = sbr.rel (%p2435) target = $region121
              $region118: #{_lambda_.3} parent=113 // loop_body
                %v2441 = vld [vmem:[%s2439] sm:$0xff]
                %2442 = vst [vmem:[%s2440] sm:$0xff] %v2441
                %v2443 = vld [vmem:[%s2439 + $0x8] sm:$0xff]
                %2444 = vst [vmem:[%s2440 + $0x10] sm:$0xff] %v2443
                %v2445 = vld [vmem:[%s2439 + $0x10] sm:$0xff]
                %2446 = vst [vmem:[%s2440 + $0x20] sm:$0xff] %v2445
                %v2447 = vld [vmem:[%s2439 + $0x18] sm:$0xff]
                %2448 = vst [vmem:[%s2440 + $0x30] sm:$0xff] %v2447
              $region119: #{_lambda_.3} parent=113 // loop_footer
                %s2438 = sadd.s32 1, %s2434
              $region120: #{_lambda_.3} parent=113 // loop_footer_branch
                %2433 = sbr.rel target = $region116
              $region121: #{_lambda_.3} parent=113 // loop_exit
                _
            $region114: #{_lambda_.3} parent=105 // pred_fallthru
              _
          $region106: #{_lambda_.3} parent=101 // pred_fallthru
            _
          %2469 = vnop
        $region102: #{_lambda_.3} parent=59 // pred_fallthru
          _
      $region60: #{_lambda_.3} parent=5 // pred_fallthru
        _
      %p2470 = scmp.le.s32.totalorder 2, %s19
      // Predicated region
      $region137: #{_lambda_.3} parent=5 // pred_check
        %p2471 = pneg %p2470
      $region138: #{_lambda_.3} parent=5 // pred_check_branch
        %2473 = sbr.rel (%p2471) target = $region140
      $region139: #{_lambda_.3} parent=5 // pred_region
        %s2474 = ssub.s32 %s19, 2
        // Predicated region
        $region141: #{_lambda_.3} parent=139 // pred_check
          %p2475 = pneg %p282
        $region142: #{_lambda_.3} parent=139 // pred_check_branch
          %2477 = sbr.rel (%p2475) target = $region144
        $region143: #{_lambda_.3} parent=139 // pred_region
          %s2478 = sand.u32 %s267, 1
          %s2479 = sand.u32 %s267, 1
          %s2480 = smul.addr %s2479, 32
          %s2481 = scalar_lea.vmem [#allocation3], %s2480
        $region144: #{_lambda_.3} parent=139 // pred_fallthru
          _
        // Predicated region
        $region145: #{_lambda_.3} parent=139 // pred_check
          %p2482 = pneg %p310
        $region146: #{_lambda_.3} parent=139 // pred_check_branch
          %2484 = sbr.rel (%p2482) target = $region148
        $region147: #{_lambda_.3} parent=139 // pred_region
          %s2485 = sand.u32 %s295, 1
          %s2486 = sand.u32 %s295, 1
          %s2487 = smul.addr %s2486, 32
          %s2488 = scalar_lea.vmem [#allocation4], %s2487
        $region148: #{_lambda_.3} parent=139 // pred_fallthru
          _
      $region140: #{_lambda_.3} parent=5 // pred_fallthru
        _
    $region6: #{_lambda_.3} parent=1 // loop_footer
      %s23 = sadd.s32 1, %s19
    $region7: #{_lambda_.3} parent=1 // loop_footer_branch
      %18 = sbr.rel target = $region3
    $region8: #{_lambda_.3} parent=1 // loop_exit
      _

</llo_original>
